<compile_context>
chip_gen: v7x
topology: tpu7x:2x2x1
jax: 0.10.0
libtpu: 0.0.40
codegen_flags: <defaults>
</compile_context>

<pallas_src>
import math

import numpy as np
import jax
import jax.numpy as jnp
from jax.experimental import pallas as pl
from jax.experimental.pallas import tpu as pltpu


# ----------------------------------------------------------------------------
# NATTEN (neighborhood attention) static index helpers — numpy, shape-static
# ----------------------------------------------------------------------------
def _na_window_starts(length, kernel_size, dilation):
    """Start index of the dilated k-neighborhood for each query position (NATTEN semantics)."""
    nh = kernel_size // 2
    out = []
    for i in range(length):
        if dilation <= 1:
            s = max(i - nh, 0)
            if i + nh >= length:
                s += length - i - nh - 1
        else:
            ni = i - nh * dilation
            if ni < 0:
                s = i % dilation
            elif i + nh * dilation >= length:
                imodd = i % dilation
                a = (length // dilation) * dilation
                b = length - a
                if imodd < b:
                    s = length - b + imodd - 2 * nh * dilation
                else:
                    s = a + imodd - kernel_size * dilation
            else:
                s = ni
        out.append(s)
    return np.asarray(out, dtype=np.int32)


def _na_pb_starts(length, kernel_size, dilation):
    """Start index into the (2k-1) relative-position-bias table per query position."""
    nh = kernel_size // 2
    out = []
    for i in range(length):
        if dilation <= 1:
            s = nh
            if i < nh:
                s += nh - i
            if i + nh >= length:
                s += length - i - 1 - nh
        else:
            if i - nh * dilation < 0:
                s = kernel_size - 1 - (i // dilation)
            elif i + nh * dilation >= length:
                s = (length - i - 1) // dilation
            else:
                s = nh
        out.append(s)
    return np.asarray(out, dtype=np.int32)


def build_dense_attn_bias(rpb, H, W, kernel_size, dilation):
    """Fold the static NATTEN neighborhood selection + RPB gather into one dense
    additive bias (nH, HW, HW): rpb value at neighbor positions, -1e30 elsewhere."""
    K = kernel_size
    HW = H * W
    offs = np.arange(K, dtype=np.int32) * dilation
    row_idx = _na_window_starts(H, K, dilation)[:, None] + offs[None, :]     # (H, K)
    col_idx = _na_window_starts(W, K, dilation)[:, None] + offs[None, :]     # (W, K)
    kr = np.arange(K, dtype=np.int32)
    bi = _na_pb_starts(H, K, dilation)[:, None] + kr[None, :]                # (H, K)
    bj = _na_pb_starts(W, K, dilation)[:, None] + kr[None, :]                # (W, K)

    q_flat = (np.arange(H)[:, None, None, None] * W
              + np.arange(W)[None, :, None, None])                           # (H, W, 1, 1)
    q_flat = np.broadcast_to(q_flat, (H, W, K, K)).reshape(-1)
    p_flat = (row_idx[:, None, :, None] * W
              + col_idx[None, :, None, :]).reshape(-1)                       # (H*W*K*K,)
    bi_flat = np.broadcast_to(bi[:, None, :, None], (H, W, K, K)).reshape(-1)
    bj_flat = np.broadcast_to(bj[None, :, None, :], (H, W, K, K)).reshape(-1)

    vals = rpb[:, bi_flat, bj_flat]                                          # (nH, H*W*K*K)
    dense = jnp.full((rpb.shape[0], HW, HW), -1e30, dtype=jnp.float32)
    dense = dense.at[:, q_flat, p_flat].set(vals)
    return dense


# ----------------------------------------------------------------------------
# Fused whole-DinatLayer Pallas kernel
# ----------------------------------------------------------------------------
def _make_dinat_layer_kernel(B, H, W, C, num_heads, inter_dim, eps):
    HW = H * W
    hd = C // num_heads
    scale = 1.0 / math.sqrt(hd)

    def kernel(x_ref, g1_ref, b1_ref, wqkv_ref, bqkv_ref, bias_ref,
               wo_ref, bo_ref, ls0_ref, ls1_ref, g2_ref, b2_ref,
               w1_ref, bfc1_ref, w2_ref, bfc2_ref,
               o_ref, qkv_scr, ctx_scr):
        x = x_ref[...]                                              # (B*HW, C)

        # ---- LayerNorm (before) ----
        mean = jnp.mean(x, axis=-1, keepdims=True)
        xc = x - mean
        var = jnp.mean(xc * xc, axis=-1, keepdims=True)
        h = xc * jax.lax.rsqrt(var + eps) * g1_ref[...] + b1_ref[...]

        # ---- fused Q|K|V projection (single MXU matmul, lane-dense output) ----
        qkv_scr[...] = (jnp.dot(h, wqkv_ref[...], preferred_element_type=jnp.float32)
                        + bqkv_ref[...])

        # ---- neighborhood attention as dense masked attention ----
        for b in range(B):                       # static unrolled (B small)
            rows = pl.ds(b * HW, HW)
            for hh in range(num_heads):          # static unrolled
                q = qkv_scr[rows, pl.ds(hh * hd, hd)] * scale            # (HW, hd)
                k = qkv_scr[rows, pl.ds(C + hh * hd, hd)]                # (HW, hd)
                v = qkv_scr[rows, pl.ds(2 * C + hh * hd, hd)]            # (HW, hd)
                s = jnp.dot(q, k.T, preferred_element_type=jnp.float32)  # (HW, HW)
                s = s + bias_ref[hh]                                     # rpb / -1e30 mask
                m = jnp.max(s, axis=-1, keepdims=True)
                e = jnp.exp(s - m)
                denom = jnp.sum(e, axis=-1, keepdims=True)
                p = e * pl.reciprocal(denom, approx=True)                # softmax
                ctx_scr[rows, pl.ds(hh * hd, hd)] = jnp.dot(
                    p, v, preferred_element_type=jnp.float32)            # (HW, hd)

        # ---- attention output projection + layer_scale[0] + residual ----
        attn = (jnp.dot(ctx_scr[...], wo_ref[...], preferred_element_type=jnp.float32)
                + bo_ref[...])
        x2 = x + ls0_ref[...] * attn

        # ---- LayerNorm (after) ----
        mean2 = jnp.mean(x2, axis=-1, keepdims=True)
        xc2 = x2 - mean2
        var2 = jnp.mean(xc2 * xc2, axis=-1, keepdims=True)
        h2 = xc2 * jax.lax.rsqrt(var2 + eps) * g2_ref[...] + b2_ref[...]

        # ---- MLP: fc1 + gelu_new + fc2 + layer_scale[1] + residual ----
        y = jnp.dot(h2, w1_ref[...], preferred_element_type=jnp.float32) + bfc1_ref[...]
        y = jax.nn.gelu(y, approximate=True)          # transformers ACT2FN["gelu_new"]
        y = jnp.dot(y, w2_ref[...], preferred_element_type=jnp.float32) + bfc2_ref[...]
        o_ref[...] = x2 + ls1_ref[...] * y

    return kernel


def dinat_layer_pallas(x, p, kernel_size, dilation, num_heads, eps):
    B, H, W, C = x.shape
    HW = H * W
    N = B * HW
    inter = p["w1"].shape[1]
    window = kernel_size * dilation
    # DinatLayer.maybe_pad only pads when H or W < kernel_size * dilation.
    # TODO(synk): padding branch not needed for these shapes (no-op), so it is asserted away.
    assert H >= window and W >= window, "maybe_pad branch not implemented"

    dense_bias = build_dense_attn_bias(p["rpb"], H, W, kernel_size, dilation)  # (nH, HW, HW)
    w_qkv = jnp.concatenate([p["wq"], p["wk"], p["wv"]], axis=1)               # (C, 3C)
    b_qkv = jnp.concatenate([p["bq"], p["bk"], p["bv"]], axis=0)               # (3C,)

    kernel = _make_dinat_layer_kernel(B, H, W, C, num_heads, inter, eps)
    r2 = lambda a: a.reshape(1, -1)

    out = pl.pallas_call(
        kernel,
        out_shape=jax.ShapeDtypeStruct((N, C), jnp.float32),
        grid=(1,),
        in_specs=[
            pl.BlockSpec((N, C), lambda i: (0, 0)),                   # x
            pl.BlockSpec((1, C), lambda i: (0, 0)),                   # ln1 gamma
            pl.BlockSpec((1, C), lambda i: (0, 0)),                   # ln1 beta
            pl.BlockSpec((C, 3 * C), lambda i: (0, 0)),               # fused qkv weight
            pl.BlockSpec((1, 3 * C), lambda i: (0, 0)),               # fused qkv bias
            pl.BlockSpec((num_heads, HW, HW), lambda i: (0, 0, 0)),   # dense attn bias / mask
            pl.BlockSpec((C, C), lambda i: (0, 0)),                   # wo
            pl.BlockSpec((1, C), lambda i: (0, 0)),                   # bo
            pl.BlockSpec((1, C), lambda i: (0, 0)),                   # layer_scale[0]
            pl.BlockSpec((1, C), lambda i: (0, 0)),                   # layer_scale[1]
            pl.BlockSpec((1, C), lambda i: (0, 0)),                   # ln2 gamma
            pl.BlockSpec((1, C), lambda i: (0, 0)),                   # ln2 beta
            pl.BlockSpec((C, inter), lambda i: (0, 0)),               # fc1 weight
            pl.BlockSpec((1, inter), lambda i: (0, 0)),               # fc1 bias
            pl.BlockSpec((inter, C), lambda i: (0, 0)),               # fc2 weight
            pl.BlockSpec((1, C), lambda i: (0, 0)),                   # fc2 bias
        ],
        out_specs=pl.BlockSpec((N, C), lambda i: (0, 0)),
        scratch_shapes=[
            pltpu.VMEM((N, 3 * C), jnp.float32),                      # fused qkv activations
            pltpu.VMEM((N, C), jnp.float32),                          # attention context
        ],
    )(
        x.reshape(N, C),
        r2(p["ln1_g"]), r2(p["ln1_b"]),
        w_qkv, r2(b_qkv),
        dense_bias,
        p["wo"], r2(p["bo"]),
        p["layer_scale"][0:1, :], p["layer_scale"][1:2, :],
        r2(p["ln2_g"]), r2(p["ln2_b"]),
        p["w1"], r2(p["b1"]),
        p["w2"], r2(p["b2"]),
    )
    return out.reshape(B, H, W, C)


def dinat_stage_pallas(x, layer_params, dilations, kernel_size, num_heads, eps):
    hidden_states = x
    for p, dil in zip(layer_params, dilations):
        hidden_states = dinat_layer_pallas(hidden_states, p, kernel_size, dil, num_heads, eps)
    hidden_states_before_downsampling = hidden_states
    # downsample=None in this DinatStage configuration
    return hidden_states, hidden_states_before_downsampling


# ----------------------------------------------------------------------------
# Pure-JAX reference (independent gather-based NATTEN formulation) — check only
# ----------------------------------------------------------------------------
def _ref_layernorm(x, g, b, eps):
    mean = jnp.mean(x, axis=-1, keepdims=True)
    var = jnp.mean((x - mean) ** 2, axis=-1, keepdims=True)
    return (x - mean) * jax.lax.rsqrt(var + eps) * g + b


def ref_dinat_layer(x, p, kernel_size, dilation, num_heads, eps):
    B, H, W, C = x.shape
    hd = C // num_heads
    HW, KK = H * W, kernel_size * kernel_size

    shortcut = x
    h = _ref_layernorm(x, p["ln1_g"], p["ln1_b"], eps)

    lin = lambda t, w, b: jnp.dot(t, w) + b
    q = lin(h, p["wq"], p["bq"])
    k = lin(h, p["wk"], p["bk"])
    v = lin(h, p["wv"], p["bv"])

    def to_heads(t):  # (B,H,W,C) -> (B, nH, H, W, hd) == transpose_for_scores
        return t.reshape(B, H, W, num_heads, hd).transpose(0, 3, 1, 2, 4)

    q5, k5, v5 = to_heads(q), to_heads(k), to_heads(v)

    offs = np.arange(kernel_size, dtype=np.int32) * dilation
    row_idx = _na_window_starts(H, kernel_size, dilation)[:, None] + offs[None, :]
    col_idx = _na_window_starts(W, kernel_size, dilation)[:, None] + offs[None, :]
    kr = np.arange(kernel_size, dtype=np.int32)
    bias_i = _na_pb_starts(H, kernel_size, dilation)[:, None] + kr[None, :]
    bias_j = _na_pb_starts(W, kernel_size, dilation)[:, None] + kr[None, :]

    kg = k5[:, :, row_idx[:, None, :, None], col_idx[None, :, None, :], :].reshape(
        B, num_heads, HW, KK, hd)
    vg = v5[:, :, row_idx[:, None, :, None], col_idx[None, :, None, :], :].reshape(
        B, num_heads, HW, KK, hd)
    bias = p["rpb"][:, bias_i[:, None, :, None], bias_j[None, :, None, :]].reshape(
        num_heads, HW, KK)

    scale = 1.0 / math.sqrt(hd)
    scores = jnp.einsum("bhnd,bhnkd->bhnk",
                        q5.reshape(B, num_heads, HW, hd) * scale, kg) + bias[None]
    probs = jax.nn.softmax(scores, axis=-1)
    ctx = jnp.einsum("bhnk,bhnkd->bhnd", probs, vg)
    ctx = ctx.reshape(B, num_heads, H, W, hd).transpose(0, 2, 3, 1, 4).reshape(B, H, W, C)

    attn_out = lin(ctx, p["wo"], p["bo"])
    x2 = shortcut + p["layer_scale"][0] * attn_out

    y = _ref_layernorm(x2, p["ln2_g"], p["ln2_b"], eps)
    y = jax.nn.gelu(lin(y, p["w1"], p["b1"]), approximate=True)
    y = lin(y, p["w2"], p["b2"])
    return x2 + p["layer_scale"][1] * y


def dinat_stage_ref(x, layer_params, dilations, kernel_size, num_heads, eps):
    hs = x
    for p, dil in zip(layer_params, dilations):
        hs = ref_dinat_layer(hs, p, kernel_size, dil, num_heads, eps)
    return hs, hs


# ----------------------------------------------------------------------------
# Deterministic parameter init (shapes per module __init__; weights stored as (in, out))
# ----------------------------------------------------------------------------
def init_layer_params(key, dim, num_heads, kernel_size, mlp_ratio, layer_scale_init=1.0):
    inter = int(mlp_ratio * dim)
    ks = jax.random.split(key, 13)

    def w_init(k, fan_in, fan_out):
        return jax.random.normal(k, (fan_in, fan_out), jnp.float32) * 0.02

    def b_init(k, n):
        return jax.random.normal(k, (n,), jnp.float32) * 0.02

    return {
        "ln1_g": jnp.ones((dim,), jnp.float32), "ln1_b": jnp.zeros((dim,), jnp.float32),
        "wq": w_init(ks[0], dim, dim), "bq": b_init(ks[1], dim),
        "wk": w_init(ks[2], dim, dim), "bk": b_init(ks[3], dim),
        "wv": w_init(ks[4], dim, dim), "bv": b_init(ks[5], dim),
        # nn.Parameter(torch.zeros(nH, 2k-1, 2k-1)); small random here so RPB path is exercised
        "rpb": jax.random.normal(ks[6], (num_heads, 2 * kernel_size - 1, 2 * kernel_size - 1),
                                 jnp.float32) * 0.02,
        "wo": w_init(ks[7], dim, dim), "bo": b_init(ks[8], dim),
        "ln2_g": jnp.ones((dim,), jnp.float32), "ln2_b": jnp.zeros((dim,), jnp.float32),
        "w1": w_init(ks[9], dim, inter), "b1": b_init(ks[10], inter),
        "w2": w_init(ks[11], inter, dim), "b2": b_init(ks[12], dim),
        # layer_scale_init_value * torch.ones((2, dim))
        "layer_scale": jnp.full((2, dim), layer_scale_init, jnp.float32),
    }


if __name__ == "__main__":
    # Small shapes consistent with a DinatStage: (B, H, W, C) with C % num_heads == 0
    B, H, W, C = 2, 8, 8, 32
    num_heads = 2
    kernel_size = 3
    depth = 2
    dilations = (1, 2)          # per-layer dilations; window sizes 3 and 6 (<= H, W)
    mlp_ratio = 2.0
    eps = 1e-5

    key = jax.random.PRNGKey(0)
    kx, *layer_keys = jax.random.split(key, depth + 1)
    hidden_states = jax.random.normal(kx, (B, H, W, C), jnp.float32)
    params = [init_layer_params(lk, C, num_heads, kernel_size, mlp_ratio) for lk in layer_keys]

    out, out_before = dinat_stage_pallas(hidden_states, params, dilations,
                                         kernel_size, num_heads, eps)
    out = jax.block_until_ready(out)
    out_before = jax.block_until_ready(out_before)

    # Independent pure-JAX reference check (gather-based NATTEN formulation)
    ref, ref_before = dinat_stage_ref(hidden_states, params, dilations,
                                      kernel_size, num_heads, eps)
    np.testing.assert_allclose(np.asarray(out), np.asarray(ref), rtol=3e-3, atol=3e-3)
    np.testing.assert_allclose(np.asarray(out_before), np.asarray(ref_before),
                               rtol=3e-3, atol=3e-3)

    print("KERNEL_OK")
</pallas_src>

<mosaic_0001>
module attributes {stable_mosaic.version = 11 : i64} {
  func.func @kernel(%arg0: i32, %arg1: memref<128x32xf32, #tpu.memory_space<vmem>>, %arg2: memref<1x32xf32, #tpu.memory_space<vmem>>, %arg3: memref<1x32xf32, #tpu.memory_space<vmem>>, %arg4: memref<32x96xf32, #tpu.memory_space<vmem>>, %arg5: memref<1x96xf32, #tpu.memory_space<vmem>>, %arg6: memref<2x64x64xf32, #tpu.memory_space<vmem>>, %arg7: memref<32x32xf32, #tpu.memory_space<vmem>>, %arg8: memref<1x32xf32, #tpu.memory_space<vmem>>, %arg9: memref<1x32xf32, #tpu.memory_space<vmem>>, %arg10: memref<1x32xf32, #tpu.memory_space<vmem>>, %arg11: memref<1x32xf32, #tpu.memory_space<vmem>>, %arg12: memref<1x32xf32, #tpu.memory_space<vmem>>, %arg13: memref<32x64xf32, #tpu.memory_space<vmem>>, %arg14: memref<1x64xf32, #tpu.memory_space<vmem>>, %arg15: memref<64x32xf32, #tpu.memory_space<vmem>>, %arg16: memref<1x32xf32, #tpu.memory_space<vmem>>, %arg17: memref<128x32xf32, #tpu.memory_space<vmem>>, %arg18: memref<128x96xf32, #tpu.memory_space<vmem>>, %arg19: memref<128x32xf32, #tpu.memory_space<vmem>>) attributes {dimension_semantics = [#tpu.dimension_semantics<arbitrary>], iteration_bounds = array<i64: 1>, scalar_prefetch = 0 : i64, scratch_operands = 2 : i64, tpu.core_type = #tpu.core_type<tc>, window_params = [{pipeline_mode = #tpu.pipeline_mode<synchronous>, transform_indices = @transform_0, window_bounds = array<i64: 128, 32>}, {pipeline_mode = #tpu.pipeline_mode<synchronous>, transform_indices = @transform_1, window_bounds = array<i64: 1, 32>}, {pipeline_mode = #tpu.pipeline_mode<synchronous>, transform_indices = @transform_2, window_bounds = array<i64: 1, 32>}, {pipeline_mode = #tpu.pipeline_mode<synchronous>, transform_indices = @transform_3, window_bounds = array<i64: 32, 96>}, {pipeline_mode = #tpu.pipeline_mode<synchronous>, transform_indices = @transform_4, window_bounds = array<i64: 1, 96>}, {pipeline_mode = #tpu.pipeline_mode<synchronous>, transform_indices = @transform_5, window_bounds = array<i64: 2, 64, 64>}, {pipeline_mode = #tpu.pipeline_mode<synchronous>, transform_indices = @transform_6, window_bounds = array<i64: 32, 32>}, {pipeline_mode = #tpu.pipeline_mode<synchronous>, transform_indices = @transform_7, window_bounds = array<i64: 1, 32>}, {pipeline_mode = #tpu.pipeline_mode<synchronous>, transform_indices = @transform_8, window_bounds = array<i64: 1, 32>}, {pipeline_mode = #tpu.pipeline_mode<synchronous>, transform_indices = @transform_9, window_bounds = array<i64: 1, 32>}, {pipeline_mode = #tpu.pipeline_mode<synchronous>, transform_indices = @transform_10, window_bounds = array<i64: 1, 32>}, {pipeline_mode = #tpu.pipeline_mode<synchronous>, transform_indices = @transform_11, window_bounds = array<i64: 1, 32>}, {pipeline_mode = #tpu.pipeline_mode<synchronous>, transform_indices = @transform_12, window_bounds = array<i64: 32, 64>}, {pipeline_mode = #tpu.pipeline_mode<synchronous>, transform_indices = @transform_13, window_bounds = array<i64: 1, 64>}, {pipeline_mode = #tpu.pipeline_mode<synchronous>, transform_indices = @transform_14, window_bounds = array<i64: 64, 32>}, {pipeline_mode = #tpu.pipeline_mode<synchronous>, transform_indices = @transform_15, window_bounds = array<i64: 1, 32>}, {pipeline_mode = #tpu.pipeline_mode<synchronous>, transform_indices = @transform_16, window_bounds = array<i64: 128, 32>}]} {
    %c0 = arith.constant 0 : index
    %c0_0 = arith.constant 0 : index
    %0 = vector.load %arg1[%c0, %c0_0] : memref<128x32xf32, #tpu.memory_space<vmem>>, vector<128x32xf32>
    %cst = arith.constant dense<0.000000e+00> : vector<128xf32>
    %1 = vector.multi_reduction <add>, %0, %cst [1] : vector<128x32xf32> to vector<128xf32>
    %2 = vector.shape_cast %1 : vector<128xf32> to vector<128x1xf32>
    %cst_1 = arith.constant 3.200000e+01 : f32
    %3 = vector.broadcast %cst_1 : f32 to vector<128x1xf32>
    %4 = arith.divf %2, %3 : vector<128x1xf32>
    %5 = vector.broadcast %4 : vector<128x1xf32> to vector<128x32xf32>
    %6 = arith.subf %0, %5 : vector<128x32xf32>
    %7 = arith.mulf %6, %6 : vector<128x32xf32>
    %cst_2 = arith.constant dense<0.000000e+00> : vector<128xf32>
    %8 = vector.multi_reduction <add>, %7, %cst_2 [1] : vector<128x32xf32> to vector<128xf32>
    %9 = vector.shape_cast %8 : vector<128xf32> to vector<128x1xf32>
    %cst_3 = arith.constant 3.200000e+01 : f32
    %10 = vector.broadcast %cst_3 : f32 to vector<128x1xf32>
    %11 = arith.divf %9, %10 : vector<128x1xf32>
    %cst_4 = arith.constant 9.99999974E-6 : f32
    %12 = vector.broadcast %cst_4 : f32 to vector<128x1xf32>
    %13 = arith.addf %11, %12 : vector<128x1xf32>
    %14 = math.rsqrt %13 : vector<128x1xf32>
    %15 = vector.broadcast %14 : vector<128x1xf32> to vector<128x32xf32>
    %16 = arith.mulf %6, %15 : vector<128x32xf32>
    %c0_5 = arith.constant 0 : index
    %c0_6 = arith.constant 0 : index
    %17 = vector.load %arg2[%c0_5, %c0_6] : memref<1x32xf32, #tpu.memory_space<vmem>>, vector<1x32xf32>
    %18 = vector.broadcast %17 : vector<1x32xf32> to vector<128x32xf32>
    %19 = arith.mulf %16, %18 : vector<128x32xf32>
    %c0_7 = arith.constant 0 : index
    %c0_8 = arith.constant 0 : index
    %20 = vector.load %arg3[%c0_7, %c0_8] : memref<1x32xf32, #tpu.memory_space<vmem>>, vector<1x32xf32>
    %21 = vector.broadcast %20 : vector<1x32xf32> to vector<128x32xf32>
    %22 = arith.addf %19, %21 : vector<128x32xf32>
    %c0_9 = arith.constant 0 : index
    %c0_10 = arith.constant 0 : index
    %23 = vector.load %arg4[%c0_9, %c0_10] : memref<32x96xf32, #tpu.memory_space<vmem>>, vector<32x96xf32>
    %cst_11 = arith.constant dense<0.000000e+00> : vector<128x96xf32>
    %24 = tpu.matmul %22, %23, %cst_11 {dimension_numbers = #tpu.dot_dimension_numbers<[1], [0], [0], [1], [0, 0, 1, 1], [], []>} : vector<128x32xf32>, vector<32x96xf32>, vector<128x96xf32> -> vector<128x96xf32>
    %c0_12 = arith.constant 0 : index
    %c0_13 = arith.constant 0 : index
    %25 = vector.load %arg5[%c0_12, %c0_13] : memref<1x96xf32, #tpu.memory_space<vmem>>, vector<1x96xf32>
    %26 = vector.broadcast %25 : vector<1x96xf32> to vector<128x96xf32>
    %27 = arith.addf %24, %26 : vector<128x96xf32>
    %c0_14 = arith.constant 0 : index
    %c0_15 = arith.constant 0 : index
    %28 = vector.load %arg18[%c0_14, %c0_15] : memref<128x96xf32, #tpu.memory_space<vmem>>, vector<128x96xf32>
    tpu.vector_store %arg18[%c0_14, %c0_15], %27 {strides = array<i32>} : memref<128x96xf32, #tpu.memory_space<vmem>>, vector<128x96xf32>,
    %c0_16 = arith.constant 0 : index
    %c0_17 = arith.constant 0 : index
    %29 = vector.load %arg18[%c0_16, %c0_17] : memref<128x96xf32, #tpu.memory_space<vmem>>, vector<64x16xf32>
    %cst_18 = arith.constant 2.500000e-01 : f32
    %30 = vector.broadcast %cst_18 : f32 to vector<64x16xf32>
    %31 = arith.mulf %29, %30 : vector<64x16xf32>
    %c0_19 = arith.constant 0 : index
    %c32 = arith.constant 32 : index
    %32 = vector.load %arg18[%c0_19, %c32] : memref<128x96xf32, #tpu.memory_space<vmem>>, vector<64x16xf32>
    %c0_20 = arith.constant 0 : index
    %c64 = arith.constant 64 : index
    %33 = vector.load %arg18[%c0_20, %c64] : memref<128x96xf32, #tpu.memory_space<vmem>>, vector<64x16xf32>
    %34 = tpu.transpose %32, [1, 0] : vector<64x16xf32> -> vector<16x64xf32>
    %cst_21 = arith.constant dense<0.000000e+00> : vector<64x64xf32>
    %35 = tpu.matmul %31, %34, %cst_21 {dimension_numbers = #tpu.dot_dimension_numbers<[1], [0], [0], [1], [0, 0, 1, 1], [], []>} : vector<64x16xf32>, vector<16x64xf32>, vector<64x64xf32> -> vector<64x64xf32>
    %c0_22 = arith.constant 0 : index
    %c0_23 = arith.constant 0 : index
    %c0_24 = arith.constant 0 : index
    %36 = vector.load %arg6[%c0_22, %c0_23, %c0_24] : memref<2x64x64xf32, #tpu.memory_space<vmem>>, vector<1x64x64xf32>
    %37 = vector.shape_cast %36 : vector<1x64x64xf32> to vector<64x64xf32>
    %38 = arith.addf %35, %37 : vector<64x64xf32>
    %cst_25 = arith.constant dense<0xFF800000> : vector<64xf32>
    %39 = vector.multi_reduction <maximumf>, %38, %cst_25 [1] : vector<64x64xf32> to vector<64xf32>
    %40 = vector.shape_cast %39 : vector<64xf32> to vector<64x1xf32>
    %41 = vector.broadcast %40 : vector<64x1xf32> to vector<64x64xf32>
    %42 = arith.subf %38, %41 : vector<64x64xf32>
    %43 = math.exp %42 : vector<64x64xf32>
    %cst_26 = arith.constant dense<0.000000e+00> : vector<64xf32>
    %44 = vector.multi_reduction <add>, %43, %cst_26 [1] : vector<64x64xf32> to vector<64xf32>
    %45 = vector.shape_cast %44 : vector<64xf32> to vector<64x1xf32>
    %46 = tpu.reciprocal %45 {approx = true} : vector<64x1xf32> -> vector<64x1xf32>
    %47 = vector.broadcast %46 : vector<64x1xf32> to vector<64x64xf32>
    %48 = arith.mulf %43, %47 : vector<64x64xf32>
    %cst_27 = arith.constant dense<0.000000e+00> : vector<64x16xf32>
    %49 = tpu.matmul %48, %33, %cst_27 {dimension_numbers = #tpu.dot_dimension_numbers<[1], [0], [0], [1], [0, 0, 1, 1], [], []>} : vector<64x64xf32>, vector<64x16xf32>, vector<64x16xf32> -> vector<64x16xf32>
    %c0_28 = arith.constant 0 : index
    %c0_29 = arith.constant 0 : index
    %50 = vector.load %arg19[%c0_28, %c0_29] : memref<128x32xf32, #tpu.memory_space<vmem>>, vector<64x16xf32>
    tpu.vector_store %arg19[%c0_28, %c0_29], %49 {strides = array<i32>} : memref<128x32xf32, #tpu.memory_space<vmem>>, vector<64x16xf32>,
    %c0_30 = arith.constant 0 : index
    %c16 = arith.constant 16 : index
    %51 = vector.load %arg18[%c0_30, %c16] : memref<128x96xf32, #tpu.memory_space<vmem>>, vector<64x16xf32>
    %cst_31 = arith.constant 2.500000e-01 : f32
    %52 = vector.broadcast %cst_31 : f32 to vector<64x16xf32>
    %53 = arith.mulf %51, %52 : vector<64x16xf32>
    %c0_32 = arith.constant 0 : index
    %c48 = arith.constant 48 : index
    %54 = vector.load %arg18[%c0_32, %c48] : memref<128x96xf32, #tpu.memory_space<vmem>>, vector<64x16xf32>
    %c0_33 = arith.constant 0 : index
    %c80 = arith.constant 80 : index
    %55 = vector.load %arg18[%c0_33, %c80] : memref<128x96xf32, #tpu.memory_space<vmem>>, vector<64x16xf32>
    %56 = tpu.transpose %54, [1, 0] : vector<64x16xf32> -> vector<16x64xf32>
    %cst_34 = arith.constant dense<0.000000e+00> : vector<64x64xf32>
    %57 = tpu.matmul %53, %56, %cst_34 {dimension_numbers = #tpu.dot_dimension_numbers<[1], [0], [0], [1], [0, 0, 1, 1], [], []>} : vector<64x16xf32>, vector<16x64xf32>, vector<64x64xf32> -> vector<64x64xf32>
    %c1 = arith.constant 1 : index
    %c0_35 = arith.constant 0 : index
    %c0_36 = arith.constant 0 : index
    %58 = vector.load %arg6[%c1, %c0_35, %c0_36] : memref<2x64x64xf32, #tpu.memory_space<vmem>>, vector<1x64x64xf32>
    %59 = vector.shape_cast %58 : vector<1x64x64xf32> to vector<64x64xf32>
    %60 = arith.addf %57, %59 : vector<64x64xf32>
    %cst_37 = arith.constant dense<0xFF800000> : vector<64xf32>
    %61 = vector.multi_reduction <maximumf>, %60, %cst_37 [1] : vector<64x64xf32> to vector<64xf32>
    %62 = vector.shape_cast %61 : vector<64xf32> to vector<64x1xf32>
    %63 = vector.broadcast %62 : vector<64x1xf32> to vector<64x64xf32>
    %64 = arith.subf %60, %63 : vector<64x64xf32>
    %65 = math.exp %64 : vector<64x64xf32>
    %cst_38 = arith.constant dense<0.000000e+00> : vector<64xf32>
    %66 = vector.multi_reduction <add>, %65, %cst_38 [1] : vector<64x64xf32> to vector<64xf32>
    %67 = vector.shape_cast %66 : vector<64xf32> to vector<64x1xf32>
    %68 = tpu.reciprocal %67 {approx = true} : vector<64x1xf32> -> vector<64x1xf32>
    %69 = vector.broadcast %68 : vector<64x1xf32> to vector<64x64xf32>
    %70 = arith.mulf %65, %69 : vector<64x64xf32>
    %cst_39 = arith.constant dense<0.000000e+00> : vector<64x16xf32>
    %71 = tpu.matmul %70, %55, %cst_39 {dimension_numbers = #tpu.dot_dimension_numbers<[1], [0], [0], [1], [0, 0, 1, 1], [], []>} : vector<64x64xf32>, vector<64x16xf32>, vector<64x16xf32> -> vector<64x16xf32>
    %c0_40 = arith.constant 0 : index
    %c16_41 = arith.constant 16 : index
    %72 = vector.load %arg19[%c0_40, %c16_41] : memref<128x32xf32, #tpu.memory_space<vmem>>, vector<64x16xf32>
    tpu.vector_store %arg19[%c0_40, %c16_41], %71 {strides = array<i32>} : memref<128x32xf32, #tpu.memory_space<vmem>>, vector<64x16xf32>,
    %c64_42 = arith.constant 64 : index
    %c0_43 = arith.constant 0 : index
    %73 = vector.load %arg18[%c64_42, %c0_43] : memref<128x96xf32, #tpu.memory_space<vmem>>, vector<64x16xf32>
    %cst_44 = arith.constant 2.500000e-01 : f32
    %74 = vector.broadcast %cst_44 : f32 to vector<64x16xf32>
    %75 = arith.mulf %73, %74 : vector<64x16xf32>
    %c64_45 = arith.constant 64 : index
    %c32_46 = arith.constant 32 : index
    %76 = vector.load %arg18[%c64_45, %c32_46] : memref<128x96xf32, #tpu.memory_space<vmem>>, vector<64x16xf32>
    %c64_47 = arith.constant 64 : index
    %c64_48 = arith.constant 64 : index
    %77 = vector.load %arg18[%c64_47, %c64_48] : memref<128x96xf32, #tpu.memory_space<vmem>>, vector<64x16xf32>
    %78 = tpu.transpose %76, [1, 0] : vector<64x16xf32> -> vector<16x64xf32>
    %cst_49 = arith.constant dense<0.000000e+00> : vector<64x64xf32>
    %79 = tpu.matmul %75, %78, %cst_49 {dimension_numbers = #tpu.dot_dimension_numbers<[1], [0], [0], [1], [0, 0, 1, 1], [], []>} : vector<64x16xf32>, vector<16x64xf32>, vector<64x64xf32> -> vector<64x64xf32>
    %c0_50 = arith.constant 0 : index
    %c0_51 = arith.constant 0 : index
    %c0_52 = arith.constant 0 : index
    %80 = vector.load %arg6[%c0_50, %c0_51, %c0_52] : memref<2x64x64xf32, #tpu.memory_space<vmem>>, vector<1x64x64xf32>
    %81 = vector.shape_cast %80 : vector<1x64x64xf32> to vector<64x64xf32>
    %82 = arith.addf %79, %81 : vector<64x64xf32>
    %cst_53 = arith.constant dense<0xFF800000> : vector<64xf32>
    %83 = vector.multi_reduction <maximumf>, %82, %cst_53 [1] : vector<64x64xf32> to vector<64xf32>
    %84 = vector.shape_cast %83 : vector<64xf32> to vector<64x1xf32>
    %85 = vector.broadcast %84 : vector<64x1xf32> to vector<64x64xf32>
    %86 = arith.subf %82, %85 : vector<64x64xf32>
    %87 = math.exp %86 : vector<64x64xf32>
    %cst_54 = arith.constant dense<0.000000e+00> : vector<64xf32>
    %88 = vector.multi_reduction <add>, %87, %cst_54 [1] : vector<64x64xf32> to vector<64xf32>
    %89 = vector.shape_cast %88 : vector<64xf32> to vector<64x1xf32>
    %90 = tpu.reciprocal %89 {approx = true} : vector<64x1xf32> -> vector<64x1xf32>
    %91 = vector.broadcast %90 : vector<64x1xf32> to vector<64x64xf32>
    %92 = arith.mulf %87, %91 : vector<64x64xf32>
    %cst_55 = arith.constant dense<0.000000e+00> : vector<64x16xf32>
    %93 = tpu.matmul %92, %77, %cst_55 {dimension_numbers = #tpu.dot_dimension_numbers<[1], [0], [0], [1], [0, 0, 1, 1], [], []>} : vector<64x64xf32>, vector<64x16xf32>, vector<64x16xf32> -> vector<64x16xf32>
    %c64_56 = arith.constant 64 : index
    %c0_57 = arith.constant 0 : index
    %94 = vector.load %arg19[%c64_56, %c0_57] : memref<128x32xf32, #tpu.memory_space<vmem>>, vector<64x16xf32>
    tpu.vector_store %arg19[%c64_56, %c0_57], %93 {strides = array<i32>} : memref<128x32xf32, #tpu.memory_space<vmem>>, vector<64x16xf32>,
    %c64_58 = arith.constant 64 : index
    %c16_59 = arith.constant 16 : index
    %95 = vector.load %arg18[%c64_58, %c16_59] : memref<128x96xf32, #tpu.memory_space<vmem>>, vector<64x16xf32>
    %cst_60 = arith.constant 2.500000e-01 : f32
    %96 = vector.broadcast %cst_60 : f32 to vector<64x16xf32>
    %97 = arith.mulf %95, %96 : vector<64x16xf32>
    %c64_61 = arith.constant 64 : index
    %c48_62 = arith.constant 48 : index
    %98 = vector.load %arg18[%c64_61, %c48_62] : memref<128x96xf32, #tpu.memory_space<vmem>>, vector<64x16xf32>
    %c64_63 = arith.constant 64 : index
    %c80_64 = arith.constant 80 : index
    %99 = vector.load %arg18[%c64_63, %c80_64] : memref<128x96xf32, #tpu.memory_space<vmem>>, vector<64x16xf32>
    %100 = tpu.transpose %98, [1, 0] : vector<64x16xf32> -> vector<16x64xf32>
    %cst_65 = arith.constant dense<0.000000e+00> : vector<64x64xf32>
    %101 = tpu.matmul %97, %100, %cst_65 {dimension_numbers = #tpu.dot_dimension_numbers<[1], [0], [0], [1], [0, 0, 1, 1], [], []>} : vector<64x16xf32>, vector<16x64xf32>, vector<64x64xf32> -> vector<64x64xf32>
    %c1_66 = arith.constant 1 : index
    %c0_67 = arith.constant 0 : index
    %c0_68 = arith.constant 0 : index
    %102 = vector.load %arg6[%c1_66, %c0_67, %c0_68] : memref<2x64x64xf32, #tpu.memory_space<vmem>>, vector<1x64x64xf32>
    %103 = vector.shape_cast %102 : vector<1x64x64xf32> to vector<64x64xf32>
    %104 = arith.addf %101, %103 : vector<64x64xf32>
    %cst_69 = arith.constant dense<0xFF800000> : vector<64xf32>
    %105 = vector.multi_reduction <maximumf>, %104, %cst_69 [1] : vector<64x64xf32> to vector<64xf32>
    %106 = vector.shape_cast %105 : vector<64xf32> to vector<64x1xf32>
    %107 = vector.broadcast %106 : vector<64x1xf32> to vector<64x64xf32>
    %108 = arith.subf %104, %107 : vector<64x64xf32>
    %109 = math.exp %108 : vector<64x64xf32>
    %cst_70 = arith.constant dense<0.000000e+00> : vector<64xf32>
    %110 = vector.multi_reduction <add>, %109, %cst_70 [1] : vector<64x64xf32> to vector<64xf32>
    %111 = vector.shape_cast %110 : vector<64xf32> to vector<64x1xf32>
    %112 = tpu.reciprocal %111 {approx = true} : vector<64x1xf32> -> vector<64x1xf32>
    %113 = vector.broadcast %112 : vector<64x1xf32> to vector<64x64xf32>
    %114 = arith.mulf %109, %113 : vector<64x64xf32>
    %cst_71 = arith.constant dense<0.000000e+00> : vector<64x16xf32>
    %115 = tpu.matmul %114, %99, %cst_71 {dimension_numbers = #tpu.dot_dimension_numbers<[1], [0], [0], [1], [0, 0, 1, 1], [], []>} : vector<64x64xf32>, vector<64x16xf32>, vector<64x16xf32> -> vector<64x16xf32>
    %c64_72 = arith.constant 64 : index
    %c16_73 = arith.constant 16 : index
    %116 = vector.load %arg19[%c64_72, %c16_73] : memref<128x32xf32, #tpu.memory_space<vmem>>, vector<64x16xf32>
    tpu.vector_store %arg19[%c64_72, %c16_73], %115 {strides = array<i32>} : memref<128x32xf32, #tpu.memory_space<vmem>>, vector<64x16xf32>,
    %c0_74 = arith.constant 0 : index
    %c0_75 = arith.constant 0 : index
    %117 = vector.load %arg19[%c0_74, %c0_75] : memref<128x32xf32, #tpu.memory_space<vmem>>, vector<128x32xf32>
    %c0_76 = arith.constant 0 : index
    %c0_77 = arith.constant 0 : index
    %118 = vector.load %arg7[%c0_76, %c0_77] : memref<32x32xf32, #tpu.memory_space<vmem>>, vector<32x32xf32>
    %cst_78 = arith.constant dense<0.000000e+00> : vector<128x32xf32>
    %119 = tpu.matmul %117, %118, %cst_78 {dimension_numbers = #tpu.dot_dimension_numbers<[1], [0], [0], [1], [0, 0, 1, 1], [], []>} : vector<128x32xf32>, vector<32x32xf32>, vector<128x32xf32> -> vector<128x32xf32>
    %c0_79 = arith.constant 0 : index
    %c0_80 = arith.constant 0 : index
    %120 = vector.load %arg8[%c0_79, %c0_80] : memref<1x32xf32, #tpu.memory_space<vmem>>, vector<1x32xf32>
    %121 = vector.broadcast %120 : vector<1x32xf32> to vector<128x32xf32>
    %122 = arith.addf %119, %121 : vector<128x32xf32>
    %c0_81 = arith.constant 0 : index
    %c0_82 = arith.constant 0 : index
    %123 = vector.load %arg9[%c0_81, %c0_82] : memref<1x32xf32, #tpu.memory_space<vmem>>, vector<1x32xf32>
    %124 = vector.broadcast %123 : vector<1x32xf32> to vector<128x32xf32>
    %125 = arith.mulf %124, %122 : vector<128x32xf32>
    %126 = arith.addf %0, %125 : vector<128x32xf32>
    %cst_83 = arith.constant dense<0.000000e+00> : vector<128xf32>
    %127 = vector.multi_reduction <add>, %126, %cst_83 [1] : vector<128x32xf32> to vector<128xf32>
    %128 = vector.shape_cast %127 : vector<128xf32> to vector<128x1xf32>
    %cst_84 = arith.constant 3.200000e+01 : f32
    %129 = vector.broadcast %cst_84 : f32 to vector<128x1xf32>
    %130 = arith.divf %128, %129 : vector<128x1xf32>
    %131 = vector.broadcast %130 : vector<128x1xf32> to vector<128x32xf32>
    %132 = arith.subf %126, %131 : vector<128x32xf32>
    %133 = arith.mulf %132, %132 : vector<128x32xf32>
    %cst_85 = arith.constant dense<0.000000e+00> : vector<128xf32>
    %134 = vector.multi_reduction <add>, %133, %cst_85 [1] : vector<128x32xf32> to vector<128xf32>
    %135 = vector.shape_cast %134 : vector<128xf32> to vector<128x1xf32>
    %cst_86 = arith.constant 3.200000e+01 : f32
    %136 = vector.broadcast %cst_86 : f32 to vector<128x1xf32>
    %137 = arith.divf %135, %136 : vector<128x1xf32>
    %cst_87 = arith.constant 9.99999974E-6 : f32
    %138 = vector.broadcast %cst_87 : f32 to vector<128x1xf32>
    %139 = arith.addf %137, %138 : vector<128x1xf32>
    %140 = math.rsqrt %139 : vector<128x1xf32>
    %141 = vector.broadcast %140 : vector<128x1xf32> to vector<128x32xf32>
    %142 = arith.mulf %132, %141 : vector<128x32xf32>
    %c0_88 = arith.constant 0 : index
    %c0_89 = arith.constant 0 : index
    %143 = vector.load %arg11[%c0_88, %c0_89] : memref<1x32xf32, #tpu.memory_space<vmem>>, vector<1x32xf32>
    %144 = vector.broadcast %143 : vector<1x32xf32> to vector<128x32xf32>
    %145 = arith.mulf %142, %144 : vector<128x32xf32>
    %c0_90 = arith.constant 0 : index
    %c0_91 = arith.constant 0 : index
    %146 = vector.load %arg12[%c0_90, %c0_91] : memref<1x32xf32, #tpu.memory_space<vmem>>, vector<1x32xf32>
    %147 = vector.broadcast %146 : vector<1x32xf32> to vector<128x32xf32>
    %148 = arith.addf %145, %147 : vector<128x32xf32>
    %c0_92 = arith.constant 0 : index
    %c0_93 = arith.constant 0 : index
    %149 = vector.load %arg13[%c0_92, %c0_93] : memref<32x64xf32, #tpu.memory_space<vmem>>, vector<32x64xf32>
    %cst_94 = arith.constant dense<0.000000e+00> : vector<128x64xf32>
    %150 = tpu.matmul %148, %149, %cst_94 {dimension_numbers = #tpu.dot_dimension_numbers<[1], [0], [0], [1], [0, 0, 1, 1], [], []>} : vector<128x32xf32>, vector<32x64xf32>, vector<128x64xf32> -> vector<128x64xf32>
    %c0_95 = arith.constant 0 : index
    %c0_96 = arith.constant 0 : index
    %151 = vector.load %arg14[%c0_95, %c0_96] : memref<1x64xf32, #tpu.memory_space<vmem>>, vector<1x64xf32>
    %152 = vector.broadcast %151 : vector<1x64xf32> to vector<128x64xf32>
    %153 = arith.addf %150, %152 : vector<128x64xf32>
    %154 = arith.mulf %153, %153 : vector<128x64xf32>
    %155 = arith.mulf %153, %154 : vector<128x64xf32>
    %cst_97 = arith.constant 4.471500e-02 : f32
    %156 = vector.broadcast %cst_97 : f32 to vector<128x64xf32>
    %157 = arith.mulf %156, %155 : vector<128x64xf32>
    %158 = arith.addf %153, %157 : vector<128x64xf32>
    %cst_98 = arith.constant 0.797884583 : f32
    %159 = vector.broadcast %cst_98 : f32 to vector<128x64xf32>
    %160 = arith.mulf %159, %158 : vector<128x64xf32>
    %161 = math.tanh %160 : vector<128x64xf32>
    %cst_99 = arith.constant 1.000000e+00 : f32
    %162 = vector.broadcast %cst_99 : f32 to vector<128x64xf32>
    %163 = arith.addf %162, %161 : vector<128x64xf32>
    %cst_100 = arith.constant 5.000000e-01 : f32
    %164 = vector.broadcast %cst_100 : f32 to vector<128x64xf32>
    %165 = arith.mulf %164, %163 : vector<128x64xf32>
    %166 = arith.mulf %153, %165 : vector<128x64xf32>
    %c0_101 = arith.constant 0 : index
    %c0_102 = arith.constant 0 : index
    %167 = vector.load %arg15[%c0_101, %c0_102] : memref<64x32xf32, #tpu.memory_space<vmem>>, vector<64x32xf32>
    %cst_103 = arith.constant dense<0.000000e+00> : vector<128x32xf32>
    %168 = tpu.matmul %166, %167, %cst_103 {dimension_numbers = #tpu.dot_dimension_numbers<[1], [0], [0], [1], [0, 0, 1, 1], [], []>} : vector<128x64xf32>, vector<64x32xf32>, vector<128x32xf32> -> vector<128x32xf32>
    %c0_104 = arith.constant 0 : index
    %c0_105 = arith.constant 0 : index
    %169 = vector.load %arg16[%c0_104, %c0_105] : memref<1x32xf32, #tpu.memory_space<vmem>>, vector<1x32xf32>
    %170 = vector.broadcast %169 : vector<1x32xf32> to vector<128x32xf32>
    %171 = arith.addf %168, %170 : vector<128x32xf32>
    %c0_106 = arith.constant 0 : index
    %c0_107 = arith.constant 0 : index
    %172 = vector.load %arg10[%c0_106, %c0_107] : memref<1x32xf32, #tpu.memory_space<vmem>>, vector<1x32xf32>
    %173 = vector.broadcast %172 : vector<1x32xf32> to vector<128x32xf32>
    %174 = arith.mulf %173, %171 : vector<128x32xf32>
    %175 = arith.addf %126, %174 : vector<128x32xf32>
    %c0_108 = arith.constant 0 : index
    %c0_109 = arith.constant 0 : index
    %176 = vector.load %arg17[%c0_108, %c0_109] : memref<128x32xf32, #tpu.memory_space<vmem>>, vector<128x32xf32>
    tpu.vector_store %arg17[%c0_108, %c0_109], %175 {strides = array<i32>} : memref<128x32xf32, #tpu.memory_space<vmem>>, vector<128x32xf32>,
    return
  }
  func.func @transform_0(%arg0: i32) -> (i32, i32) {
    %c0_i32 = arith.constant 0 : i32
    %c0_i32_0 = arith.constant 0 : i32
    %c0_i32_1 = arith.constant 0 : i32
    return %c0_i32, %c0_i32_0 : i32, i32
  }
  func.func @transform_1(%arg0: i32) -> (i32, i32) {
    %c0_i32 = arith.constant 0 : i32
    %c0_i32_0 = arith.constant 0 : i32
    %c0_i32_1 = arith.constant 0 : i32
    return %c0_i32, %c0_i32_0 : i32, i32
  }
  func.func @transform_2(%arg0: i32) -> (i32, i32) {
    %c0_i32 = arith.constant 0 : i32
    %c0_i32_0 = arith.constant 0 : i32
    %c0_i32_1 = arith.constant 0 : i32
    return %c0_i32, %c0_i32_0 : i32, i32
  }
  func.func @transform_3(%arg0: i32) -> (i32, i32) {
    %c0_i32 = arith.constant 0 : i32
    %c0_i32_0 = arith.constant 0 : i32
    %c0_i32_1 = arith.constant 0 : i32
    return %c0_i32, %c0_i32_0 : i32, i32
  }
  func.func @transform_4(%arg0: i32) -> (i32, i32) {
    %c0_i32 = arith.constant 0 : i32
    %c0_i32_0 = arith.constant 0 : i32
    %c0_i32_1 = arith.constant 0 : i32
    return %c0_i32, %c0_i32_0 : i32, i32
  }
  func.func @transform_5(%arg0: i32) -> (i32, i32, i32) {
    %c0_i32 = arith.constant 0 : i32
    %c0_i32_0 = arith.constant 0 : i32
    %c0_i32_1 = arith.constant 0 : i32
    %c0_i32_2 = arith.constant 0 : i32
    return %c0_i32, %c0_i32_0, %c0_i32_1 : i32, i32, i32
  }
  func.func @transform_6(%arg0: i32) -> (i32, i32) {
    %c0_i32 = arith.constant 0 : i32
    %c0_i32_0 = arith.constant 0 : i32
    %c0_i32_1 = arith.constant 0 : i32
    return %c0_i32, %c0_i32_0 : i32, i32
  }
  func.func @transform_7(%arg0: i32) -> (i32, i32) {
    %c0_i32 = arith.constant 0 : i32
    %c0_i32_0 = arith.constant 0 : i32
    %c0_i32_1 = arith.constant 0 : i32
    return %c0_i32, %c0_i32_0 : i32, i32
  }
  func.func @transform_8(%arg0: i32) -> (i32, i32) {
    %c0_i32 = arith.constant 0 : i32
    %c0_i32_0 = arith.constant 0 : i32
    %c0_i32_1 = arith.constant 0 : i32
    return %c0_i32, %c0_i32_0 : i32, i32
  }
  func.func @transform_9(%arg0: i32) -> (i32, i32) {
    %c0_i32 = arith.constant 0 : i32
    %c0_i32_0 = arith.constant 0 : i32
    %c0_i32_1 = arith.constant 0 : i32
    return %c0_i32, %c0_i32_0 : i32, i32
  }
  func.func @transform_10(%arg0: i32) -> (i32, i32) {
    %c0_i32 = arith.constant 0 : i32
    %c0_i32_0 = arith.constant 0 : i32
    %c0_i32_1 = arith.constant 0 : i32
    return %c0_i32, %c0_i32_0 : i32, i32
  }
  func.func @transform_11(%arg0: i32) -> (i32, i32) {
    %c0_i32 = arith.constant 0 : i32
    %c0_i32_0 = arith.constant 0 : i32
    %c0_i32_1 = arith.constant 0 : i32
    return %c0_i32, %c0_i32_0 : i32, i32
  }
  func.func @transform_12(%arg0: i32) -> (i32, i32) {
    %c0_i32 = arith.constant 0 : i32
    %c0_i32_0 = arith.constant 0 : i32
    %c0_i32_1 = arith.constant 0 : i32
    return %c0_i32, %c0_i32_0 : i32, i32
  }
  func.func @transform_13(%arg0: i32) -> (i32, i32) {
    %c0_i32 = arith.constant 0 : i32
    %c0_i32_0 = arith.constant 0 : i32
    %c0_i32_1 = arith.constant 0 : i32
    return %c0_i32, %c0_i32_0 : i32, i32
  }
  func.func @transform_14(%arg0: i32) -> (i32, i32) {
    %c0_i32 = arith.constant 0 : i32
    %c0_i32_0 = arith.constant 0 : i32
    %c0_i32_1 = arith.constant 0 : i32
    return %c0_i32, %c0_i32_0 : i32, i32
  }
  func.func @transform_15(%arg0: i32) -> (i32, i32) {
    %c0_i32 = arith.constant 0 : i32
    %c0_i32_0 = arith.constant 0 : i32
    %c0_i32_1 = arith.constant 0 : i32
    return %c0_i32, %c0_i32_0 : i32, i32
  }
  func.func @transform_16(%arg0: i32) -> (i32, i32) {
    %c0_i32 = arith.constant 0 : i32
    %c0_i32_0 = arith.constant 0 : i32
    %c0_i32_1 = arith.constant 0 : i32
    return %c0_i32, %c0_i32_0 : i32, i32
  }
}

</mosaic_0001>

<llo_original>
// kernel: tpu_custom_call.1
$region0: #{tpu_custom_call.1}
  #allocation0 [shape = 'u32[]', space=smem, size = 0x4, offset = 0x4, fixed_abs, tag = 'smem constant byte address 0x4 - core index']
  #allocation1 [shape = 'u32[144,128]{1,0:T(1,128)}', space=vmem, size = 0x12000, scoped, tag = 'internal scratch']
  #allocation2 [shape = 'f32[128,96]{1,0:T(8,128)}', space=vmem, size = 0x10000, scoped, tag = 'scratch operand']
  #allocation3 [shape = 'f32[128,32]{1,0:T(8,128)}', space=vmem, size = 0x10000, scoped, tag = 'scratch operand']
  %s0 = inlined_call_operand.vmem [shape: f32[128,32], index: 0, kind: input, shape index: {}]
  %s1 = inlined_call_operand.vmem [shape: f32[1,32], index: 1, kind: input, shape index: {}]
  %s2 = inlined_call_operand.vmem [shape: f32[1,32], index: 2, kind: input, shape index: {}]
  %s3 = inlined_call_operand.vmem [shape: f32[32,96], index: 3, kind: input, shape index: {}]
  %s4 = inlined_call_operand.vmem [shape: f32[1,96], index: 4, kind: input, shape index: {}]
  %s5 = inlined_call_operand.vmem [shape: f32[2,64,64], index: 5, kind: input, shape index: {}]
  %s6 = inlined_call_operand.vmem [shape: f32[32,32], index: 6, kind: input, shape index: {}]
  %s7 = inlined_call_operand.vmem [shape: f32[1,32], index: 7, kind: input, shape index: {}]
  %s8 = inlined_call_operand.vmem [shape: f32[1,32], index: 8, kind: input, shape index: {}]
  %s9 = inlined_call_operand.vmem [shape: f32[1,32], index: 9, kind: input, shape index: {}]
  %s10 = inlined_call_operand.vmem [shape: f32[1,32], index: 10, kind: input, shape index: {}]
  %s11 = inlined_call_operand.vmem [shape: f32[1,32], index: 11, kind: input, shape index: {}]
  %s12 = inlined_call_operand.vmem [shape: f32[32,64], index: 12, kind: input, shape index: {}]
  %s13 = inlined_call_operand.vmem [shape: f32[1,64], index: 13, kind: input, shape index: {}]
  %s14 = inlined_call_operand.vmem [shape: f32[64,32], index: 14, kind: input, shape index: {}]
  %s15 = inlined_call_operand.vmem [shape: f32[1,32], index: 15, kind: input, shape index: {}]
  %s16 = inlined_call_operand.vmem [shape: f32[128,32], index: 16, kind: output, shape index: {}]
  %s17 = sld [smem:[#allocation0]]
  $region74: #{tpu_custom_call.1} parent=0
    _
  %s19 = ssub.s32 1, %s17
  %s20 = scalar_select 0, %s19, %s17
  // Predicated region
  $region2: #{tpu_custom_call.1} parent=0 // pred_check
    _
  $region3: #{tpu_custom_call.1} parent=0 // pred_check_branch
    %22 = sbr.rel (0) target = $region5
  $region4: #{tpu_custom_call.1} parent=0 // pred_region
    _
  $region5: #{tpu_custom_call.1} parent=0 // pred_fallthru
    _
  // Predicated region
  $region6: #{tpu_custom_call.1} parent=0 // pred_check
    _
  $region7: #{tpu_custom_call.1} parent=0 // pred_check_branch
    %24 = sbr.rel (0) target = $region9
  $region8: #{tpu_custom_call.1} parent=0 // pred_region
    _
  $region9: #{tpu_custom_call.1} parent=0 // pred_fallthru
    _
  // Predicated region
  $region10: #{tpu_custom_call.1} parent=0 // pred_check
    _
  $region11: #{tpu_custom_call.1} parent=0 // pred_check_branch
    %26 = sbr.rel (0) target = $region13
  $region12: #{tpu_custom_call.1} parent=0 // pred_region
    _
  $region13: #{tpu_custom_call.1} parent=0 // pred_fallthru
    _
  // Predicated region
  $region14: #{tpu_custom_call.1} parent=0 // pred_check
    _
  $region15: #{tpu_custom_call.1} parent=0 // pred_check_branch
    %28 = sbr.rel (0) target = $region17
  $region16: #{tpu_custom_call.1} parent=0 // pred_region
    _
  $region17: #{tpu_custom_call.1} parent=0 // pred_fallthru
    _
  // Predicated region
  $region18: #{tpu_custom_call.1} parent=0 // pred_check
    _
  $region19: #{tpu_custom_call.1} parent=0 // pred_check_branch
    %30 = sbr.rel (0) target = $region21
  $region20: #{tpu_custom_call.1} parent=0 // pred_region
    _
  $region21: #{tpu_custom_call.1} parent=0 // pred_fallthru
    _
  // Predicated region
  $region22: #{tpu_custom_call.1} parent=0 // pred_check
    _
  $region23: #{tpu_custom_call.1} parent=0 // pred_check_branch
    %32 = sbr.rel (0) target = $region25
  $region24: #{tpu_custom_call.1} parent=0 // pred_region
    _
  $region25: #{tpu_custom_call.1} parent=0 // pred_fallthru
    _
  // Predicated region
  $region26: #{tpu_custom_call.1} parent=0 // pred_check
    _
  $region27: #{tpu_custom_call.1} parent=0 // pred_check_branch
    %34 = sbr.rel (0) target = $region29
  $region28: #{tpu_custom_call.1} parent=0 // pred_region
    _
  $region29: #{tpu_custom_call.1} parent=0 // pred_fallthru
    _
  // Predicated region
  $region30: #{tpu_custom_call.1} parent=0 // pred_check
    _
  $region31: #{tpu_custom_call.1} parent=0 // pred_check_branch
    %36 = sbr.rel (0) target = $region33
  $region32: #{tpu_custom_call.1} parent=0 // pred_region
    _
  $region33: #{tpu_custom_call.1} parent=0 // pred_fallthru
    _
  // Predicated region
  $region34: #{tpu_custom_call.1} parent=0 // pred_check
    _
  $region35: #{tpu_custom_call.1} parent=0 // pred_check_branch
    %38 = sbr.rel (0) target = $region37
  $region36: #{tpu_custom_call.1} parent=0 // pred_region
    _
  $region37: #{tpu_custom_call.1} parent=0 // pred_fallthru
    _
  // Predicated region
  $region38: #{tpu_custom_call.1} parent=0 // pred_check
    _
  $region39: #{tpu_custom_call.1} parent=0 // pred_check_branch
    %40 = sbr.rel (0) target = $region41
  $region40: #{tpu_custom_call.1} parent=0 // pred_region
    _
  $region41: #{tpu_custom_call.1} parent=0 // pred_fallthru
    _
  // Predicated region
  $region42: #{tpu_custom_call.1} parent=0 // pred_check
    _
  $region43: #{tpu_custom_call.1} parent=0 // pred_check_branch
    %42 = sbr.rel (0) target = $region45
  $region44: #{tpu_custom_call.1} parent=0 // pred_region
    _
  $region45: #{tpu_custom_call.1} parent=0 // pred_fallthru
    _
  // Predicated region
  $region46: #{tpu_custom_call.1} parent=0 // pred_check
    _
  $region47: #{tpu_custom_call.1} parent=0 // pred_check_branch
    %44 = sbr.rel (0) target = $region49
  $region48: #{tpu_custom_call.1} parent=0 // pred_region
    _
  $region49: #{tpu_custom_call.1} parent=0 // pred_fallthru
    _
  // Predicated region
  $region50: #{tpu_custom_call.1} parent=0 // pred_check
    _
  $region51: #{tpu_custom_call.1} parent=0 // pred_check_branch
    %46 = sbr.rel (0) target = $region53
  $region52: #{tpu_custom_call.1} parent=0 // pred_region
    _
  $region53: #{tpu_custom_call.1} parent=0 // pred_fallthru
    _
  // Predicated region
  $region54: #{tpu_custom_call.1} parent=0 // pred_check
    _
  $region55: #{tpu_custom_call.1} parent=0 // pred_check_branch
    %48 = sbr.rel (0) target = $region57
  $region56: #{tpu_custom_call.1} parent=0 // pred_region
    _
  $region57: #{tpu_custom_call.1} parent=0 // pred_fallthru
    _
  // Predicated region
  $region58: #{tpu_custom_call.1} parent=0 // pred_check
    _
  $region59: #{tpu_custom_call.1} parent=0 // pred_check_branch
    %50 = sbr.rel (0) target = $region61
  $region60: #{tpu_custom_call.1} parent=0 // pred_region
    _
  $region61: #{tpu_custom_call.1} parent=0 // pred_fallthru
    _
  // Predicated region
  $region62: #{tpu_custom_call.1} parent=0 // pred_check
    _
  $region63: #{tpu_custom_call.1} parent=0 // pred_check_branch
    %52 = sbr.rel (0) target = $region65
  $region64: #{tpu_custom_call.1} parent=0 // pred_region
    _
  $region65: #{tpu_custom_call.1} parent=0 // pred_fallthru
    _
  %v53 = vld [vmem:[%s0] sm:$0xff]
  %v54 = vld [vmem:[%s0 + $0x8] sm:$0xff]
  %v55 = vld [vmem:[%s0 + $0x10] sm:$0xff]
  %v56 = vld [vmem:[%s0 + $0x18] sm:$0xff]
  %v57 = vld [vmem:[%s0 + $0x20] sm:$0xff]
  %v58 = vld [vmem:[%s0 + $0x28] sm:$0xff]
  %v59 = vld [vmem:[%s0 + $0x30] sm:$0xff]
  %v60 = vld [vmem:[%s0 + $0x38] sm:$0xff]
  %v61 = vld [vmem:[%s0 + $0x40] sm:$0xff]
  %v62 = vld [vmem:[%s0 + $0x48] sm:$0xff]
  %v63 = vld [vmem:[%s0 + $0x50] sm:$0xff]
  %v64 = vld [vmem:[%s0 + $0x58] sm:$0xff]
  %v65 = vld [vmem:[%s0 + $0x60] sm:$0xff]
  %v66 = vld [vmem:[%s0 + $0x68] sm:$0xff]
  %v67 = vld [vmem:[%s0 + $0x70] sm:$0xff]
  %v68 = vld [vmem:[%s0 + $0x78] sm:$0xff]
  %vm69 = vcmask 261120
  %v70 = vsel %vm69, %v53, 0.0
  %71 = vadd.xlane.f32.xlu0 %v70
  %v72 = vpop.xlane.xlu0 %71
  %v73 = vsel %vm69, %v54, 0.0
  %74 = vadd.xlane.f32.xlu0 %v73
  %v75 = vpop.xlane.xlu0 %74
  %v76 = vsel %vm69, %v55, 0.0
  %77 = vadd.xlane.f32.xlu0 %v76
  %v78 = vpop.xlane.xlu0 %77
  %v79 = vsel %vm69, %v56, 0.0
  %80 = vadd.xlane.f32.xlu0 %v79
  %v81 = vpop.xlane.xlu0 %80
  %v82 = vsel %vm69, %v57, 0.0
  %83 = vadd.xlane.f32.xlu0 %v82
  %v84 = vpop.xlane.xlu0 %83
  %v85 = vsel %vm69, %v58, 0.0
  %86 = vadd.xlane.f32.xlu0 %v85
  %v87 = vpop.xlane.xlu0 %86
  %v88 = vsel %vm69, %v59, 0.0
  %89 = vadd.xlane.f32.xlu0 %v88
  %v90 = vpop.xlane.xlu0 %89
  %v91 = vsel %vm69, %v60, 0.0
  %92 = vadd.xlane.f32.xlu0 %v91
  %v93 = vpop.xlane.xlu0 %92
  %v94 = vsel %vm69, %v61, 0.0
  %95 = vadd.xlane.f32.xlu0 %v94
  %v96 = vpop.xlane.xlu0 %95
  %v97 = vsel %vm69, %v62, 0.0
  %98 = vadd.xlane.f32.xlu0 %v97
  %v99 = vpop.xlane.xlu0 %98
  %v100 = vsel %vm69, %v63, 0.0
  %101 = vadd.xlane.f32.xlu0 %v100
  %v102 = vpop.xlane.xlu0 %101
  %v103 = vsel %vm69, %v64, 0.0
  %104 = vadd.xlane.f32.xlu0 %v103
  %v105 = vpop.xlane.xlu0 %104
  %v106 = vsel %vm69, %v65, 0.0
  %107 = vadd.xlane.f32.xlu0 %v106
  %v108 = vpop.xlane.xlu0 %107
  %v109 = vsel %vm69, %v66, 0.0
  %110 = vadd.xlane.f32.xlu0 %v109
  %v111 = vpop.xlane.xlu0 %110
  %v112 = vsel %vm69, %v67, 0.0
  %113 = vadd.xlane.f32.xlu0 %v112
  %v114 = vpop.xlane.xlu0 %113
  %v115 = vsel %vm69, %v68, 0.0
  %116 = vadd.xlane.f32.xlu0 %v115
  %v117 = vpop.xlane.xlu0 %116
  %v118 = vrcp.pop 32.0
  %v119 = vmul.f32 %v72, %v118
  %v120 = vmul.f32 %v75, %v118
  %v121 = vmul.f32 %v78, %v118
  %v122 = vmul.f32 %v81, %v118
  %v123 = vmul.f32 %v84, %v118
  %v124 = vmul.f32 %v87, %v118
  %v125 = vmul.f32 %v90, %v118
  %v126 = vmul.f32 %v93, %v118
  %v127 = vmul.f32 %v96, %v118
  %v128 = vmul.f32 %v99, %v118
  %v129 = vmul.f32 %v102, %v118
  %v130 = vmul.f32 %v105, %v118
  %v131 = vmul.f32 %v108, %v118
  %v132 = vmul.f32 %v111, %v118
  %v133 = vmul.f32 %v114, %v118
  %v134 = vmul.f32 %v117, %v118
  %v135 = vsub.f32 %v53, %v119
  %v136 = vsub.f32 %v54, %v120
  %v137 = vsub.f32 %v55, %v121
  %v138 = vsub.f32 %v56, %v122
  %v139 = vsub.f32 %v57, %v123
  %v140 = vsub.f32 %v58, %v124
  %v141 = vsub.f32 %v59, %v125
  %v142 = vsub.f32 %v60, %v126
  %v143 = vsub.f32 %v61, %v127
  %v144 = vsub.f32 %v62, %v128
  %v145 = vsub.f32 %v63, %v129
  %v146 = vsub.f32 %v64, %v130
  %v147 = vsub.f32 %v65, %v131
  %v148 = vsub.f32 %v66, %v132
  %v149 = vsub.f32 %v67, %v133
  %v150 = vsub.f32 %v68, %v134
  %v151 = vmul.f32 %v135, %v135
  %v152 = vmul.f32 %v136, %v136
  %v153 = vmul.f32 %v137, %v137
  %v154 = vmul.f32 %v138, %v138
  %v155 = vmul.f32 %v139, %v139
  %v156 = vmul.f32 %v140, %v140
  %v157 = vmul.f32 %v141, %v141
  %v158 = vmul.f32 %v142, %v142
  %v159 = vmul.f32 %v143, %v143
  %v160 = vmul.f32 %v144, %v144
  %v161 = vmul.f32 %v145, %v145
  %v162 = vmul.f32 %v146, %v146
  %v163 = vmul.f32 %v147, %v147
  %v164 = vmul.f32 %v148, %v148
  %v165 = vmul.f32 %v149, %v149
  %v166 = vmul.f32 %v150, %v150
  %v167 = vsel %vm69, %v151, 0.0
  %168 = vadd.xlane.f32.xlu0 %v167
  %v169 = vpop.xlane.xlu0 %168
  %v170 = vsel %vm69, %v152, 0.0
  %171 = vadd.xlane.f32.xlu0 %v170
  %v172 = vpop.xlane.xlu0 %171
  %v173 = vsel %vm69, %v153, 0.0
  %174 = vadd.xlane.f32.xlu0 %v173
  %v175 = vpop.xlane.xlu0 %174
  %v176 = vsel %vm69, %v154, 0.0
  %177 = vadd.xlane.f32.xlu0 %v176
  %v178 = vpop.xlane.xlu0 %177
  %v179 = vsel %vm69, %v155, 0.0
  %180 = vadd.xlane.f32.xlu0 %v179
  %v181 = vpop.xlane.xlu0 %180
  %v182 = vsel %vm69, %v156, 0.0
  %183 = vadd.xlane.f32.xlu0 %v182
  %v184 = vpop.xlane.xlu0 %183
  %v185 = vsel %vm69, %v157, 0.0
  %186 = vadd.xlane.f32.xlu0 %v185
  %v187 = vpop.xlane.xlu0 %186
  %v188 = vsel %vm69, %v158, 0.0
  %189 = vadd.xlane.f32.xlu0 %v188
  %v190 = vpop.xlane.xlu0 %189
  %v191 = vsel %vm69, %v159, 0.0
  %192 = vadd.xlane.f32.xlu0 %v191
  %v193 = vpop.xlane.xlu0 %192
  %v194 = vsel %vm69, %v160, 0.0
  %195 = vadd.xlane.f32.xlu0 %v194
  %v196 = vpop.xlane.xlu0 %195
  %v197 = vsel %vm69, %v161, 0.0
  %198 = vadd.xlane.f32.xlu0 %v197
  %v199 = vpop.xlane.xlu0 %198
  %v200 = vsel %vm69, %v162, 0.0
  %201 = vadd.xlane.f32.xlu0 %v200
  %v202 = vpop.xlane.xlu0 %201
  %v203 = vsel %vm69, %v163, 0.0
  %204 = vadd.xlane.f32.xlu0 %v203
  %v205 = vpop.xlane.xlu0 %204
  %v206 = vsel %vm69, %v164, 0.0
  %207 = vadd.xlane.f32.xlu0 %v206
  %v208 = vpop.xlane.xlu0 %207
  %v209 = vsel %vm69, %v165, 0.0
  %210 = vadd.xlane.f32.xlu0 %v209
  %v211 = vpop.xlane.xlu0 %210
  %v212 = vsel %vm69, %v166, 0.0
  %213 = vadd.xlane.f32.xlu0 %v212
  %v214 = vpop.xlane.xlu0 %213
  %v215 = vmul.f32 %v169, %v118
  %v216 = vmul.f32 %v172, %v118
  %v217 = vmul.f32 %v175, %v118
  %v218 = vmul.f32 %v178, %v118
  %v219 = vmul.f32 %v181, %v118
  %v220 = vmul.f32 %v184, %v118
  %v221 = vmul.f32 %v187, %v118
  %v222 = vmul.f32 %v190, %v118
  %v223 = vmul.f32 %v193, %v118
  %v224 = vmul.f32 %v196, %v118
  %v225 = vmul.f32 %v199, %v118
  %v226 = vmul.f32 %v202, %v118
  %v227 = vmul.f32 %v205, %v118
  %v228 = vmul.f32 %v208, %v118
  %v229 = vmul.f32 %v211, %v118
  %v230 = vmul.f32 %v214, %v118
  %v231 = vadd.f32 %v215, 1e-05
  %v232 = vadd.f32 %v216, 1e-05
  %v233 = vadd.f32 %v217, 1e-05
  %v234 = vadd.f32 %v218, 1e-05
  %v235 = vadd.f32 %v219, 1e-05
  %v236 = vadd.f32 %v220, 1e-05
  %v237 = vadd.f32 %v221, 1e-05
  %v238 = vadd.f32 %v222, 1e-05
  %v239 = vadd.f32 %v223, 1e-05
  %v240 = vadd.f32 %v224, 1e-05
  %v241 = vadd.f32 %v225, 1e-05
  %v242 = vadd.f32 %v226, 1e-05
  %v243 = vadd.f32 %v227, 1e-05
  %v244 = vadd.f32 %v228, 1e-05
  %v245 = vadd.f32 %v229, 1e-05
  %v246 = vadd.f32 %v230, 1e-05
  %v247 = vrsqrt.pop %v231
  %v248 = vrsqrt.pop %v232
  %v249 = vrsqrt.pop %v233
  %v250 = vrsqrt.pop %v234
  %v251 = vrsqrt.pop %v235
  %v252 = vrsqrt.pop %v236
  %v253 = vrsqrt.pop %v237
  %v254 = vrsqrt.pop %v238
  %v255 = vrsqrt.pop %v239
  %v256 = vrsqrt.pop %v240
  %v257 = vrsqrt.pop %v241
  %v258 = vrsqrt.pop %v242
  %v259 = vrsqrt.pop %v243
  %v260 = vrsqrt.pop %v244
  %v261 = vrsqrt.pop %v245
  %v262 = vrsqrt.pop %v246
  %v263 = vmul.f32 %v135, %v247
  %v264 = vmul.f32 %v136, %v248
  %v265 = vmul.f32 %v137, %v249
  %v266 = vmul.f32 %v138, %v250
  %v267 = vmul.f32 %v139, %v251
  %v268 = vmul.f32 %v140, %v252
  %v269 = vmul.f32 %v141, %v253
  %v270 = vmul.f32 %v142, %v254
  %v271 = vmul.f32 %v143, %v255
  %v272 = vmul.f32 %v144, %v256
  %v273 = vmul.f32 %v145, %v257
  %v274 = vmul.f32 %v146, %v258
  %v275 = vmul.f32 %v147, %v259
  %v276 = vmul.f32 %v148, %v260
  %v277 = vmul.f32 %v149, %v261
  %v278 = vmul.f32 %v150, %v262
  %v279 = vld [vmem:[%s1] sm:$0x1]
  %v281 = vlaneseq
  %v282 = vshrl.u32 %v281, 7
  %v283 = vsub.s32 0, %v282
  %v284 = vrot.slane %v279, %v283
  %v286 = vmul.f32 %v263, %v284
  %v287 = vmul.f32 %v264, %v284
  %v288 = vmul.f32 %v265, %v284
  %v289 = vmul.f32 %v266, %v284
  %v290 = vmul.f32 %v267, %v284
  %v291 = vmul.f32 %v268, %v284
  %v292 = vmul.f32 %v269, %v284
  %v293 = vmul.f32 %v270, %v284
  %v294 = vmul.f32 %v271, %v284
  %v295 = vmul.f32 %v272, %v284
  %v296 = vmul.f32 %v273, %v284
  %v297 = vmul.f32 %v274, %v284
  %v298 = vmul.f32 %v275, %v284
  %v299 = vmul.f32 %v276, %v284
  %v300 = vmul.f32 %v277, %v284
  %v301 = vmul.f32 %v278, %v284
  %v302 = vld [vmem:[%s2] sm:$0x1]
  %v304 = vlaneseq
  %v305 = vshrl.u32 %v304, 7
  %v306 = vsub.s32 0, %v305
  %v307 = vrot.slane %v302, %v306
  %v309 = vadd.f32 %v286, %v307
  %v310 = vadd.f32 %v287, %v307
  %v311 = vadd.f32 %v288, %v307
  %v312 = vadd.f32 %v289, %v307
  %v313 = vadd.f32 %v290, %v307
  %v314 = vadd.f32 %v291, %v307
  %v315 = vadd.f32 %v292, %v307
  %v316 = vadd.f32 %v293, %v307
  %v317 = vadd.f32 %v294, %v307
  %v318 = vadd.f32 %v295, %v307
  %v319 = vadd.f32 %v296, %v307
  %v320 = vadd.f32 %v297, %v307
  %v321 = vadd.f32 %v298, %v307
  %v322 = vadd.f32 %v299, %v307
  %v323 = vadd.f32 %v300, %v307
  %v324 = vadd.f32 %v301, %v307
  %v325 = vld [vmem:[%s3] sm:$0xff]
  %v326 = vld [vmem:[%s3 + $0x8] sm:$0xff]
  %v327 = vld [vmem:[%s3 + $0x10] sm:$0xff]
  %v328 = vld [vmem:[%s3 + $0x18] sm:$0xff]
  %v329 = vld [vmem:[%s4] sm:$0x1]
  %v331 = vlaneseq
  %v332 = vshrl.u32 %v331, 7
  %v333 = vsub.s32 0, %v332
  %v334 = vrot.slane %v329, %v333
  %v337 = vsel %vm69, %v309, 0
  %v340 = vsel %vm69, %v310, 0
  %v343 = vsel %vm69, %v311, 0
  %v346 = vsel %vm69, %v312, 0
  %v349 = vsel %vm69, %v313, 0
  %v352 = vsel %vm69, %v314, 0
  %v355 = vsel %vm69, %v315, 0
  %v358 = vsel %vm69, %v316, 0
  %v361 = vsel %vm69, %v317, 0
  %v364 = vsel %vm69, %v318, 0
  %v367 = vsel %vm69, %v319, 0
  %v370 = vsel %vm69, %v320, 0
  %v373 = vsel %vm69, %v321, 0
  %v376 = vsel %vm69, %v322, 0
  %v379 = vsel %vm69, %v323, 0
  %v382 = vsel %vm69, %v324, 0
  %384 = vmatprep.subr.mxu0 0.0
  %385 = vmatpush1.msra.mxu0 %v325
  %386 = vmatprep.subr.mxu0 0.0
  %387 = vmatpush1.msra.mxu0 %v326
  %388 = vmatprep.subr.mxu0 0.0
  %389 = vmatpush1.msra.mxu0 %v327
  %390 = vmatprep.subr.mxu0 0.0
  %391 = vmatpush1.msra.mxu0 %v328
  %392 = vmatprep.subr.mxu0 0.0
  %393 = vmatpush1.msra.mxu0 0.0
  %394 = vmatprep.subr.mxu0 0.0
  %395 = vmatpush1.msra.mxu0 0.0
  %396 = vmatprep.subr.mxu0 0.0
  %397 = vmatpush1.msra.mxu0 0.0
  %398 = vmatprep.subr.mxu0 0.0
  %399 = vmatpush1.msra.mxu0 0.0
  %400 = vmatprep.subr.mxu0 0.0
  %401 = vmatpush1.msra.mxu0 0.0
  %402 = vmatprep.subr.mxu0 0.0
  %403 = vmatpush1.msra.mxu0 0.0
  %404 = vmatprep.subr.mxu0 0.0
  %405 = vmatpush1.msra.mxu0 0.0
  %406 = vmatprep.subr.mxu0 0.0
  %407 = vmatpush1.msra.mxu0 0.0
  %408 = vmatprep.subr.mxu0 0.0
  %409 = vmatpush1.msra.mxu0 0.0
  %410 = vmatprep.subr.mxu0 0.0
  %411 = vmatpush1.msra.mxu0 0.0
  %412 = vmatprep.subr.mxu0 0.0
  %413 = vmatpush1.msra.mxu0 0.0
  %414 = vmatprep.subr.mxu0 0.0
  %415 = vmatpush1.msra.mxu0 0.0
  %416 = vmatprep.subr.mxu0 0.0
  %417 = vmatpush1.msra.mxu0 0.0
  %418 = vmatprep.subr.mxu0 0.0
  %419 = vmatpush1.msra.mxu0 0.0
  %420 = vmatprep.subr.mxu0 0.0
  %421 = vmatpush1.msra.mxu0 0.0
  %422 = vmatprep.subr.mxu0 0.0
  %423 = vmatpush1.msra.mxu0 0.0
  %424 = vmatprep.subr.mxu0 0.0
  %425 = vmatpush1.msra.mxu0 0.0
  %426 = vmatprep.subr.mxu0 0.0
  %427 = vmatpush1.msra.mxu0 0.0
  %428 = vmatprep.subr.mxu0 0.0
  %429 = vmatpush1.msra.mxu0 0.0
  %430 = vmatprep.subr.mxu0 0.0
  %431 = vmatpush1.msra.mxu0 0.0
  %432 = vmatprep.subr.mxu0 0.0
  %433 = vmatpush1.msra.mxu0 0.0
  %434 = vmatprep.subr.mxu0 0.0
  %435 = vmatpush1.msra.mxu0 0.0
  %436 = vmatprep.subr.mxu0 0.0
  %437 = vmatpush1.msra.mxu0 0.0
  %438 = vmatprep.subr.mxu0 0.0
  %439 = vmatpush1.msra.mxu0 0.0
  %440 = vmatprep.subr.mxu0 0.0
  %441 = vmatpush1.msra.mxu0 0.0
  %442 = vmatprep.subr.mxu0 0.0
  %443 = vmatpush1.msra.mxu0 0.0
  %444 = vmatprep.subr.mxu0 0.0
  %445 = vmatpush1.msra.mxu0 0.0
  %446 = vmatprep.subr.mxu0 0.0
  %447 = vmatpush1.msra.mxu0 0.0
  %448 = vmatprep.mubr.f32.mxu0 0.0
  %449 = vmatmul.mubr.f32.gmra.mrb[0].mxu0 %v337
  %v450 = vpop.f32.mrb[0].mxu0
  %v451 = vadd.f32 %v334, %v450
  %v452 = vpop.f32.mrb[0].mxu0
  %453 = vmatprep.mubr.f32.mxu0 0.0
  %454 = vmatmul.mubr.f32.gmra.mrb[0].mxu0 %v340
  %v455 = vpop.f32.mrb[0].mxu0
  %v456 = vadd.f32 %v334, %v455
  %v457 = vpop.f32.mrb[0].mxu0
  %458 = vmatprep.mubr.f32.mxu0 0.0
  %459 = vmatmul.mubr.f32.gmra.mrb[0].mxu0 %v343
  %v460 = vpop.f32.mrb[0].mxu0
  %v461 = vadd.f32 %v334, %v460
  %v462 = vpop.f32.mrb[0].mxu0
  %463 = vmatprep.mubr.f32.mxu0 0.0
  %464 = vmatmul.mubr.f32.gmra.mrb[0].mxu0 %v346
  %v465 = vpop.f32.mrb[0].mxu0
  %v466 = vadd.f32 %v334, %v465
  %v467 = vpop.f32.mrb[0].mxu0
  %468 = vmatprep.mubr.f32.mxu0 0.0
  %469 = vmatmul.mubr.f32.gmra.mrb[0].mxu0 %v349
  %v470 = vpop.f32.mrb[0].mxu0
  %v471 = vadd.f32 %v334, %v470
  %v472 = vpop.f32.mrb[0].mxu0
  %473 = vmatprep.mubr.f32.mxu0 0.0
  %474 = vmatmul.mubr.f32.gmra.mrb[0].mxu0 %v352
  %v475 = vpop.f32.mrb[0].mxu0
  %v476 = vadd.f32 %v334, %v475
  %v477 = vpop.f32.mrb[0].mxu0
  %478 = vmatprep.mubr.f32.mxu0 0.0
  %479 = vmatmul.mubr.f32.gmra.mrb[0].mxu0 %v355
  %v480 = vpop.f32.mrb[0].mxu0
  %v481 = vadd.f32 %v334, %v480
  %v482 = vpop.f32.mrb[0].mxu0
  %483 = vmatprep.mubr.f32.mxu0 0.0
  %484 = vmatmul.mubr.f32.gmra.mrb[0].mxu0 %v358
  %v485 = vpop.f32.mrb[0].mxu0
  %v486 = vadd.f32 %v334, %v485
  %v487 = vpop.f32.mrb[0].mxu0
  %488 = vmatprep.mubr.f32.mxu0 0.0
  %489 = vmatmul.mubr.f32.gmra.mrb[0].mxu0 %v361
  %v490 = vpop.f32.mrb[0].mxu0
  %v491 = vadd.f32 %v334, %v490
  %v492 = vpop.f32.mrb[0].mxu0
  %493 = vmatprep.mubr.f32.mxu0 0.0
  %494 = vmatmul.mubr.f32.gmra.mrb[0].mxu0 %v364
  %v495 = vpop.f32.mrb[0].mxu0
  %v496 = vadd.f32 %v334, %v495
  %v497 = vpop.f32.mrb[0].mxu0
  %498 = vmatprep.mubr.f32.mxu0 0.0
  %499 = vmatmul.mubr.f32.gmra.mrb[0].mxu0 %v367
  %v500 = vpop.f32.mrb[0].mxu0
  %v501 = vadd.f32 %v334, %v500
  %v502 = vpop.f32.mrb[0].mxu0
  %503 = vmatprep.mubr.f32.mxu0 0.0
  %504 = vmatmul.mubr.f32.gmra.mrb[0].mxu0 %v370
  %v505 = vpop.f32.mrb[0].mxu0
  %v506 = vadd.f32 %v334, %v505
  %v507 = vpop.f32.mrb[0].mxu0
  %508 = vmatprep.mubr.f32.mxu0 0.0
  %509 = vmatmul.mubr.f32.gmra.mrb[0].mxu0 %v373
  %v510 = vpop.f32.mrb[0].mxu0
  %v511 = vadd.f32 %v334, %v510
  %v512 = vpop.f32.mrb[0].mxu0
  %513 = vmatprep.mubr.f32.mxu0 0.0
  %514 = vmatmul.mubr.f32.gmra.mrb[0].mxu0 %v376
  %v515 = vpop.f32.mrb[0].mxu0
  %v516 = vadd.f32 %v334, %v515
  %v517 = vpop.f32.mrb[0].mxu0
  %518 = vmatprep.mubr.f32.mxu0 0.0
  %519 = vmatmul.mubr.f32.gmra.mrb[0].mxu0 %v379
  %v520 = vpop.f32.mrb[0].mxu0
  %v521 = vadd.f32 %v334, %v520
  %v522 = vpop.f32.mrb[0].mxu0
  %523 = vmatprep.mubr.f32.mxu0 0.0
  %524 = vmatmul.mubr.f32.gmra.mrb[0].mxu0 %v382
  %v525 = vpop.f32.mrb[0].mxu0
  %v526 = vadd.f32 %v334, %v525
  %v527 = vpop.f32.mrb[0].mxu0
  %528 = vdwg.mxu0
  %vm529 = vcmask 785408
  %530 = vst.msk [vmem:[#allocation2] sm:$0xff] %vm529, %v451
  %531 = vst.msk [vmem:[#allocation2 + $0x8] sm:$0xff] %vm529, %v456
  %532 = vst.msk [vmem:[#allocation2 + $0x10] sm:$0xff] %vm529, %v461
  %533 = vst.msk [vmem:[#allocation2 + $0x18] sm:$0xff] %vm529, %v466
  %534 = vst.msk [vmem:[#allocation2 + $0x20] sm:$0xff] %vm529, %v471
  %535 = vst.msk [vmem:[#allocation2 + $0x28] sm:$0xff] %vm529, %v476
  %536 = vst.msk [vmem:[#allocation2 + $0x30] sm:$0xff] %vm529, %v481
  %537 = vst.msk [vmem:[#allocation2 + $0x38] sm:$0xff] %vm529, %v486
  %538 = vst.msk [vmem:[#allocation2 + $0x40] sm:$0xff] %vm529, %v491
  %539 = vst.msk [vmem:[#allocation2 + $0x48] sm:$0xff] %vm529, %v496
  %540 = vst.msk [vmem:[#allocation2 + $0x50] sm:$0xff] %vm529, %v501
  %541 = vst.msk [vmem:[#allocation2 + $0x58] sm:$0xff] %vm529, %v506
  %542 = vst.msk [vmem:[#allocation2 + $0x60] sm:$0xff] %vm529, %v511
  %543 = vst.msk [vmem:[#allocation2 + $0x68] sm:$0xff] %vm529, %v516
  %544 = vst.msk [vmem:[#allocation2 + $0x70] sm:$0xff] %vm529, %v521
  %545 = vst.msk [vmem:[#allocation2 + $0x78] sm:$0xff] %vm529, %v526
  %v546 = vld [vmem:[#allocation2] sm:$0xff]
  %v547 = vld [vmem:[#allocation2 + $0x8] sm:$0xff]
  %v548 = vld [vmem:[#allocation2 + $0x10] sm:$0xff]
  %v549 = vld [vmem:[#allocation2 + $0x18] sm:$0xff]
  %v550 = vld [vmem:[#allocation2 + $0x20] sm:$0xff]
  %v551 = vld [vmem:[#allocation2 + $0x28] sm:$0xff]
  %v552 = vld [vmem:[#allocation2 + $0x30] sm:$0xff]
  %v553 = vld [vmem:[#allocation2 + $0x38] sm:$0xff]
  %v554 = vmul.f32 %v546, 0.25
  %v555 = vmul.f32 %v547, 0.25
  %v556 = vmul.f32 %v548, 0.25
  %v557 = vmul.f32 %v549, 0.25
  %v558 = vmul.f32 %v550, 0.25
  %v559 = vmul.f32 %v551, 0.25
  %v560 = vmul.f32 %v552, 0.25
  %v561 = vmul.f32 %v553, 0.25
  %v562 = vld [vmem:[%s5] sm:$0xff]
  %v563 = vld [vmem:[%s5 + $0x8] sm:$0xff]
  %v564 = vld [vmem:[%s5 + $0x10] sm:$0xff]
  %v565 = vld [vmem:[%s5 + $0x18] sm:$0xff]
  %v566 = vld [vmem:[%s5 + $0x20] sm:$0xff]
  %v567 = vld [vmem:[%s5 + $0x28] sm:$0xff]
  %v568 = vld [vmem:[%s5 + $0x30] sm:$0xff]
  %v569 = vld [vmem:[%s5 + $0x38] sm:$0xff]
  %578 = vrot.lane.b32.xlu0 %v546, 96
  %v579 = vpop.permute.xlu0 %578
  %580 = vrot.lane.b32.xlu0 %v547, 96
  %v581 = vpop.permute.xlu0 %580
  %582 = vrot.lane.b32.xlu0 %v548, 96
  %v583 = vpop.permute.xlu0 %582
  %584 = vrot.lane.b32.xlu0 %v549, 96
  %v585 = vpop.permute.xlu0 %584
  %586 = vrot.lane.b32.xlu0 %v550, 96
  %v587 = vpop.permute.xlu0 %586
  %588 = vrot.lane.b32.xlu0 %v551, 96
  %v589 = vpop.permute.xlu0 %588
  %590 = vrot.lane.b32.xlu0 %v552, 96
  %v591 = vpop.permute.xlu0 %590
  %592 = vrot.lane.b32.xlu0 %v553, 96
  %v593 = vpop.permute.xlu0 %592
  %vm594 = vcmask 130048
  %v596 = vsel %vm594, %v554, 0
  %v599 = vsel %vm594, %v555, 0
  %v602 = vsel %vm594, %v556, 0
  %v605 = vsel %vm594, %v557, 0
  %v608 = vsel %vm594, %v558, 0
  %v611 = vsel %vm594, %v559, 0
  %v614 = vsel %vm594, %v560, 0
  %v617 = vsel %vm594, %v561, 0
  %v619 = vsel %vm594, %v579, 0
  %v621 = vsel %vm594, %v581, 0
  %v623 = vsel %vm594, %v583, 0
  %v625 = vsel %vm594, %v585, 0
  %v627 = vsel %vm594, %v587, 0
  %v629 = vsel %vm594, %v589, 0
  %v631 = vsel %vm594, %v591, 0
  %v633 = vsel %vm594, %v593, 0
  %635 = vmatprep.subr.mxu0 0.0
  %636 = vmatpush1.xpose.msra.mxu0 %v619
  %637 = vmatprep.subr.mxu0 0.0
  %638 = vmatpush1.xpose.msra.mxu0 %v621
  %639 = vmatprep.subr.mxu0 0.0
  %640 = vmatpush1.xpose.msra.mxu0 %v623
  %641 = vmatprep.subr.mxu0 0.0
  %642 = vmatpush1.xpose.msra.mxu0 %v625
  %643 = vmatprep.subr.mxu0 0.0
  %644 = vmatpush1.xpose.msra.mxu0 %v627
  %645 = vmatprep.subr.mxu0 0.0
  %646 = vmatpush1.xpose.msra.mxu0 %v629
  %647 = vmatprep.subr.mxu0 0.0
  %648 = vmatpush1.xpose.msra.mxu0 %v631
  %649 = vmatprep.subr.mxu0 0.0
  %650 = vmatpush1.xpose.msra.mxu0 %v633
  %651 = vmatprep.subr.mxu0 0.0
  %652 = vmatpush1.xpose.msra.mxu0 0.0
  %653 = vmatprep.subr.mxu0 0.0
  %654 = vmatpush1.xpose.msra.mxu0 0.0
  %655 = vmatprep.subr.mxu0 0.0
  %656 = vmatpush1.xpose.msra.mxu0 0.0
  %657 = vmatprep.subr.mxu0 0.0
  %658 = vmatpush1.xpose.msra.mxu0 0.0
  %659 = vmatprep.subr.mxu0 0.0
  %660 = vmatpush1.xpose.msra.mxu0 0.0
  %661 = vmatprep.subr.mxu0 0.0
  %662 = vmatpush1.xpose.msra.mxu0 0.0
  %663 = vmatprep.subr.mxu0 0.0
  %664 = vmatpush1.xpose.msra.mxu0 0.0
  %665 = vmatprep.subr.mxu0 0.0
  %666 = vmatpush1.xpose.msra.mxu0 0.0
  %667 = vmatprep.subr.mxu0 0.0
  %668 = vmatpush1.xpose.msra.mxu0 0.0
  %669 = vmatprep.subr.mxu0 0.0
  %670 = vmatpush1.xpose.msra.mxu0 0.0
  %671 = vmatprep.subr.mxu0 0.0
  %672 = vmatpush1.xpose.msra.mxu0 0.0
  %673 = vmatprep.subr.mxu0 0.0
  %674 = vmatpush1.xpose.msra.mxu0 0.0
  %675 = vmatprep.subr.mxu0 0.0
  %676 = vmatpush1.xpose.msra.mxu0 0.0
  %677 = vmatprep.subr.mxu0 0.0
  %678 = vmatpush1.xpose.msra.mxu0 0.0
  %679 = vmatprep.subr.mxu0 0.0
  %680 = vmatpush1.xpose.msra.mxu0 0.0
  %681 = vmatprep.subr.mxu0 0.0
  %682 = vmatpush1.xpose.msra.mxu0 0.0
  %683 = vmatprep.subr.mxu0 0.0
  %684 = vmatpush1.xpose.msra.mxu0 0.0
  %685 = vmatprep.subr.mxu0 0.0
  %686 = vmatpush1.xpose.msra.mxu0 0.0
  %687 = vmatprep.subr.mxu0 0.0
  %688 = vmatpush1.xpose.msra.mxu0 0.0
  %689 = vmatprep.subr.mxu0 0.0
  %690 = vmatpush1.xpose.msra.mxu0 0.0
  %691 = vmatprep.subr.mxu0 0.0
  %692 = vmatpush1.xpose.msra.mxu0 0.0
  %693 = vmatprep.subr.mxu0 0.0
  %694 = vmatpush1.xpose.msra.mxu0 0.0
  %695 = vmatprep.subr.mxu0 0.0
  %696 = vmatpush1.xpose.msra.mxu0 0.0
  %697 = vmatprep.subr.mxu0 0.0
  %698 = vmatpush1.xpose.msra.mxu0 0.0
  %699 = vmatprep.mubr.f32.mxu0 0.0
  %700 = vmatmul.mubr.f32.gmra.mrb[0].mxu0 %v596
  %v701 = vpop.f32.mrb[0].mxu0
  %v702 = vadd.f32 %v562, %v701
  %v703 = vpop.f32.mrb[0].mxu0
  %704 = vmatprep.mubr.f32.mxu0 0.0
  %705 = vmatmul.mubr.f32.gmra.mrb[0].mxu0 %v599
  %v706 = vpop.f32.mrb[0].mxu0
  %v707 = vadd.f32 %v563, %v706
  %v708 = vpop.f32.mrb[0].mxu0
  %709 = vmatprep.mubr.f32.mxu0 0.0
  %710 = vmatmul.mubr.f32.gmra.mrb[0].mxu0 %v602
  %v711 = vpop.f32.mrb[0].mxu0
  %v712 = vadd.f32 %v564, %v711
  %v713 = vpop.f32.mrb[0].mxu0
  %714 = vmatprep.mubr.f32.mxu0 0.0
  %715 = vmatmul.mubr.f32.gmra.mrb[0].mxu0 %v605
  %v716 = vpop.f32.mrb[0].mxu0
  %v717 = vadd.f32 %v565, %v716
  %v718 = vpop.f32.mrb[0].mxu0
  %719 = vmatprep.mubr.f32.mxu0 0.0
  %720 = vmatmul.mubr.f32.gmra.mrb[0].mxu0 %v608
  %v721 = vpop.f32.mrb[0].mxu0
  %v722 = vadd.f32 %v566, %v721
  %v723 = vpop.f32.mrb[0].mxu0
  %724 = vmatprep.mubr.f32.mxu0 0.0
  %725 = vmatmul.mubr.f32.gmra.mrb[0].mxu0 %v611
  %v726 = vpop.f32.mrb[0].mxu0
  %v727 = vadd.f32 %v567, %v726
  %v728 = vpop.f32.mrb[0].mxu0
  %729 = vmatprep.mubr.f32.mxu0 0.0
  %730 = vmatmul.mubr.f32.gmra.mrb[0].mxu0 %v614
  %v731 = vpop.f32.mrb[0].mxu0
  %v732 = vadd.f32 %v568, %v731
  %v733 = vpop.f32.mrb[0].mxu0
  %734 = vmatprep.mubr.f32.mxu0 0.0
  %735 = vmatmul.mubr.f32.gmra.mrb[0].mxu0 %v617
  %v736 = vpop.f32.mrb[0].mxu0
  %v737 = vadd.f32 %v569, %v736
  %v738 = vpop.f32.mrb[0].mxu0
  %739 = vdwg.mxu0
  %vm740 = vcmask 523264
  %v741 = vsel %vm740, %v702, -inf
  %742 = vmax.xlane.f32.xlu0 %v741
  %v743 = vpop.xlane.xlu0 %742
  %v744 = vsel %vm740, %v707, -inf
  %745 = vmax.xlane.f32.xlu0 %v744
  %v746 = vpop.xlane.xlu0 %745
  %v747 = vsel %vm740, %v712, -inf
  %748 = vmax.xlane.f32.xlu0 %v747
  %v749 = vpop.xlane.xlu0 %748
  %v750 = vsel %vm740, %v717, -inf
  %751 = vmax.xlane.f32.xlu0 %v750
  %v752 = vpop.xlane.xlu0 %751
  %v753 = vsel %vm740, %v722, -inf
  %754 = vmax.xlane.f32.xlu0 %v753
  %v755 = vpop.xlane.xlu0 %754
  %v756 = vsel %vm740, %v727, -inf
  %757 = vmax.xlane.f32.xlu0 %v756
  %v758 = vpop.xlane.xlu0 %757
  %v759 = vsel %vm740, %v732, -inf
  %760 = vmax.xlane.f32.xlu0 %v759
  %v761 = vpop.xlane.xlu0 %760
  %v762 = vsel %vm740, %v737, -inf
  %763 = vmax.xlane.f32.xlu0 %v762
  %v764 = vpop.xlane.xlu0 %763
  %v765 = vsub.f32 %v702, %v743
  %v766 = vsub.f32 %v707, %v746
  %v767 = vsub.f32 %v712, %v749
  %v768 = vsub.f32 %v717, %v752
  %v769 = vsub.f32 %v722, %v755
  %v770 = vsub.f32 %v727, %v758
  %v771 = vsub.f32 %v732, %v761
  %v772 = vsub.f32 %v737, %v764
  %v773 = vmul.f32 %v765, 1.442695
  %v774 = vpow.pop %v773
  %v775 = vmul.f32 %v766, 1.442695
  %v776 = vpow.pop %v775
  %v777 = vmul.f32 %v767, 1.442695
  %v778 = vpow.pop %v777
  %v779 = vmul.f32 %v768, 1.442695
  %v780 = vpow.pop %v779
  %v781 = vmul.f32 %v769, 1.442695
  %v782 = vpow.pop %v781
  %v783 = vmul.f32 %v770, 1.442695
  %v784 = vpow.pop %v783
  %v785 = vmul.f32 %v771, 1.442695
  %v786 = vpow.pop %v785
  %v787 = vmul.f32 %v772, 1.442695
  %v788 = vpow.pop %v787
  %v789 = vsel %vm740, %v774, 0.0
  %790 = vadd.xlane.f32.xlu0 %v789
  %v791 = vpop.xlane.xlu0 %790
  %v792 = vsel %vm740, %v776, 0.0
  %793 = vadd.xlane.f32.xlu0 %v792
  %v794 = vpop.xlane.xlu0 %793
  %v795 = vsel %vm740, %v778, 0.0
  %796 = vadd.xlane.f32.xlu0 %v795
  %v797 = vpop.xlane.xlu0 %796
  %v798 = vsel %vm740, %v780, 0.0
  %799 = vadd.xlane.f32.xlu0 %v798
  %v800 = vpop.xlane.xlu0 %799
  %v801 = vsel %vm740, %v782, 0.0
  %802 = vadd.xlane.f32.xlu0 %v801
  %v803 = vpop.xlane.xlu0 %802
  %v804 = vsel %vm740, %v784, 0.0
  %805 = vadd.xlane.f32.xlu0 %v804
  %v806 = vpop.xlane.xlu0 %805
  %v807 = vsel %vm740, %v786, 0.0
  %808 = vadd.xlane.f32.xlu0 %v807
  %v809 = vpop.xlane.xlu0 %808
  %v810 = vsel %vm740, %v788, 0.0
  %811 = vadd.xlane.f32.xlu0 %v810
  %v812 = vpop.xlane.xlu0 %811
  %v813 = vrcp.pop %v791
  %v814 = vrcp.pop %v794
  %v815 = vrcp.pop %v797
  %v816 = vrcp.pop %v800
  %v817 = vrcp.pop %v803
  %v818 = vrcp.pop %v806
  %v819 = vrcp.pop %v809
  %v820 = vrcp.pop %v812
  %v821 = vmul.f32 %v774, %v813
  %v822 = vmul.f32 %v776, %v814
  %v823 = vmul.f32 %v778, %v815
  %v824 = vmul.f32 %v780, %v816
  %v825 = vmul.f32 %v782, %v817
  %v826 = vmul.f32 %v784, %v818
  %v827 = vmul.f32 %v786, %v819
  %v828 = vmul.f32 %v788, %v820
  %829 = vrot.lane.b32.xlu0 %v546, 64
  %v830 = vpop.permute.xlu0 %829
  %831 = vrot.lane.b32.xlu0 %v547, 64
  %v832 = vpop.permute.xlu0 %831
  %833 = vrot.lane.b32.xlu0 %v548, 64
  %v834 = vpop.permute.xlu0 %833
  %835 = vrot.lane.b32.xlu0 %v549, 64
  %v836 = vpop.permute.xlu0 %835
  %837 = vrot.lane.b32.xlu0 %v550, 64
  %v838 = vpop.permute.xlu0 %837
  %839 = vrot.lane.b32.xlu0 %v551, 64
  %v840 = vpop.permute.xlu0 %839
  %841 = vrot.lane.b32.xlu0 %v552, 64
  %v842 = vpop.permute.xlu0 %841
  %843 = vrot.lane.b32.xlu0 %v553, 64
  %v844 = vpop.permute.xlu0 %843
  %v854 = vsel %vm740, %v821, 0
  %v857 = vsel %vm740, %v822, 0
  %v860 = vsel %vm740, %v823, 0
  %v863 = vsel %vm740, %v824, 0
  %v866 = vsel %vm740, %v825, 0
  %v869 = vsel %vm740, %v826, 0
  %v872 = vsel %vm740, %v827, 0
  %v875 = vsel %vm740, %v828, 0
  %877 = vmatprep.subr.mxu0 0.0
  %878 = vmatpush1.msra.mxu0 %v830
  %879 = vmatprep.subr.mxu0 0.0
  %880 = vmatpush1.msra.mxu0 %v832
  %881 = vmatprep.subr.mxu0 0.0
  %882 = vmatpush1.msra.mxu0 %v834
  %883 = vmatprep.subr.mxu0 0.0
  %884 = vmatpush1.msra.mxu0 %v836
  %885 = vmatprep.subr.mxu0 0.0
  %886 = vmatpush1.msra.mxu0 %v838
  %887 = vmatprep.subr.mxu0 0.0
  %888 = vmatpush1.msra.mxu0 %v840
  %889 = vmatprep.subr.mxu0 0.0
  %890 = vmatpush1.msra.mxu0 %v842
  %891 = vmatprep.subr.mxu0 0.0
  %892 = vmatpush1.msra.mxu0 %v844
  %893 = vmatprep.subr.mxu0 0.0
  %894 = vmatpush1.msra.mxu0 0.0
  %895 = vmatprep.subr.mxu0 0.0
  %896 = vmatpush1.msra.mxu0 0.0
  %897 = vmatprep.subr.mxu0 0.0
  %898 = vmatpush1.msra.mxu0 0.0
  %899 = vmatprep.subr.mxu0 0.0
  %900 = vmatpush1.msra.mxu0 0.0
  %901 = vmatprep.subr.mxu0 0.0
  %902 = vmatpush1.msra.mxu0 0.0
  %903 = vmatprep.subr.mxu0 0.0
  %904 = vmatpush1.msra.mxu0 0.0
  %905 = vmatprep.subr.mxu0 0.0
  %906 = vmatpush1.msra.mxu0 0.0
  %907 = vmatprep.subr.mxu0 0.0
  %908 = vmatpush1.msra.mxu0 0.0
  %909 = vmatprep.subr.mxu0 0.0
  %910 = vmatpush1.msra.mxu0 0.0
  %911 = vmatprep.subr.mxu0 0.0
  %912 = vmatpush1.msra.mxu0 0.0
  %913 = vmatprep.subr.mxu0 0.0
  %914 = vmatpush1.msra.mxu0 0.0
  %915 = vmatprep.subr.mxu0 0.0
  %916 = vmatpush1.msra.mxu0 0.0
  %917 = vmatprep.subr.mxu0 0.0
  %918 = vmatpush1.msra.mxu0 0.0
  %919 = vmatprep.subr.mxu0 0.0
  %920 = vmatpush1.msra.mxu0 0.0
  %921 = vmatprep.subr.mxu0 0.0
  %922 = vmatpush1.msra.mxu0 0.0
  %923 = vmatprep.subr.mxu0 0.0
  %924 = vmatpush1.msra.mxu0 0.0
  %925 = vmatprep.subr.mxu0 0.0
  %926 = vmatpush1.msra.mxu0 0.0
  %927 = vmatprep.subr.mxu0 0.0
  %928 = vmatpush1.msra.mxu0 0.0
  %929 = vmatprep.subr.mxu0 0.0
  %930 = vmatpush1.msra.mxu0 0.0
  %931 = vmatprep.subr.mxu0 0.0
  %932 = vmatpush1.msra.mxu0 0.0
  %933 = vmatprep.subr.mxu0 0.0
  %934 = vmatpush1.msra.mxu0 0.0
  %935 = vmatprep.subr.mxu0 0.0
  %936 = vmatpush1.msra.mxu0 0.0
  %937 = vmatprep.subr.mxu0 0.0
  %938 = vmatpush1.msra.mxu0 0.0
  %939 = vmatprep.subr.mxu0 0.0
  %940 = vmatpush1.msra.mxu0 0.0
  %941 = vmatprep.mubr.f32.mxu0 0.0
  %942 = vmatmul.mubr.f32.gmra.mrb[0].mxu0 %v854
  %v943 = vpop.f32.mrb[0].mxu0
  %v944 = vadd.f32 0.0, %v943
  %v945 = vpop.f32.mrb[0].mxu0
  %946 = vmatprep.mubr.f32.mxu0 0.0
  %947 = vmatmul.mubr.f32.gmra.mrb[0].mxu0 %v857
  %v948 = vpop.f32.mrb[0].mxu0
  %v949 = vadd.f32 0.0, %v948
  %v950 = vpop.f32.mrb[0].mxu0
  %951 = vmatprep.mubr.f32.mxu0 0.0
  %952 = vmatmul.mubr.f32.gmra.mrb[0].mxu0 %v860
  %v953 = vpop.f32.mrb[0].mxu0
  %v954 = vadd.f32 0.0, %v953
  %v955 = vpop.f32.mrb[0].mxu0
  %956 = vmatprep.mubr.f32.mxu0 0.0
  %957 = vmatmul.mubr.f32.gmra.mrb[0].mxu0 %v863
  %v958 = vpop.f32.mrb[0].mxu0
  %v959 = vadd.f32 0.0, %v958
  %v960 = vpop.f32.mrb[0].mxu0
  %961 = vmatprep.mubr.f32.mxu0 0.0
  %962 = vmatmul.mubr.f32.gmra.mrb[0].mxu0 %v866
  %v963 = vpop.f32.mrb[0].mxu0
  %v964 = vadd.f32 0.0, %v963
  %v965 = vpop.f32.mrb[0].mxu0
  %966 = vmatprep.mubr.f32.mxu0 0.0
  %967 = vmatmul.mubr.f32.gmra.mrb[0].mxu0 %v869
  %v968 = vpop.f32.mrb[0].mxu0
  %v969 = vadd.f32 0.0, %v968
  %v970 = vpop.f32.mrb[0].mxu0
  %971 = vmatprep.mubr.f32.mxu0 0.0
  %972 = vmatmul.mubr.f32.gmra.mrb[0].mxu0 %v872
  %v973 = vpop.f32.mrb[0].mxu0
  %v974 = vadd.f32 0.0, %v973
  %v975 = vpop.f32.mrb[0].mxu0
  %976 = vmatprep.mubr.f32.mxu0 0.0
  %977 = vmatmul.mubr.f32.gmra.mrb[0].mxu0 %v875
  %v978 = vpop.f32.mrb[0].mxu0
  %v979 = vadd.f32 0.0, %v978
  %v980 = vpop.f32.mrb[0].mxu0
  %981 = vdwg.mxu0
  %982 = vst.msk [vmem:[#allocation3] sm:$0xff] %vm594, %v944
  %983 = vst.msk [vmem:[#allocation3 + $0x8] sm:$0xff] %vm594, %v949
  %984 = vst.msk [vmem:[#allocation3 + $0x10] sm:$0xff] %vm594, %v954
  %985 = vst.msk [vmem:[#allocation3 + $0x18] sm:$0xff] %vm594, %v959
  %986 = vst.msk [vmem:[#allocation3 + $0x20] sm:$0xff] %vm594, %v964
  %987 = vst.msk [vmem:[#allocation3 + $0x28] sm:$0xff] %vm594, %v969
  %988 = vst.msk [vmem:[#allocation3 + $0x30] sm:$0xff] %vm594, %v974
  %989 = vst.msk [vmem:[#allocation3 + $0x38] sm:$0xff] %vm594, %v979
  %v990 = vld [vmem:[#allocation2] sm:$0xff]
  %v991 = vld [vmem:[#allocation2 + $0x8] sm:$0xff]
  %v992 = vld [vmem:[#allocation2 + $0x10] sm:$0xff]
  %v993 = vld [vmem:[#allocation2 + $0x18] sm:$0xff]
  %v994 = vld [vmem:[#allocation2 + $0x20] sm:$0xff]
  %v995 = vld [vmem:[#allocation2 + $0x28] sm:$0xff]
  %v996 = vld [vmem:[#allocation2 + $0x30] sm:$0xff]
  %v997 = vld [vmem:[#allocation2 + $0x38] sm:$0xff]
  %v998 = vmul.f32 %v990, 0.25
  %v999 = vmul.f32 %v991, 0.25
  %v1000 = vmul.f32 %v992, 0.25
  %v1001 = vmul.f32 %v993, 0.25
  %v1002 = vmul.f32 %v994, 0.25
  %v1003 = vmul.f32 %v995, 0.25
  %v1004 = vmul.f32 %v996, 0.25
  %v1005 = vmul.f32 %v997, 0.25
  %s1006 = scalar_lea.vmem %s5, 64
  %v1007 = vld [vmem:[%s1006] sm:$0xff]
  %v1008 = vld [vmem:[%s1006 + $0x8] sm:$0xff]
  %v1009 = vld [vmem:[%s1006 + $0x10] sm:$0xff]
  %v1010 = vld [vmem:[%s1006 + $0x18] sm:$0xff]
  %v1011 = vld [vmem:[%s1006 + $0x20] sm:$0xff]
  %v1012 = vld [vmem:[%s1006 + $0x28] sm:$0xff]
  %v1013 = vld [vmem:[%s1006 + $0x30] sm:$0xff]
  %v1014 = vld [vmem:[%s1006 + $0x38] sm:$0xff]
  %1023 = vrot.lane.b32.xlu0 %v998, 112
  %v1024 = vpop.permute.xlu0 %1023
  %1025 = vrot.lane.b32.xlu0 %v999, 112
  %v1026 = vpop.permute.xlu0 %1025
  %1027 = vrot.lane.b32.xlu0 %v1000, 112
  %v1028 = vpop.permute.xlu0 %1027
  %1029 = vrot.lane.b32.xlu0 %v1001, 112
  %v1030 = vpop.permute.xlu0 %1029
  %1031 = vrot.lane.b32.xlu0 %v1002, 112
  %v1032 = vpop.permute.xlu0 %1031
  %1033 = vrot.lane.b32.xlu0 %v1003, 112
  %v1034 = vpop.permute.xlu0 %1033
  %1035 = vrot.lane.b32.xlu0 %v1004, 112
  %v1036 = vpop.permute.xlu0 %1035
  %1037 = vrot.lane.b32.xlu0 %v1005, 112
  %v1038 = vpop.permute.xlu0 %1037
  %1047 = vrot.lane.b32.xlu0 %v990, 80
  %v1048 = vpop.permute.xlu0 %1047
  %1049 = vrot.lane.b32.xlu0 %v991, 80
  %v1050 = vpop.permute.xlu0 %1049
  %1051 = vrot.lane.b32.xlu0 %v992, 80
  %v1052 = vpop.permute.xlu0 %1051
  %1053 = vrot.lane.b32.xlu0 %v993, 80
  %v1054 = vpop.permute.xlu0 %1053
  %1055 = vrot.lane.b32.xlu0 %v994, 80
  %v1056 = vpop.permute.xlu0 %1055
  %1057 = vrot.lane.b32.xlu0 %v995, 80
  %v1058 = vpop.permute.xlu0 %1057
  %1059 = vrot.lane.b32.xlu0 %v996, 80
  %v1060 = vpop.permute.xlu0 %1059
  %1061 = vrot.lane.b32.xlu0 %v997, 80
  %v1062 = vpop.permute.xlu0 %1061
  %v1063 = vsel %vm594, %v1024, 0
  %v1065 = vsel %vm594, %v1026, 0
  %v1067 = vsel %vm594, %v1028, 0
  %v1069 = vsel %vm594, %v1030, 0
  %v1071 = vsel %vm594, %v1032, 0
  %v1073 = vsel %vm594, %v1034, 0
  %v1075 = vsel %vm594, %v1036, 0
  %v1077 = vsel %vm594, %v1038, 0
  %v1079 = vsel %vm594, %v1048, 0
  %v1081 = vsel %vm594, %v1050, 0
  %v1083 = vsel %vm594, %v1052, 0
  %v1085 = vsel %vm594, %v1054, 0
  %v1087 = vsel %vm594, %v1056, 0
  %v1089 = vsel %vm594, %v1058, 0
  %v1091 = vsel %vm594, %v1060, 0
  %v1093 = vsel %vm594, %v1062, 0
  %1095 = vmatprep.subr.mxu0 0.0
  %1096 = vmatpush1.xpose.msra.mxu0 %v1079
  %1097 = vmatprep.subr.mxu0 0.0
  %1098 = vmatpush1.xpose.msra.mxu0 %v1081
  %1099 = vmatprep.subr.mxu0 0.0
  %1100 = vmatpush1.xpose.msra.mxu0 %v1083
  %1101 = vmatprep.subr.mxu0 0.0
  %1102 = vmatpush1.xpose.msra.mxu0 %v1085
  %1103 = vmatprep.subr.mxu0 0.0
  %1104 = vmatpush1.xpose.msra.mxu0 %v1087
  %1105 = vmatprep.subr.mxu0 0.0
  %1106 = vmatpush1.xpose.msra.mxu0 %v1089
  %1107 = vmatprep.subr.mxu0 0.0
  %1108 = vmatpush1.xpose.msra.mxu0 %v1091
  %1109 = vmatprep.subr.mxu0 0.0
  %1110 = vmatpush1.xpose.msra.mxu0 %v1093
  %1111 = vmatprep.subr.mxu0 0.0
  %1112 = vmatpush1.xpose.msra.mxu0 0.0
  %1113 = vmatprep.subr.mxu0 0.0
  %1114 = vmatpush1.xpose.msra.mxu0 0.0
  %1115 = vmatprep.subr.mxu0 0.0
  %1116 = vmatpush1.xpose.msra.mxu0 0.0
  %1117 = vmatprep.subr.mxu0 0.0
  %1118 = vmatpush1.xpose.msra.mxu0 0.0
  %1119 = vmatprep.subr.mxu0 0.0
  %1120 = vmatpush1.xpose.msra.mxu0 0.0
  %1121 = vmatprep.subr.mxu0 0.0
  %1122 = vmatpush1.xpose.msra.mxu0 0.0
  %1123 = vmatprep.subr.mxu0 0.0
  %1124 = vmatpush1.xpose.msra.mxu0 0.0
  %1125 = vmatprep.subr.mxu0 0.0
  %1126 = vmatpush1.xpose.msra.mxu0 0.0
  %1127 = vmatprep.subr.mxu0 0.0
  %1128 = vmatpush1.xpose.msra.mxu0 0.0
  %1129 = vmatprep.subr.mxu0 0.0
  %1130 = vmatpush1.xpose.msra.mxu0 0.0
  %1131 = vmatprep.subr.mxu0 0.0
  %1132 = vmatpush1.xpose.msra.mxu0 0.0
  %1133 = vmatprep.subr.mxu0 0.0
  %1134 = vmatpush1.xpose.msra.mxu0 0.0
  %1135 = vmatprep.subr.mxu0 0.0
  %1136 = vmatpush1.xpose.msra.mxu0 0.0
  %1137 = vmatprep.subr.mxu0 0.0
  %1138 = vmatpush1.xpose.msra.mxu0 0.0
  %1139 = vmatprep.subr.mxu0 0.0
  %1140 = vmatpush1.xpose.msra.mxu0 0.0
  %1141 = vmatprep.subr.mxu0 0.0
  %1142 = vmatpush1.xpose.msra.mxu0 0.0
  %1143 = vmatprep.subr.mxu0 0.0
  %1144 = vmatpush1.xpose.msra.mxu0 0.0
  %1145 = vmatprep.subr.mxu0 0.0
  %1146 = vmatpush1.xpose.msra.mxu0 0.0
  %1147 = vmatprep.subr.mxu0 0.0
  %1148 = vmatpush1.xpose.msra.mxu0 0.0
  %1149 = vmatprep.subr.mxu0 0.0
  %1150 = vmatpush1.xpose.msra.mxu0 0.0
  %1151 = vmatprep.subr.mxu0 0.0
  %1152 = vmatpush1.xpose.msra.mxu0 0.0
  %1153 = vmatprep.subr.mxu0 0.0
  %1154 = vmatpush1.xpose.msra.mxu0 0.0
  %1155 = vmatprep.subr.mxu0 0.0
  %1156 = vmatpush1.xpose.msra.mxu0 0.0
  %1157 = vmatprep.subr.mxu0 0.0
  %1158 = vmatpush1.xpose.msra.mxu0 0.0
  %1159 = vmatprep.mubr.f32.mxu0 0.0
  %1160 = vmatmul.mubr.f32.gmra.mrb[0].mxu0 %v1063
  %v1161 = vpop.f32.mrb[0].mxu0
  %v1162 = vadd.f32 %v1007, %v1161
  %v1163 = vpop.f32.mrb[0].mxu0
  %1164 = vmatprep.mubr.f32.mxu0 0.0
  %1165 = vmatmul.mubr.f32.gmra.mrb[0].mxu0 %v1065
  %v1166 = vpop.f32.mrb[0].mxu0
  %v1167 = vadd.f32 %v1008, %v1166
  %v1168 = vpop.f32.mrb[0].mxu0
  %1169 = vmatprep.mubr.f32.mxu0 0.0
  %1170 = vmatmul.mubr.f32.gmra.mrb[0].mxu0 %v1067
  %v1171 = vpop.f32.mrb[0].mxu0
  %v1172 = vadd.f32 %v1009, %v1171
  %v1173 = vpop.f32.mrb[0].mxu0
  %1174 = vmatprep.mubr.f32.mxu0 0.0
  %1175 = vmatmul.mubr.f32.gmra.mrb[0].mxu0 %v1069
  %v1176 = vpop.f32.mrb[0].mxu0
  %v1177 = vadd.f32 %v1010, %v1176
  %v1178 = vpop.f32.mrb[0].mxu0
  %1179 = vmatprep.mubr.f32.mxu0 0.0
  %1180 = vmatmul.mubr.f32.gmra.mrb[0].mxu0 %v1071
  %v1181 = vpop.f32.mrb[0].mxu0
  %v1182 = vadd.f32 %v1011, %v1181
  %v1183 = vpop.f32.mrb[0].mxu0
  %1184 = vmatprep.mubr.f32.mxu0 0.0
  %1185 = vmatmul.mubr.f32.gmra.mrb[0].mxu0 %v1073
  %v1186 = vpop.f32.mrb[0].mxu0
  %v1187 = vadd.f32 %v1012, %v1186
  %v1188 = vpop.f32.mrb[0].mxu0
  %1189 = vmatprep.mubr.f32.mxu0 0.0
  %1190 = vmatmul.mubr.f32.gmra.mrb[0].mxu0 %v1075
  %v1191 = vpop.f32.mrb[0].mxu0
  %v1192 = vadd.f32 %v1013, %v1191
  %v1193 = vpop.f32.mrb[0].mxu0
  %1194 = vmatprep.mubr.f32.mxu0 0.0
  %1195 = vmatmul.mubr.f32.gmra.mrb[0].mxu0 %v1077
  %v1196 = vpop.f32.mrb[0].mxu0
  %v1197 = vadd.f32 %v1014, %v1196
  %v1198 = vpop.f32.mrb[0].mxu0
  %1199 = vdwg.mxu0
  %v1200 = vsel %vm740, %v1162, -inf
  %1201 = vmax.xlane.f32.xlu0 %v1200
  %v1202 = vpop.xlane.xlu0 %1201
  %v1203 = vsel %vm740, %v1167, -inf
  %1204 = vmax.xlane.f32.xlu0 %v1203
  %v1205 = vpop.xlane.xlu0 %1204
  %v1206 = vsel %vm740, %v1172, -inf
  %1207 = vmax.xlane.f32.xlu0 %v1206
  %v1208 = vpop.xlane.xlu0 %1207
  %v1209 = vsel %vm740, %v1177, -inf
  %1210 = vmax.xlane.f32.xlu0 %v1209
  %v1211 = vpop.xlane.xlu0 %1210
  %v1212 = vsel %vm740, %v1182, -inf
  %1213 = vmax.xlane.f32.xlu0 %v1212
  %v1214 = vpop.xlane.xlu0 %1213
  %v1215 = vsel %vm740, %v1187, -inf
  %1216 = vmax.xlane.f32.xlu0 %v1215
  %v1217 = vpop.xlane.xlu0 %1216
  %v1218 = vsel %vm740, %v1192, -inf
  %1219 = vmax.xlane.f32.xlu0 %v1218
  %v1220 = vpop.xlane.xlu0 %1219
  %v1221 = vsel %vm740, %v1197, -inf
  %1222 = vmax.xlane.f32.xlu0 %v1221
  %v1223 = vpop.xlane.xlu0 %1222
  %v1224 = vsub.f32 %v1162, %v1202
  %v1225 = vsub.f32 %v1167, %v1205
  %v1226 = vsub.f32 %v1172, %v1208
  %v1227 = vsub.f32 %v1177, %v1211
  %v1228 = vsub.f32 %v1182, %v1214
  %v1229 = vsub.f32 %v1187, %v1217
  %v1230 = vsub.f32 %v1192, %v1220
  %v1231 = vsub.f32 %v1197, %v1223
  %v1232 = vmul.f32 %v1224, 1.442695
  %v1233 = vpow.pop %v1232
  %v1234 = vmul.f32 %v1225, 1.442695
  %v1235 = vpow.pop %v1234
  %v1236 = vmul.f32 %v1226, 1.442695
  %v1237 = vpow.pop %v1236
  %v1238 = vmul.f32 %v1227, 1.442695
  %v1239 = vpow.pop %v1238
  %v1240 = vmul.f32 %v1228, 1.442695
  %v1241 = vpow.pop %v1240
  %v1242 = vmul.f32 %v1229, 1.442695
  %v1243 = vpow.pop %v1242
  %v1244 = vmul.f32 %v1230, 1.442695
  %v1245 = vpow.pop %v1244
  %v1246 = vmul.f32 %v1231, 1.442695
  %v1247 = vpow.pop %v1246
  %v1248 = vsel %vm740, %v1233, 0.0
  %1249 = vadd.xlane.f32.xlu0 %v1248
  %v1250 = vpop.xlane.xlu0 %1249
  %v1251 = vsel %vm740, %v1235, 0.0
  %1252 = vadd.xlane.f32.xlu0 %v1251
  %v1253 = vpop.xlane.xlu0 %1252
  %v1254 = vsel %vm740, %v1237, 0.0
  %1255 = vadd.xlane.f32.xlu0 %v1254
  %v1256 = vpop.xlane.xlu0 %1255
  %v1257 = vsel %vm740, %v1239, 0.0
  %1258 = vadd.xlane.f32.xlu0 %v1257
  %v1259 = vpop.xlane.xlu0 %1258
  %v1260 = vsel %vm740, %v1241, 0.0
  %1261 = vadd.xlane.f32.xlu0 %v1260
  %v1262 = vpop.xlane.xlu0 %1261
  %v1263 = vsel %vm740, %v1243, 0.0
  %1264 = vadd.xlane.f32.xlu0 %v1263
  %v1265 = vpop.xlane.xlu0 %1264
  %v1266 = vsel %vm740, %v1245, 0.0
  %1267 = vadd.xlane.f32.xlu0 %v1266
  %v1268 = vpop.xlane.xlu0 %1267
  %v1269 = vsel %vm740, %v1247, 0.0
  %1270 = vadd.xlane.f32.xlu0 %v1269
  %v1271 = vpop.xlane.xlu0 %1270
  %v1272 = vrcp.pop %v1250
  %v1273 = vrcp.pop %v1253
  %v1274 = vrcp.pop %v1256
  %v1275 = vrcp.pop %v1259
  %v1276 = vrcp.pop %v1262
  %v1277 = vrcp.pop %v1265
  %v1278 = vrcp.pop %v1268
  %v1279 = vrcp.pop %v1271
  %v1280 = vmul.f32 %v1233, %v1272
  %v1281 = vmul.f32 %v1235, %v1273
  %v1282 = vmul.f32 %v1237, %v1274
  %v1283 = vmul.f32 %v1239, %v1275
  %v1284 = vmul.f32 %v1241, %v1276
  %v1285 = vmul.f32 %v1243, %v1277
  %v1286 = vmul.f32 %v1245, %v1278
  %v1287 = vmul.f32 %v1247, %v1279
  %1288 = vrot.lane.b32.xlu0 %v990, 48
  %v1289 = vpop.permute.xlu0 %1288
  %1290 = vrot.lane.b32.xlu0 %v991, 48
  %v1291 = vpop.permute.xlu0 %1290
  %1292 = vrot.lane.b32.xlu0 %v992, 48
  %v1293 = vpop.permute.xlu0 %1292
  %1294 = vrot.lane.b32.xlu0 %v993, 48
  %v1295 = vpop.permute.xlu0 %1294
  %1296 = vrot.lane.b32.xlu0 %v994, 48
  %v1297 = vpop.permute.xlu0 %1296
  %1298 = vrot.lane.b32.xlu0 %v995, 48
  %v1299 = vpop.permute.xlu0 %1298
  %1300 = vrot.lane.b32.xlu0 %v996, 48
  %v1301 = vpop.permute.xlu0 %1300
  %1302 = vrot.lane.b32.xlu0 %v997, 48
  %v1303 = vpop.permute.xlu0 %1302
  %v1313 = vsel %vm740, %v1280, 0
  %v1316 = vsel %vm740, %v1281, 0
  %v1319 = vsel %vm740, %v1282, 0
  %v1322 = vsel %vm740, %v1283, 0
  %v1325 = vsel %vm740, %v1284, 0
  %v1328 = vsel %vm740, %v1285, 0
  %v1331 = vsel %vm740, %v1286, 0
  %v1334 = vsel %vm740, %v1287, 0
  %1336 = vmatprep.subr.mxu0 0.0
  %1337 = vmatpush1.msra.mxu0 %v1289
  %1338 = vmatprep.subr.mxu0 0.0
  %1339 = vmatpush1.msra.mxu0 %v1291
  %1340 = vmatprep.subr.mxu0 0.0
  %1341 = vmatpush1.msra.mxu0 %v1293
  %1342 = vmatprep.subr.mxu0 0.0
  %1343 = vmatpush1.msra.mxu0 %v1295
  %1344 = vmatprep.subr.mxu0 0.0
  %1345 = vmatpush1.msra.mxu0 %v1297
  %1346 = vmatprep.subr.mxu0 0.0
  %1347 = vmatpush1.msra.mxu0 %v1299
  %1348 = vmatprep.subr.mxu0 0.0
  %1349 = vmatpush1.msra.mxu0 %v1301
  %1350 = vmatprep.subr.mxu0 0.0
  %1351 = vmatpush1.msra.mxu0 %v1303
  %1352 = vmatprep.subr.mxu0 0.0
  %1353 = vmatpush1.msra.mxu0 0.0
  %1354 = vmatprep.subr.mxu0 0.0
  %1355 = vmatpush1.msra.mxu0 0.0
  %1356 = vmatprep.subr.mxu0 0.0
  %1357 = vmatpush1.msra.mxu0 0.0
  %1358 = vmatprep.subr.mxu0 0.0
  %1359 = vmatpush1.msra.mxu0 0.0
  %1360 = vmatprep.subr.mxu0 0.0
  %1361 = vmatpush1.msra.mxu0 0.0
  %1362 = vmatprep.subr.mxu0 0.0
  %1363 = vmatpush1.msra.mxu0 0.0
  %1364 = vmatprep.subr.mxu0 0.0
  %1365 = vmatpush1.msra.mxu0 0.0
  %1366 = vmatprep.subr.mxu0 0.0
  %1367 = vmatpush1.msra.mxu0 0.0
  %1368 = vmatprep.subr.mxu0 0.0
  %1369 = vmatpush1.msra.mxu0 0.0
  %1370 = vmatprep.subr.mxu0 0.0
  %1371 = vmatpush1.msra.mxu0 0.0
  %1372 = vmatprep.subr.mxu0 0.0
  %1373 = vmatpush1.msra.mxu0 0.0
  %1374 = vmatprep.subr.mxu0 0.0
  %1375 = vmatpush1.msra.mxu0 0.0
  %1376 = vmatprep.subr.mxu0 0.0
  %1377 = vmatpush1.msra.mxu0 0.0
  %1378 = vmatprep.subr.mxu0 0.0
  %1379 = vmatpush1.msra.mxu0 0.0
  %1380 = vmatprep.subr.mxu0 0.0
  %1381 = vmatpush1.msra.mxu0 0.0
  %1382 = vmatprep.subr.mxu0 0.0
  %1383 = vmatpush1.msra.mxu0 0.0
  %1384 = vmatprep.subr.mxu0 0.0
  %1385 = vmatpush1.msra.mxu0 0.0
  %1386 = vmatprep.subr.mxu0 0.0
  %1387 = vmatpush1.msra.mxu0 0.0
  %1388 = vmatprep.subr.mxu0 0.0
  %1389 = vmatpush1.msra.mxu0 0.0
  %1390 = vmatprep.subr.mxu0 0.0
  %1391 = vmatpush1.msra.mxu0 0.0
  %1392 = vmatprep.subr.mxu0 0.0
  %1393 = vmatpush1.msra.mxu0 0.0
  %1394 = vmatprep.subr.mxu0 0.0
  %1395 = vmatpush1.msra.mxu0 0.0
  %1396 = vmatprep.subr.mxu0 0.0
  %1397 = vmatpush1.msra.mxu0 0.0
  %1398 = vmatprep.subr.mxu0 0.0
  %1399 = vmatpush1.msra.mxu0 0.0
  %1400 = vmatprep.mubr.f32.mxu0 0.0
  %1401 = vmatmul.mubr.f32.gmra.mrb[0].mxu0 %v1313
  %v1402 = vpop.f32.mrb[0].mxu0
  %v1403 = vadd.f32 0.0, %v1402
  %v1404 = vpop.f32.mrb[0].mxu0
  %1405 = vmatprep.mubr.f32.mxu0 0.0
  %1406 = vmatmul.mubr.f32.gmra.mrb[0].mxu0 %v1316
  %v1407 = vpop.f32.mrb[0].mxu0
  %v1408 = vadd.f32 0.0, %v1407
  %v1409 = vpop.f32.mrb[0].mxu0
  %1410 = vmatprep.mubr.f32.mxu0 0.0
  %1411 = vmatmul.mubr.f32.gmra.mrb[0].mxu0 %v1319
  %v1412 = vpop.f32.mrb[0].mxu0
  %v1413 = vadd.f32 0.0, %v1412
  %v1414 = vpop.f32.mrb[0].mxu0
  %1415 = vmatprep.mubr.f32.mxu0 0.0
  %1416 = vmatmul.mubr.f32.gmra.mrb[0].mxu0 %v1322
  %v1417 = vpop.f32.mrb[0].mxu0
  %v1418 = vadd.f32 0.0, %v1417
  %v1419 = vpop.f32.mrb[0].mxu0
  %1420 = vmatprep.mubr.f32.mxu0 0.0
  %1421 = vmatmul.mubr.f32.gmra.mrb[0].mxu0 %v1325
  %v1422 = vpop.f32.mrb[0].mxu0
  %v1423 = vadd.f32 0.0, %v1422
  %v1424 = vpop.f32.mrb[0].mxu0
  %1425 = vmatprep.mubr.f32.mxu0 0.0
  %1426 = vmatmul.mubr.f32.gmra.mrb[0].mxu0 %v1328
  %v1427 = vpop.f32.mrb[0].mxu0
  %v1428 = vadd.f32 0.0, %v1427
  %v1429 = vpop.f32.mrb[0].mxu0
  %1430 = vmatprep.mubr.f32.mxu0 0.0
  %1431 = vmatmul.mubr.f32.gmra.mrb[0].mxu0 %v1331
  %v1432 = vpop.f32.mrb[0].mxu0
  %v1433 = vadd.f32 0.0, %v1432
  %v1434 = vpop.f32.mrb[0].mxu0
  %1435 = vmatprep.mubr.f32.mxu0 0.0
  %1436 = vmatmul.mubr.f32.gmra.mrb[0].mxu0 %v1334
  %v1437 = vpop.f32.mrb[0].mxu0
  %v1438 = vadd.f32 0.0, %v1437
  %v1439 = vpop.f32.mrb[0].mxu0
  %1440 = vdwg.mxu0
  %1449 = vrot.lane.b32.xlu0 %v1403, 16
  %v1450 = vpop.permute.xlu0 %1449
  %1451 = vrot.lane.b32.xlu0 %v1408, 16
  %v1452 = vpop.permute.xlu0 %1451
  %1453 = vrot.lane.b32.xlu0 %v1413, 16
  %v1454 = vpop.permute.xlu0 %1453
  %1455 = vrot.lane.b32.xlu0 %v1418, 16
  %v1456 = vpop.permute.xlu0 %1455
  %1457 = vrot.lane.b32.xlu0 %v1423, 16
  %v1458 = vpop.permute.xlu0 %1457
  %1459 = vrot.lane.b32.xlu0 %v1428, 16
  %v1460 = vpop.permute.xlu0 %1459
  %1461 = vrot.lane.b32.xlu0 %v1433, 16
  %v1462 = vpop.permute.xlu0 %1461
  %1463 = vrot.lane.b32.xlu0 %v1438, 16
  %v1464 = vpop.permute.xlu0 %1463
  %vm1473 = vcmask 261248
  %1474 = vst.msk [vmem:[#allocation3] sm:$0xff] %vm1473, %v1450
  %1475 = vst.msk [vmem:[#allocation3 + $0x8] sm:$0xff] %vm1473, %v1452
  %1476 = vst.msk [vmem:[#allocation3 + $0x10] sm:$0xff] %vm1473, %v1454
  %1477 = vst.msk [vmem:[#allocation3 + $0x18] sm:$0xff] %vm1473, %v1456
  %1478 = vst.msk [vmem:[#allocation3 + $0x20] sm:$0xff] %vm1473, %v1458
  %1479 = vst.msk [vmem:[#allocation3 + $0x28] sm:$0xff] %vm1473, %v1460
  %1480 = vst.msk [vmem:[#allocation3 + $0x30] sm:$0xff] %vm1473, %v1462
  %1481 = vst.msk [vmem:[#allocation3 + $0x38] sm:$0xff] %vm1473, %v1464
  %v1482 = vld [vmem:[#allocation2 + $0x40] sm:$0xff]
  %v1483 = vld [vmem:[#allocation2 + $0x48] sm:$0xff]
  %v1484 = vld [vmem:[#allocation2 + $0x50] sm:$0xff]
  %v1485 = vld [vmem:[#allocation2 + $0x58] sm:$0xff]
  %v1486 = vld [vmem:[#allocation2 + $0x60] sm:$0xff]
  %v1487 = vld [vmem:[#allocation2 + $0x68] sm:$0xff]
  %v1488 = vld [vmem:[#allocation2 + $0x70] sm:$0xff]
  %v1489 = vld [vmem:[#allocation2 + $0x78] sm:$0xff]
  %v1490 = vmul.f32 %v1482, 0.25
  %v1491 = vmul.f32 %v1483, 0.25
  %v1492 = vmul.f32 %v1484, 0.25
  %v1493 = vmul.f32 %v1485, 0.25
  %v1494 = vmul.f32 %v1486, 0.25
  %v1495 = vmul.f32 %v1487, 0.25
  %v1496 = vmul.f32 %v1488, 0.25
  %v1497 = vmul.f32 %v1489, 0.25
  %v1498 = vld [vmem:[%s5] sm:$0xff]
  %v1499 = vld [vmem:[%s5 + $0x8] sm:$0xff]
  %v1500 = vld [vmem:[%s5 + $0x10] sm:$0xff]
  %v1501 = vld [vmem:[%s5 + $0x18] sm:$0xff]
  %v1502 = vld [vmem:[%s5 + $0x20] sm:$0xff]
  %v1503 = vld [vmem:[%s5 + $0x28] sm:$0xff]
  %v1504 = vld [vmem:[%s5 + $0x30] sm:$0xff]
  %v1505 = vld [vmem:[%s5 + $0x38] sm:$0xff]
  %1514 = vrot.lane.b32.xlu0 %v1482, 96
  %v1515 = vpop.permute.xlu0 %1514
  %1516 = vrot.lane.b32.xlu0 %v1483, 96
  %v1517 = vpop.permute.xlu0 %1516
  %1518 = vrot.lane.b32.xlu0 %v1484, 96
  %v1519 = vpop.permute.xlu0 %1518
  %1520 = vrot.lane.b32.xlu0 %v1485, 96
  %v1521 = vpop.permute.xlu0 %1520
  %1522 = vrot.lane.b32.xlu0 %v1486, 96
  %v1523 = vpop.permute.xlu0 %1522
  %1524 = vrot.lane.b32.xlu0 %v1487, 96
  %v1525 = vpop.permute.xlu0 %1524
  %1526 = vrot.lane.b32.xlu0 %v1488, 96
  %v1527 = vpop.permute.xlu0 %1526
  %1528 = vrot.lane.b32.xlu0 %v1489, 96
  %v1529 = vpop.permute.xlu0 %1528
  %v1531 = vsel %vm594, %v1490, 0
  %v1534 = vsel %vm594, %v1491, 0
  %v1537 = vsel %vm594, %v1492, 0
  %v1540 = vsel %vm594, %v1493, 0
  %v1543 = vsel %vm594, %v1494, 0
  %v1546 = vsel %vm594, %v1495, 0
  %v1549 = vsel %vm594, %v1496, 0
  %v1552 = vsel %vm594, %v1497, 0
  %v1554 = vsel %vm594, %v1515, 0
  %v1556 = vsel %vm594, %v1517, 0
  %v1558 = vsel %vm594, %v1519, 0
  %v1560 = vsel %vm594, %v1521, 0
  %v1562 = vsel %vm594, %v1523, 0
  %v1564 = vsel %vm594, %v1525, 0
  %v1566 = vsel %vm594, %v1527, 0
  %v1568 = vsel %vm594, %v1529, 0
  %1570 = vmatprep.subr.mxu0 0.0
  %1571 = vmatpush1.xpose.msra.mxu0 %v1554
  %1572 = vmatprep.subr.mxu0 0.0
  %1573 = vmatpush1.xpose.msra.mxu0 %v1556
  %1574 = vmatprep.subr.mxu0 0.0
  %1575 = vmatpush1.xpose.msra.mxu0 %v1558
  %1576 = vmatprep.subr.mxu0 0.0
  %1577 = vmatpush1.xpose.msra.mxu0 %v1560
  %1578 = vmatprep.subr.mxu0 0.0
  %1579 = vmatpush1.xpose.msra.mxu0 %v1562
  %1580 = vmatprep.subr.mxu0 0.0
  %1581 = vmatpush1.xpose.msra.mxu0 %v1564
  %1582 = vmatprep.subr.mxu0 0.0
  %1583 = vmatpush1.xpose.msra.mxu0 %v1566
  %1584 = vmatprep.subr.mxu0 0.0
  %1585 = vmatpush1.xpose.msra.mxu0 %v1568
  %1586 = vmatprep.subr.mxu0 0.0
  %1587 = vmatpush1.xpose.msra.mxu0 0.0
  %1588 = vmatprep.subr.mxu0 0.0
  %1589 = vmatpush1.xpose.msra.mxu0 0.0
  %1590 = vmatprep.subr.mxu0 0.0
  %1591 = vmatpush1.xpose.msra.mxu0 0.0
  %1592 = vmatprep.subr.mxu0 0.0
  %1593 = vmatpush1.xpose.msra.mxu0 0.0
  %1594 = vmatprep.subr.mxu0 0.0
  %1595 = vmatpush1.xpose.msra.mxu0 0.0
  %1596 = vmatprep.subr.mxu0 0.0
  %1597 = vmatpush1.xpose.msra.mxu0 0.0
  %1598 = vmatprep.subr.mxu0 0.0
  %1599 = vmatpush1.xpose.msra.mxu0 0.0
  %1600 = vmatprep.subr.mxu0 0.0
  %1601 = vmatpush1.xpose.msra.mxu0 0.0
  %1602 = vmatprep.subr.mxu0 0.0
  %1603 = vmatpush1.xpose.msra.mxu0 0.0
  %1604 = vmatprep.subr.mxu0 0.0
  %1605 = vmatpush1.xpose.msra.mxu0 0.0
  %1606 = vmatprep.subr.mxu0 0.0
  %1607 = vmatpush1.xpose.msra.mxu0 0.0
  %1608 = vmatprep.subr.mxu0 0.0
  %1609 = vmatpush1.xpose.msra.mxu0 0.0
  %1610 = vmatprep.subr.mxu0 0.0
  %1611 = vmatpush1.xpose.msra.mxu0 0.0
  %1612 = vmatprep.subr.mxu0 0.0
  %1613 = vmatpush1.xpose.msra.mxu0 0.0
  %1614 = vmatprep.subr.mxu0 0.0
  %1615 = vmatpush1.xpose.msra.mxu0 0.0
  %1616 = vmatprep.subr.mxu0 0.0
  %1617 = vmatpush1.xpose.msra.mxu0 0.0
  %1618 = vmatprep.subr.mxu0 0.0
  %1619 = vmatpush1.xpose.msra.mxu0 0.0
  %1620 = vmatprep.subr.mxu0 0.0
  %1621 = vmatpush1.xpose.msra.mxu0 0.0
  %1622 = vmatprep.subr.mxu0 0.0
  %1623 = vmatpush1.xpose.msra.mxu0 0.0
  %1624 = vmatprep.subr.mxu0 0.0
  %1625 = vmatpush1.xpose.msra.mxu0 0.0
  %1626 = vmatprep.subr.mxu0 0.0
  %1627 = vmatpush1.xpose.msra.mxu0 0.0
  %1628 = vmatprep.subr.mxu0 0.0
  %1629 = vmatpush1.xpose.msra.mxu0 0.0
  %1630 = vmatprep.subr.mxu0 0.0
  %1631 = vmatpush1.xpose.msra.mxu0 0.0
  %1632 = vmatprep.subr.mxu0 0.0
  %1633 = vmatpush1.xpose.msra.mxu0 0.0
  %1634 = vmatprep.mubr.f32.mxu0 0.0
  %1635 = vmatmul.mubr.f32.gmra.mrb[0].mxu0 %v1531
  %v1636 = vpop.f32.mrb[0].mxu0
  %v1637 = vadd.f32 %v1498, %v1636
  %v1638 = vpop.f32.mrb[0].mxu0
  %1639 = vmatprep.mubr.f32.mxu0 0.0
  %1640 = vmatmul.mubr.f32.gmra.mrb[0].mxu0 %v1534
  %v1641 = vpop.f32.mrb[0].mxu0
  %v1642 = vadd.f32 %v1499, %v1641
  %v1643 = vpop.f32.mrb[0].mxu0
  %1644 = vmatprep.mubr.f32.mxu0 0.0
  %1645 = vmatmul.mubr.f32.gmra.mrb[0].mxu0 %v1537
  %v1646 = vpop.f32.mrb[0].mxu0
  %v1647 = vadd.f32 %v1500, %v1646
  %v1648 = vpop.f32.mrb[0].mxu0
  %1649 = vmatprep.mubr.f32.mxu0 0.0
  %1650 = vmatmul.mubr.f32.gmra.mrb[0].mxu0 %v1540
  %v1651 = vpop.f32.mrb[0].mxu0
  %v1652 = vadd.f32 %v1501, %v1651
  %v1653 = vpop.f32.mrb[0].mxu0
  %1654 = vmatprep.mubr.f32.mxu0 0.0
  %1655 = vmatmul.mubr.f32.gmra.mrb[0].mxu0 %v1543
  %v1656 = vpop.f32.mrb[0].mxu0
  %v1657 = vadd.f32 %v1502, %v1656
  %v1658 = vpop.f32.mrb[0].mxu0
  %1659 = vmatprep.mubr.f32.mxu0 0.0
  %1660 = vmatmul.mubr.f32.gmra.mrb[0].mxu0 %v1546
  %v1661 = vpop.f32.mrb[0].mxu0
  %v1662 = vadd.f32 %v1503, %v1661
  %v1663 = vpop.f32.mrb[0].mxu0
  %1664 = vmatprep.mubr.f32.mxu0 0.0
  %1665 = vmatmul.mubr.f32.gmra.mrb[0].mxu0 %v1549
  %v1666 = vpop.f32.mrb[0].mxu0
  %v1667 = vadd.f32 %v1504, %v1666
  %v1668 = vpop.f32.mrb[0].mxu0
  %1669 = vmatprep.mubr.f32.mxu0 0.0
  %1670 = vmatmul.mubr.f32.gmra.mrb[0].mxu0 %v1552
  %v1671 = vpop.f32.mrb[0].mxu0
  %v1672 = vadd.f32 %v1505, %v1671
  %v1673 = vpop.f32.mrb[0].mxu0
  %1674 = vdwg.mxu0
  %v1675 = vsel %vm740, %v1637, -inf
  %1676 = vmax.xlane.f32.xlu0 %v1675
  %v1677 = vpop.xlane.xlu0 %1676
  %v1678 = vsel %vm740, %v1642, -inf
  %1679 = vmax.xlane.f32.xlu0 %v1678
  %v1680 = vpop.xlane.xlu0 %1679
  %v1681 = vsel %vm740, %v1647, -inf
  %1682 = vmax.xlane.f32.xlu0 %v1681
  %v1683 = vpop.xlane.xlu0 %1682
  %v1684 = vsel %vm740, %v1652, -inf
  %1685 = vmax.xlane.f32.xlu0 %v1684
  %v1686 = vpop.xlane.xlu0 %1685
  %v1687 = vsel %vm740, %v1657, -inf
  %1688 = vmax.xlane.f32.xlu0 %v1687
  %v1689 = vpop.xlane.xlu0 %1688
  %v1690 = vsel %vm740, %v1662, -inf
  %1691 = vmax.xlane.f32.xlu0 %v1690
  %v1692 = vpop.xlane.xlu0 %1691
  %v1693 = vsel %vm740, %v1667, -inf
  %1694 = vmax.xlane.f32.xlu0 %v1693
  %v1695 = vpop.xlane.xlu0 %1694
  %v1696 = vsel %vm740, %v1672, -inf
  %1697 = vmax.xlane.f32.xlu0 %v1696
  %v1698 = vpop.xlane.xlu0 %1697
  %v1699 = vsub.f32 %v1637, %v1677
  %v1700 = vsub.f32 %v1642, %v1680
  %v1701 = vsub.f32 %v1647, %v1683
  %v1702 = vsub.f32 %v1652, %v1686
  %v1703 = vsub.f32 %v1657, %v1689
  %v1704 = vsub.f32 %v1662, %v1692
  %v1705 = vsub.f32 %v1667, %v1695
  %v1706 = vsub.f32 %v1672, %v1698
  %v1707 = vmul.f32 %v1699, 1.442695
  %v1708 = vpow.pop %v1707
  %v1709 = vmul.f32 %v1700, 1.442695
  %v1710 = vpow.pop %v1709
  %v1711 = vmul.f32 %v1701, 1.442695
  %v1712 = vpow.pop %v1711
  %v1713 = vmul.f32 %v1702, 1.442695
  %v1714 = vpow.pop %v1713
  %v1715 = vmul.f32 %v1703, 1.442695
  %v1716 = vpow.pop %v1715
  %v1717 = vmul.f32 %v1704, 1.442695
  %v1718 = vpow.pop %v1717
  %v1719 = vmul.f32 %v1705, 1.442695
  %v1720 = vpow.pop %v1719
  %v1721 = vmul.f32 %v1706, 1.442695
  %v1722 = vpow.pop %v1721
  %v1723 = vsel %vm740, %v1708, 0.0
  %1724 = vadd.xlane.f32.xlu0 %v1723
  %v1725 = vpop.xlane.xlu0 %1724
  %v1726 = vsel %vm740, %v1710, 0.0
  %1727 = vadd.xlane.f32.xlu0 %v1726
  %v1728 = vpop.xlane.xlu0 %1727
  %v1729 = vsel %vm740, %v1712, 0.0
  %1730 = vadd.xlane.f32.xlu0 %v1729
  %v1731 = vpop.xlane.xlu0 %1730
  %v1732 = vsel %vm740, %v1714, 0.0
  %1733 = vadd.xlane.f32.xlu0 %v1732
  %v1734 = vpop.xlane.xlu0 %1733
  %v1735 = vsel %vm740, %v1716, 0.0
  %1736 = vadd.xlane.f32.xlu0 %v1735
  %v1737 = vpop.xlane.xlu0 %1736
  %v1738 = vsel %vm740, %v1718, 0.0
  %1739 = vadd.xlane.f32.xlu0 %v1738
  %v1740 = vpop.xlane.xlu0 %1739
  %v1741 = vsel %vm740, %v1720, 0.0
  %1742 = vadd.xlane.f32.xlu0 %v1741
  %v1743 = vpop.xlane.xlu0 %1742
  %v1744 = vsel %vm740, %v1722, 0.0
  %1745 = vadd.xlane.f32.xlu0 %v1744
  %v1746 = vpop.xlane.xlu0 %1745
  %v1747 = vrcp.pop %v1725
  %v1748 = vrcp.pop %v1728
  %v1749 = vrcp.pop %v1731
  %v1750 = vrcp.pop %v1734
  %v1751 = vrcp.pop %v1737
  %v1752 = vrcp.pop %v1740
  %v1753 = vrcp.pop %v1743
  %v1754 = vrcp.pop %v1746
  %v1755 = vmul.f32 %v1708, %v1747
  %v1756 = vmul.f32 %v1710, %v1748
  %v1757 = vmul.f32 %v1712, %v1749
  %v1758 = vmul.f32 %v1714, %v1750
  %v1759 = vmul.f32 %v1716, %v1751
  %v1760 = vmul.f32 %v1718, %v1752
  %v1761 = vmul.f32 %v1720, %v1753
  %v1762 = vmul.f32 %v1722, %v1754
  %1763 = vrot.lane.b32.xlu0 %v1482, 64
  %v1764 = vpop.permute.xlu0 %1763
  %1765 = vrot.lane.b32.xlu0 %v1483, 64
  %v1766 = vpop.permute.xlu0 %1765
  %1767 = vrot.lane.b32.xlu0 %v1484, 64
  %v1768 = vpop.permute.xlu0 %1767
  %1769 = vrot.lane.b32.xlu0 %v1485, 64
  %v1770 = vpop.permute.xlu0 %1769
  %1771 = vrot.lane.b32.xlu0 %v1486, 64
  %v1772 = vpop.permute.xlu0 %1771
  %1773 = vrot.lane.b32.xlu0 %v1487, 64
  %v1774 = vpop.permute.xlu0 %1773
  %1775 = vrot.lane.b32.xlu0 %v1488, 64
  %v1776 = vpop.permute.xlu0 %1775
  %1777 = vrot.lane.b32.xlu0 %v1489, 64
  %v1778 = vpop.permute.xlu0 %1777
  %v1788 = vsel %vm740, %v1755, 0
  %v1791 = vsel %vm740, %v1756, 0
  %v1794 = vsel %vm740, %v1757, 0
  %v1797 = vsel %vm740, %v1758, 0
  %v1800 = vsel %vm740, %v1759, 0
  %v1803 = vsel %vm740, %v1760, 0
  %v1806 = vsel %vm740, %v1761, 0
  %v1809 = vsel %vm740, %v1762, 0
  %1811 = vmatprep.subr.mxu0 0.0
  %1812 = vmatpush1.msra.mxu0 %v1764
  %1813 = vmatprep.subr.mxu0 0.0
  %1814 = vmatpush1.msra.mxu0 %v1766
  %1815 = vmatprep.subr.mxu0 0.0
  %1816 = vmatpush1.msra.mxu0 %v1768
  %1817 = vmatprep.subr.mxu0 0.0
  %1818 = vmatpush1.msra.mxu0 %v1770
  %1819 = vmatprep.subr.mxu0 0.0
  %1820 = vmatpush1.msra.mxu0 %v1772
  %1821 = vmatprep.subr.mxu0 0.0
  %1822 = vmatpush1.msra.mxu0 %v1774
  %1823 = vmatprep.subr.mxu0 0.0
  %1824 = vmatpush1.msra.mxu0 %v1776
  %1825 = vmatprep.subr.mxu0 0.0
  %1826 = vmatpush1.msra.mxu0 %v1778
  %1827 = vmatprep.subr.mxu0 0.0
  %1828 = vmatpush1.msra.mxu0 0.0
  %1829 = vmatprep.subr.mxu0 0.0
  %1830 = vmatpush1.msra.mxu0 0.0
  %1831 = vmatprep.subr.mxu0 0.0
  %1832 = vmatpush1.msra.mxu0 0.0
  %1833 = vmatprep.subr.mxu0 0.0
  %1834 = vmatpush1.msra.mxu0 0.0
  %1835 = vmatprep.subr.mxu0 0.0
  %1836 = vmatpush1.msra.mxu0 0.0
  %1837 = vmatprep.subr.mxu0 0.0
  %1838 = vmatpush1.msra.mxu0 0.0
  %1839 = vmatprep.subr.mxu0 0.0
  %1840 = vmatpush1.msra.mxu0 0.0
  %1841 = vmatprep.subr.mxu0 0.0
  %1842 = vmatpush1.msra.mxu0 0.0
  %1843 = vmatprep.subr.mxu0 0.0
  %1844 = vmatpush1.msra.mxu0 0.0
  %1845 = vmatprep.subr.mxu0 0.0
  %1846 = vmatpush1.msra.mxu0 0.0
  %1847 = vmatprep.subr.mxu0 0.0
  %1848 = vmatpush1.msra.mxu0 0.0
  %1849 = vmatprep.subr.mxu0 0.0
  %1850 = vmatpush1.msra.mxu0 0.0
  %1851 = vmatprep.subr.mxu0 0.0
  %1852 = vmatpush1.msra.mxu0 0.0
  %1853 = vmatprep.subr.mxu0 0.0
  %1854 = vmatpush1.msra.mxu0 0.0
  %1855 = vmatprep.subr.mxu0 0.0
  %1856 = vmatpush1.msra.mxu0 0.0
  %1857 = vmatprep.subr.mxu0 0.0
  %1858 = vmatpush1.msra.mxu0 0.0
  %1859 = vmatprep.subr.mxu0 0.0
  %1860 = vmatpush1.msra.mxu0 0.0
  %1861 = vmatprep.subr.mxu0 0.0
  %1862 = vmatpush1.msra.mxu0 0.0
  %1863 = vmatprep.subr.mxu0 0.0
  %1864 = vmatpush1.msra.mxu0 0.0
  %1865 = vmatprep.subr.mxu0 0.0
  %1866 = vmatpush1.msra.mxu0 0.0
  %1867 = vmatprep.subr.mxu0 0.0
  %1868 = vmatpush1.msra.mxu0 0.0
  %1869 = vmatprep.subr.mxu0 0.0
  %1870 = vmatpush1.msra.mxu0 0.0
  %1871 = vmatprep.subr.mxu0 0.0
  %1872 = vmatpush1.msra.mxu0 0.0
  %1873 = vmatprep.subr.mxu0 0.0
  %1874 = vmatpush1.msra.mxu0 0.0
  %1875 = vmatprep.mubr.f32.mxu0 0.0
  %1876 = vmatmul.mubr.f32.gmra.mrb[0].mxu0 %v1788
  %v1877 = vpop.f32.mrb[0].mxu0
  %v1878 = vadd.f32 0.0, %v1877
  %v1879 = vpop.f32.mrb[0].mxu0
  %1880 = vmatprep.mubr.f32.mxu0 0.0
  %1881 = vmatmul.mubr.f32.gmra.mrb[0].mxu0 %v1791
  %v1882 = vpop.f32.mrb[0].mxu0
  %v1883 = vadd.f32 0.0, %v1882
  %v1884 = vpop.f32.mrb[0].mxu0
  %1885 = vmatprep.mubr.f32.mxu0 0.0
  %1886 = vmatmul.mubr.f32.gmra.mrb[0].mxu0 %v1794
  %v1887 = vpop.f32.mrb[0].mxu0
  %v1888 = vadd.f32 0.0, %v1887
  %v1889 = vpop.f32.mrb[0].mxu0
  %1890 = vmatprep.mubr.f32.mxu0 0.0
  %1891 = vmatmul.mubr.f32.gmra.mrb[0].mxu0 %v1797
  %v1892 = vpop.f32.mrb[0].mxu0
  %v1893 = vadd.f32 0.0, %v1892
  %v1894 = vpop.f32.mrb[0].mxu0
  %1895 = vmatprep.mubr.f32.mxu0 0.0
  %1896 = vmatmul.mubr.f32.gmra.mrb[0].mxu0 %v1800
  %v1897 = vpop.f32.mrb[0].mxu0
  %v1898 = vadd.f32 0.0, %v1897
  %v1899 = vpop.f32.mrb[0].mxu0
  %1900 = vmatprep.mubr.f32.mxu0 0.0
  %1901 = vmatmul.mubr.f32.gmra.mrb[0].mxu0 %v1803
  %v1902 = vpop.f32.mrb[0].mxu0
  %v1903 = vadd.f32 0.0, %v1902
  %v1904 = vpop.f32.mrb[0].mxu0
  %1905 = vmatprep.mubr.f32.mxu0 0.0
  %1906 = vmatmul.mubr.f32.gmra.mrb[0].mxu0 %v1806
  %v1907 = vpop.f32.mrb[0].mxu0
  %v1908 = vadd.f32 0.0, %v1907
  %v1909 = vpop.f32.mrb[0].mxu0
  %1910 = vmatprep.mubr.f32.mxu0 0.0
  %1911 = vmatmul.mubr.f32.gmra.mrb[0].mxu0 %v1809
  %v1912 = vpop.f32.mrb[0].mxu0
  %v1913 = vadd.f32 0.0, %v1912
  %v1914 = vpop.f32.mrb[0].mxu0
  %1915 = vdwg.mxu0
  %1916 = vst.msk [vmem:[#allocation3 + $0x40] sm:$0xff] %vm594, %v1878
  %1917 = vst.msk [vmem:[#allocation3 + $0x48] sm:$0xff] %vm594, %v1883
  %1918 = vst.msk [vmem:[#allocation3 + $0x50] sm:$0xff] %vm594, %v1888
  %1919 = vst.msk [vmem:[#allocation3 + $0x58] sm:$0xff] %vm594, %v1893
  %1920 = vst.msk [vmem:[#allocation3 + $0x60] sm:$0xff] %vm594, %v1898
  %1921 = vst.msk [vmem:[#allocation3 + $0x68] sm:$0xff] %vm594, %v1903
  %1922 = vst.msk [vmem:[#allocation3 + $0x70] sm:$0xff] %vm594, %v1908
  %1923 = vst.msk [vmem:[#allocation3 + $0x78] sm:$0xff] %vm594, %v1913
  %v1924 = vld [vmem:[#allocation2 + $0x40] sm:$0xff]
  %v1925 = vld [vmem:[#allocation2 + $0x48] sm:$0xff]
  %v1926 = vld [vmem:[#allocation2 + $0x50] sm:$0xff]
  %v1927 = vld [vmem:[#allocation2 + $0x58] sm:$0xff]
  %v1928 = vld [vmem:[#allocation2 + $0x60] sm:$0xff]
  %v1929 = vld [vmem:[#allocation2 + $0x68] sm:$0xff]
  %v1930 = vld [vmem:[#allocation2 + $0x70] sm:$0xff]
  %v1931 = vld [vmem:[#allocation2 + $0x78] sm:$0xff]
  %v1932 = vmul.f32 %v1924, 0.25
  %v1933 = vmul.f32 %v1925, 0.25
  %v1934 = vmul.f32 %v1926, 0.25
  %v1935 = vmul.f32 %v1927, 0.25
  %v1936 = vmul.f32 %v1928, 0.25
  %v1937 = vmul.f32 %v1929, 0.25
  %v1938 = vmul.f32 %v1930, 0.25
  %v1939 = vmul.f32 %v1931, 0.25
  %v1940 = vld [vmem:[%s1006] sm:$0xff]
  %v1941 = vld [vmem:[%s1006 + $0x8] sm:$0xff]
  %v1942 = vld [vmem:[%s1006 + $0x10] sm:$0xff]
  %v1943 = vld [vmem:[%s1006 + $0x18] sm:$0xff]
  %v1944 = vld [vmem:[%s1006 + $0x20] sm:$0xff]
  %v1945 = vld [vmem:[%s1006 + $0x28] sm:$0xff]
  %v1946 = vld [vmem:[%s1006 + $0x30] sm:$0xff]
  %v1947 = vld [vmem:[%s1006 + $0x38] sm:$0xff]
  %1956 = vrot.lane.b32.xlu0 %v1932, 112
  %v1957 = vpop.permute.xlu0 %1956
  %1958 = vrot.lane.b32.xlu0 %v1933, 112
  %v1959 = vpop.permute.xlu0 %1958
  %1960 = vrot.lane.b32.xlu0 %v1934, 112
  %v1961 = vpop.permute.xlu0 %1960
  %1962 = vrot.lane.b32.xlu0 %v1935, 112
  %v1963 = vpop.permute.xlu0 %1962
  %1964 = vrot.lane.b32.xlu0 %v1936, 112
  %v1965 = vpop.permute.xlu0 %1964
  %1966 = vrot.lane.b32.xlu0 %v1937, 112
  %v1967 = vpop.permute.xlu0 %1966
  %1968 = vrot.lane.b32.xlu0 %v1938, 112
  %v1969 = vpop.permute.xlu0 %1968
  %1970 = vrot.lane.b32.xlu0 %v1939, 112
  %v1971 = vpop.permute.xlu0 %1970
  %1980 = vrot.lane.b32.xlu0 %v1924, 80
  %v1981 = vpop.permute.xlu0 %1980
  %1982 = vrot.lane.b32.xlu0 %v1925, 80
  %v1983 = vpop.permute.xlu0 %1982
  %1984 = vrot.lane.b32.xlu0 %v1926, 80
  %v1985 = vpop.permute.xlu0 %1984
  %1986 = vrot.lane.b32.xlu0 %v1927, 80
  %v1987 = vpop.permute.xlu0 %1986
  %1988 = vrot.lane.b32.xlu0 %v1928, 80
  %v1989 = vpop.permute.xlu0 %1988
  %1990 = vrot.lane.b32.xlu0 %v1929, 80
  %v1991 = vpop.permute.xlu0 %1990
  %1992 = vrot.lane.b32.xlu0 %v1930, 80
  %v1993 = vpop.permute.xlu0 %1992
  %1994 = vrot.lane.b32.xlu0 %v1931, 80
  %v1995 = vpop.permute.xlu0 %1994
  %v1996 = vsel %vm594, %v1957, 0
  %v1998 = vsel %vm594, %v1959, 0
  %v2000 = vsel %vm594, %v1961, 0
  %v2002 = vsel %vm594, %v1963, 0
  %v2004 = vsel %vm594, %v1965, 0
  %v2006 = vsel %vm594, %v1967, 0
  %v2008 = vsel %vm594, %v1969, 0
  %v2010 = vsel %vm594, %v1971, 0
  %v2012 = vsel %vm594, %v1981, 0
  %v2014 = vsel %vm594, %v1983, 0
  %v2016 = vsel %vm594, %v1985, 0
  %v2018 = vsel %vm594, %v1987, 0
  %v2020 = vsel %vm594, %v1989, 0
  %v2022 = vsel %vm594, %v1991, 0
  %v2024 = vsel %vm594, %v1993, 0
  %v2026 = vsel %vm594, %v1995, 0
  %2028 = vmatprep.subr.mxu0 0.0
  %2029 = vmatpush1.xpose.msra.mxu0 %v2012
  %2030 = vmatprep.subr.mxu0 0.0
  %2031 = vmatpush1.xpose.msra.mxu0 %v2014
  %2032 = vmatprep.subr.mxu0 0.0
  %2033 = vmatpush1.xpose.msra.mxu0 %v2016
  %2034 = vmatprep.subr.mxu0 0.0
  %2035 = vmatpush1.xpose.msra.mxu0 %v2018
  %2036 = vmatprep.subr.mxu0 0.0
  %2037 = vmatpush1.xpose.msra.mxu0 %v2020
  %2038 = vmatprep.subr.mxu0 0.0
  %2039 = vmatpush1.xpose.msra.mxu0 %v2022
  %2040 = vmatprep.subr.mxu0 0.0
  %2041 = vmatpush1.xpose.msra.mxu0 %v2024
  %2042 = vmatprep.subr.mxu0 0.0
  %2043 = vmatpush1.xpose.msra.mxu0 %v2026
  %2044 = vmatprep.subr.mxu0 0.0
  %2045 = vmatpush1.xpose.msra.mxu0 0.0
  %2046 = vmatprep.subr.mxu0 0.0
  %2047 = vmatpush1.xpose.msra.mxu0 0.0
  %2048 = vmatprep.subr.mxu0 0.0
  %2049 = vmatpush1.xpose.msra.mxu0 0.0
  %2050 = vmatprep.subr.mxu0 0.0
  %2051 = vmatpush1.xpose.msra.mxu0 0.0
  %2052 = vmatprep.subr.mxu0 0.0
  %2053 = vmatpush1.xpose.msra.mxu0 0.0
  %2054 = vmatprep.subr.mxu0 0.0
  %2055 = vmatpush1.xpose.msra.mxu0 0.0
  %2056 = vmatprep.subr.mxu0 0.0
  %2057 = vmatpush1.xpose.msra.mxu0 0.0
  %2058 = vmatprep.subr.mxu0 0.0
  %2059 = vmatpush1.xpose.msra.mxu0 0.0
  %2060 = vmatprep.subr.mxu0 0.0
  %2061 = vmatpush1.xpose.msra.mxu0 0.0
  %2062 = vmatprep.subr.mxu0 0.0
  %2063 = vmatpush1.xpose.msra.mxu0 0.0
  %2064 = vmatprep.subr.mxu0 0.0
  %2065 = vmatpush1.xpose.msra.mxu0 0.0
  %2066 = vmatprep.subr.mxu0 0.0
  %2067 = vmatpush1.xpose.msra.mxu0 0.0
  %2068 = vmatprep.subr.mxu0 0.0
  %2069 = vmatpush1.xpose.msra.mxu0 0.0
  %2070 = vmatprep.subr.mxu0 0.0
  %2071 = vmatpush1.xpose.msra.mxu0 0.0
  %2072 = vmatprep.subr.mxu0 0.0
  %2073 = vmatpush1.xpose.msra.mxu0 0.0
  %2074 = vmatprep.subr.mxu0 0.0
  %2075 = vmatpush1.xpose.msra.mxu0 0.0
  %2076 = vmatprep.subr.mxu0 0.0
  %2077 = vmatpush1.xpose.msra.mxu0 0.0
  %2078 = vmatprep.subr.mxu0 0.0
  %2079 = vmatpush1.xpose.msra.mxu0 0.0
  %2080 = vmatprep.subr.mxu0 0.0
  %2081 = vmatpush1.xpose.msra.mxu0 0.0
  %2082 = vmatprep.subr.mxu0 0.0
  %2083 = vmatpush1.xpose.msra.mxu0 0.0
  %2084 = vmatprep.subr.mxu0 0.0
  %2085 = vmatpush1.xpose.msra.mxu0 0.0
  %2086 = vmatprep.subr.mxu0 0.0
  %2087 = vmatpush1.xpose.msra.mxu0 0.0
  %2088 = vmatprep.subr.mxu0 0.0
  %2089 = vmatpush1.xpose.msra.mxu0 0.0
  %2090 = vmatprep.subr.mxu0 0.0
  %2091 = vmatpush1.xpose.msra.mxu0 0.0
  %2092 = vmatprep.mubr.f32.mxu0 0.0
  %2093 = vmatmul.mubr.f32.gmra.mrb[0].mxu0 %v1996
  %v2094 = vpop.f32.mrb[0].mxu0
  %v2095 = vadd.f32 %v1940, %v2094
  %v2096 = vpop.f32.mrb[0].mxu0
  %2097 = vmatprep.mubr.f32.mxu0 0.0
  %2098 = vmatmul.mubr.f32.gmra.mrb[0].mxu0 %v1998
  %v2099 = vpop.f32.mrb[0].mxu0
  %v2100 = vadd.f32 %v1941, %v2099
  %v2101 = vpop.f32.mrb[0].mxu0
  %2102 = vmatprep.mubr.f32.mxu0 0.0
  %2103 = vmatmul.mubr.f32.gmra.mrb[0].mxu0 %v2000
  %v2104 = vpop.f32.mrb[0].mxu0
  %v2105 = vadd.f32 %v1942, %v2104
  %v2106 = vpop.f32.mrb[0].mxu0
  %2107 = vmatprep.mubr.f32.mxu0 0.0
  %2108 = vmatmul.mubr.f32.gmra.mrb[0].mxu0 %v2002
  %v2109 = vpop.f32.mrb[0].mxu0
  %v2110 = vadd.f32 %v1943, %v2109
  %v2111 = vpop.f32.mrb[0].mxu0
  %2112 = vmatprep.mubr.f32.mxu0 0.0
  %2113 = vmatmul.mubr.f32.gmra.mrb[0].mxu0 %v2004
  %v2114 = vpop.f32.mrb[0].mxu0
  %v2115 = vadd.f32 %v1944, %v2114
  %v2116 = vpop.f32.mrb[0].mxu0
  %2117 = vmatprep.mubr.f32.mxu0 0.0
  %2118 = vmatmul.mubr.f32.gmra.mrb[0].mxu0 %v2006
  %v2119 = vpop.f32.mrb[0].mxu0
  %v2120 = vadd.f32 %v1945, %v2119
  %v2121 = vpop.f32.mrb[0].mxu0
  %2122 = vmatprep.mubr.f32.mxu0 0.0
  %2123 = vmatmul.mubr.f32.gmra.mrb[0].mxu0 %v2008
  %v2124 = vpop.f32.mrb[0].mxu0
  %v2125 = vadd.f32 %v1946, %v2124
  %v2126 = vpop.f32.mrb[0].mxu0
  %2127 = vmatprep.mubr.f32.mxu0 0.0
  %2128 = vmatmul.mubr.f32.gmra.mrb[0].mxu0 %v2010
  %v2129 = vpop.f32.mrb[0].mxu0
  %v2130 = vadd.f32 %v1947, %v2129
  %v2131 = vpop.f32.mrb[0].mxu0
  %2132 = vdwg.mxu0
  %v2133 = vsel %vm740, %v2095, -inf
  %2134 = vmax.xlane.f32.xlu0 %v2133
  %v2135 = vpop.xlane.xlu0 %2134
  %v2136 = vsel %vm740, %v2100, -inf
  %2137 = vmax.xlane.f32.xlu0 %v2136
  %v2138 = vpop.xlane.xlu0 %2137
  %v2139 = vsel %vm740, %v2105, -inf
  %2140 = vmax.xlane.f32.xlu0 %v2139
  %v2141 = vpop.xlane.xlu0 %2140
  %v2142 = vsel %vm740, %v2110, -inf
  %2143 = vmax.xlane.f32.xlu0 %v2142
  %v2144 = vpop.xlane.xlu0 %2143
  %v2145 = vsel %vm740, %v2115, -inf
  %2146 = vmax.xlane.f32.xlu0 %v2145
  %v2147 = vpop.xlane.xlu0 %2146
  %v2148 = vsel %vm740, %v2120, -inf
  %2149 = vmax.xlane.f32.xlu0 %v2148
  %v2150 = vpop.xlane.xlu0 %2149
  %v2151 = vsel %vm740, %v2125, -inf
  %2152 = vmax.xlane.f32.xlu0 %v2151
  %v2153 = vpop.xlane.xlu0 %2152
  %v2154 = vsel %vm740, %v2130, -inf
  %2155 = vmax.xlane.f32.xlu0 %v2154
  %v2156 = vpop.xlane.xlu0 %2155
  %v2157 = vsub.f32 %v2095, %v2135
  %v2158 = vsub.f32 %v2100, %v2138
  %v2159 = vsub.f32 %v2105, %v2141
  %v2160 = vsub.f32 %v2110, %v2144
  %v2161 = vsub.f32 %v2115, %v2147
  %v2162 = vsub.f32 %v2120, %v2150
  %v2163 = vsub.f32 %v2125, %v2153
  %v2164 = vsub.f32 %v2130, %v2156
  %v2165 = vmul.f32 %v2157, 1.442695
  %v2166 = vpow.pop %v2165
  %v2167 = vmul.f32 %v2158, 1.442695
  %v2168 = vpow.pop %v2167
  %v2169 = vmul.f32 %v2159, 1.442695
  %v2170 = vpow.pop %v2169
  %v2171 = vmul.f32 %v2160, 1.442695
  %v2172 = vpow.pop %v2171
  %v2173 = vmul.f32 %v2161, 1.442695
  %v2174 = vpow.pop %v2173
  %v2175 = vmul.f32 %v2162, 1.442695
  %v2176 = vpow.pop %v2175
  %v2177 = vmul.f32 %v2163, 1.442695
  %v2178 = vpow.pop %v2177
  %v2179 = vmul.f32 %v2164, 1.442695
  %v2180 = vpow.pop %v2179
  %v2181 = vsel %vm740, %v2166, 0.0
  %2182 = vadd.xlane.f32.xlu0 %v2181
  %v2183 = vpop.xlane.xlu0 %2182
  %v2184 = vsel %vm740, %v2168, 0.0
  %2185 = vadd.xlane.f32.xlu0 %v2184
  %v2186 = vpop.xlane.xlu0 %2185
  %v2187 = vsel %vm740, %v2170, 0.0
  %2188 = vadd.xlane.f32.xlu0 %v2187
  %v2189 = vpop.xlane.xlu0 %2188
  %v2190 = vsel %vm740, %v2172, 0.0
  %2191 = vadd.xlane.f32.xlu0 %v2190
  %v2192 = vpop.xlane.xlu0 %2191
  %v2193 = vsel %vm740, %v2174, 0.0
  %2194 = vadd.xlane.f32.xlu0 %v2193
  %v2195 = vpop.xlane.xlu0 %2194
  %v2196 = vsel %vm740, %v2176, 0.0
  %2197 = vadd.xlane.f32.xlu0 %v2196
  %v2198 = vpop.xlane.xlu0 %2197
  %v2199 = vsel %vm740, %v2178, 0.0
  %2200 = vadd.xlane.f32.xlu0 %v2199
  %v2201 = vpop.xlane.xlu0 %2200
  %v2202 = vsel %vm740, %v2180, 0.0
  %2203 = vadd.xlane.f32.xlu0 %v2202
  %v2204 = vpop.xlane.xlu0 %2203
  %v2205 = vrcp.pop %v2183
  %v2206 = vrcp.pop %v2186
  %v2207 = vrcp.pop %v2189
  %v2208 = vrcp.pop %v2192
  %v2209 = vrcp.pop %v2195
  %v2210 = vrcp.pop %v2198
  %v2211 = vrcp.pop %v2201
  %v2212 = vrcp.pop %v2204
  %v2213 = vmul.f32 %v2166, %v2205
  %v2214 = vmul.f32 %v2168, %v2206
  %v2215 = vmul.f32 %v2170, %v2207
  %v2216 = vmul.f32 %v2172, %v2208
  %v2217 = vmul.f32 %v2174, %v2209
  %v2218 = vmul.f32 %v2176, %v2210
  %v2219 = vmul.f32 %v2178, %v2211
  %v2220 = vmul.f32 %v2180, %v2212
  %2221 = vrot.lane.b32.xlu0 %v1924, 48
  %v2222 = vpop.permute.xlu0 %2221
  %2223 = vrot.lane.b32.xlu0 %v1925, 48
  %v2224 = vpop.permute.xlu0 %2223
  %2225 = vrot.lane.b32.xlu0 %v1926, 48
  %v2226 = vpop.permute.xlu0 %2225
  %2227 = vrot.lane.b32.xlu0 %v1927, 48
  %v2228 = vpop.permute.xlu0 %2227
  %2229 = vrot.lane.b32.xlu0 %v1928, 48
  %v2230 = vpop.permute.xlu0 %2229
  %2231 = vrot.lane.b32.xlu0 %v1929, 48
  %v2232 = vpop.permute.xlu0 %2231
  %2233 = vrot.lane.b32.xlu0 %v1930, 48
  %v2234 = vpop.permute.xlu0 %2233
  %2235 = vrot.lane.b32.xlu0 %v1931, 48
  %v2236 = vpop.permute.xlu0 %2235
  %v2246 = vsel %vm740, %v2213, 0
  %v2249 = vsel %vm740, %v2214, 0
  %v2252 = vsel %vm740, %v2215, 0
  %v2255 = vsel %vm740, %v2216, 0
  %v2258 = vsel %vm740, %v2217, 0
  %v2261 = vsel %vm740, %v2218, 0
  %v2264 = vsel %vm740, %v2219, 0
  %v2267 = vsel %vm740, %v2220, 0
  %2269 = vmatprep.subr.mxu0 0.0
  %2270 = vmatpush1.msra.mxu0 %v2222
  %2271 = vmatprep.subr.mxu0 0.0
  %2272 = vmatpush1.msra.mxu0 %v2224
  %2273 = vmatprep.subr.mxu0 0.0
  %2274 = vmatpush1.msra.mxu0 %v2226
  %2275 = vmatprep.subr.mxu0 0.0
  %2276 = vmatpush1.msra.mxu0 %v2228
  %2277 = vmatprep.subr.mxu0 0.0
  %2278 = vmatpush1.msra.mxu0 %v2230
  %2279 = vmatprep.subr.mxu0 0.0
  %2280 = vmatpush1.msra.mxu0 %v2232
  %2281 = vmatprep.subr.mxu0 0.0
  %2282 = vmatpush1.msra.mxu0 %v2234
  %2283 = vmatprep.subr.mxu0 0.0
  %2284 = vmatpush1.msra.mxu0 %v2236
  %2285 = vmatprep.subr.mxu0 0.0
  %2286 = vmatpush1.msra.mxu0 0.0
  %2287 = vmatprep.subr.mxu0 0.0
  %2288 = vmatpush1.msra.mxu0 0.0
  %2289 = vmatprep.subr.mxu0 0.0
  %2290 = vmatpush1.msra.mxu0 0.0
  %2291 = vmatprep.subr.mxu0 0.0
  %2292 = vmatpush1.msra.mxu0 0.0
  %2293 = vmatprep.subr.mxu0 0.0
  %2294 = vmatpush1.msra.mxu0 0.0
  %2295 = vmatprep.subr.mxu0 0.0
  %2296 = vmatpush1.msra.mxu0 0.0
  %2297 = vmatprep.subr.mxu0 0.0
  %2298 = vmatpush1.msra.mxu0 0.0
  %2299 = vmatprep.subr.mxu0 0.0
  %2300 = vmatpush1.msra.mxu0 0.0
  %2301 = vmatprep.subr.mxu0 0.0
  %2302 = vmatpush1.msra.mxu0 0.0
  %2303 = vmatprep.subr.mxu0 0.0
  %2304 = vmatpush1.msra.mxu0 0.0
  %2305 = vmatprep.subr.mxu0 0.0
  %2306 = vmatpush1.msra.mxu0 0.0
  %2307 = vmatprep.subr.mxu0 0.0
  %2308 = vmatpush1.msra.mxu0 0.0
  %2309 = vmatprep.subr.mxu0 0.0
  %2310 = vmatpush1.msra.mxu0 0.0
  %2311 = vmatprep.subr.mxu0 0.0
  %2312 = vmatpush1.msra.mxu0 0.0
  %2313 = vmatprep.subr.mxu0 0.0
  %2314 = vmatpush1.msra.mxu0 0.0
  %2315 = vmatprep.subr.mxu0 0.0
  %2316 = vmatpush1.msra.mxu0 0.0
  %2317 = vmatprep.subr.mxu0 0.0
  %2318 = vmatpush1.msra.mxu0 0.0
  %2319 = vmatprep.subr.mxu0 0.0
  %2320 = vmatpush1.msra.mxu0 0.0
  %2321 = vmatprep.subr.mxu0 0.0
  %2322 = vmatpush1.msra.mxu0 0.0
  %2323 = vmatprep.subr.mxu0 0.0
  %2324 = vmatpush1.msra.mxu0 0.0
  %2325 = vmatprep.subr.mxu0 0.0
  %2326 = vmatpush1.msra.mxu0 0.0
  %2327 = vmatprep.subr.mxu0 0.0
  %2328 = vmatpush1.msra.mxu0 0.0
  %2329 = vmatprep.subr.mxu0 0.0
  %2330 = vmatpush1.msra.mxu0 0.0
  %2331 = vmatprep.subr.mxu0 0.0
  %2332 = vmatpush1.msra.mxu0 0.0
  %2333 = vmatprep.mubr.f32.mxu0 0.0
  %2334 = vmatmul.mubr.f32.gmra.mrb[0].mxu0 %v2246
  %v2335 = vpop.f32.mrb[0].mxu0
  %v2336 = vadd.f32 0.0, %v2335
  %v2337 = vpop.f32.mrb[0].mxu0
  %2338 = vmatprep.mubr.f32.mxu0 0.0
  %2339 = vmatmul.mubr.f32.gmra.mrb[0].mxu0 %v2249
  %v2340 = vpop.f32.mrb[0].mxu0
  %v2341 = vadd.f32 0.0, %v2340
  %v2342 = vpop.f32.mrb[0].mxu0
  %2343 = vmatprep.mubr.f32.mxu0 0.0
  %2344 = vmatmul.mubr.f32.gmra.mrb[0].mxu0 %v2252
  %v2345 = vpop.f32.mrb[0].mxu0
  %v2346 = vadd.f32 0.0, %v2345
  %v2347 = vpop.f32.mrb[0].mxu0
  %2348 = vmatprep.mubr.f32.mxu0 0.0
  %2349 = vmatmul.mubr.f32.gmra.mrb[0].mxu0 %v2255
  %v2350 = vpop.f32.mrb[0].mxu0
  %v2351 = vadd.f32 0.0, %v2350
  %v2352 = vpop.f32.mrb[0].mxu0
  %2353 = vmatprep.mubr.f32.mxu0 0.0
  %2354 = vmatmul.mubr.f32.gmra.mrb[0].mxu0 %v2258
  %v2355 = vpop.f32.mrb[0].mxu0
  %v2356 = vadd.f32 0.0, %v2355
  %v2357 = vpop.f32.mrb[0].mxu0
  %2358 = vmatprep.mubr.f32.mxu0 0.0
  %2359 = vmatmul.mubr.f32.gmra.mrb[0].mxu0 %v2261
  %v2360 = vpop.f32.mrb[0].mxu0
  %v2361 = vadd.f32 0.0, %v2360
  %v2362 = vpop.f32.mrb[0].mxu0
  %2363 = vmatprep.mubr.f32.mxu0 0.0
  %2364 = vmatmul.mubr.f32.gmra.mrb[0].mxu0 %v2264
  %v2365 = vpop.f32.mrb[0].mxu0
  %v2366 = vadd.f32 0.0, %v2365
  %v2367 = vpop.f32.mrb[0].mxu0
  %2368 = vmatprep.mubr.f32.mxu0 0.0
  %2369 = vmatmul.mubr.f32.gmra.mrb[0].mxu0 %v2267
  %v2370 = vpop.f32.mrb[0].mxu0
  %v2371 = vadd.f32 0.0, %v2370
  %v2372 = vpop.f32.mrb[0].mxu0
  %2373 = vdwg.mxu0
  %2382 = vrot.lane.b32.xlu0 %v2336, 16
  %v2383 = vpop.permute.xlu0 %2382
  %2384 = vrot.lane.b32.xlu0 %v2341, 16
  %v2385 = vpop.permute.xlu0 %2384
  %2386 = vrot.lane.b32.xlu0 %v2346, 16
  %v2387 = vpop.permute.xlu0 %2386
  %2388 = vrot.lane.b32.xlu0 %v2351, 16
  %v2389 = vpop.permute.xlu0 %2388
  %2390 = vrot.lane.b32.xlu0 %v2356, 16
  %v2391 = vpop.permute.xlu0 %2390
  %2392 = vrot.lane.b32.xlu0 %v2361, 16
  %v2393 = vpop.permute.xlu0 %2392
  %2394 = vrot.lane.b32.xlu0 %v2366, 16
  %v2395 = vpop.permute.xlu0 %2394
  %2396 = vrot.lane.b32.xlu0 %v2371, 16
  %v2397 = vpop.permute.xlu0 %2396
  %2406 = vst.msk [vmem:[#allocation3 + $0x40] sm:$0xff] %vm1473, %v2383
  %2407 = vst.msk [vmem:[#allocation3 + $0x48] sm:$0xff] %vm1473, %v2385
  %2408 = vst.msk [vmem:[#allocation3 + $0x50] sm:$0xff] %vm1473, %v2387
  %2409 = vst.msk [vmem:[#allocation3 + $0x58] sm:$0xff] %vm1473, %v2389
  %2410 = vst.msk [vmem:[#allocation3 + $0x60] sm:$0xff] %vm1473, %v2391
  %2411 = vst.msk [vmem:[#allocation3 + $0x68] sm:$0xff] %vm1473, %v2393
  %2412 = vst.msk [vmem:[#allocation3 + $0x70] sm:$0xff] %vm1473, %v2395
  %2413 = vst.msk [vmem:[#allocation3 + $0x78] sm:$0xff] %vm1473, %v2397
  %v2414 = vld [vmem:[#allocation3] sm:$0xff]
  %v2415 = vld [vmem:[#allocation3 + $0x8] sm:$0xff]
  %v2416 = vld [vmem:[#allocation3 + $0x10] sm:$0xff]
  %v2417 = vld [vmem:[#allocation3 + $0x18] sm:$0xff]
  %v2418 = vld [vmem:[#allocation3 + $0x20] sm:$0xff]
  %v2419 = vld [vmem:[#allocation3 + $0x28] sm:$0xff]
  %v2420 = vld [vmem:[#allocation3 + $0x30] sm:$0xff]
  %v2421 = vld [vmem:[#allocation3 + $0x38] sm:$0xff]
  %v2422 = vld [vmem:[#allocation3 + $0x40] sm:$0xff]
  %v2423 = vld [vmem:[#allocation3 + $0x48] sm:$0xff]
  %v2424 = vld [vmem:[#allocation3 + $0x50] sm:$0xff]
  %v2425 = vld [vmem:[#allocation3 + $0x58] sm:$0xff]
  %v2426 = vld [vmem:[#allocation3 + $0x60] sm:$0xff]
  %v2427 = vld [vmem:[#allocation3 + $0x68] sm:$0xff]
  %v2428 = vld [vmem:[#allocation3 + $0x70] sm:$0xff]
  %v2429 = vld [vmem:[#allocation3 + $0x78] sm:$0xff]
  %v2430 = vld [vmem:[%s6] sm:$0xff]
  %v2431 = vld [vmem:[%s6 + $0x8] sm:$0xff]
  %v2432 = vld [vmem:[%s6 + $0x10] sm:$0xff]
  %v2433 = vld [vmem:[%s6 + $0x18] sm:$0xff]
  %v2434 = vld [vmem:[%s7] sm:$0x1]
  %v2436 = vlaneseq
  %v2437 = vshrl.u32 %v2436, 7
  %v2438 = vsub.s32 0, %v2437
  %v2439 = vrot.slane %v2434, %v2438
  %v2442 = vsel %vm69, %v2414, 0
  %v2445 = vsel %vm69, %v2415, 0
  %v2448 = vsel %vm69, %v2416, 0
  %v2451 = vsel %vm69, %v2417, 0
  %v2454 = vsel %vm69, %v2418, 0
  %v2457 = vsel %vm69, %v2419, 0
  %v2460 = vsel %vm69, %v2420, 0
  %v2463 = vsel %vm69, %v2421, 0
  %v2466 = vsel %vm69, %v2422, 0
  %v2469 = vsel %vm69, %v2423, 0
  %v2472 = vsel %vm69, %v2424, 0
  %v2475 = vsel %vm69, %v2425, 0
  %v2478 = vsel %vm69, %v2426, 0
  %v2481 = vsel %vm69, %v2427, 0
  %v2484 = vsel %vm69, %v2428, 0
  %v2487 = vsel %vm69, %v2429, 0
  %2489 = vmatprep.subr.mxu0 0.0
  %2490 = vmatpush1.msra.mxu0 %v2430
  %2491 = vmatprep.subr.mxu0 0.0
  %2492 = vmatpush1.msra.mxu0 %v2431
  %2493 = vmatprep.subr.mxu0 0.0
  %2494 = vmatpush1.msra.mxu0 %v2432
  %2495 = vmatprep.subr.mxu0 0.0
  %2496 = vmatpush1.msra.mxu0 %v2433
  %2497 = vmatprep.subr.mxu0 0.0
  %2498 = vmatpush1.msra.mxu0 0.0
  %2499 = vmatprep.subr.mxu0 0.0
  %2500 = vmatpush1.msra.mxu0 0.0
  %2501 = vmatprep.subr.mxu0 0.0
  %2502 = vmatpush1.msra.mxu0 0.0
  %2503 = vmatprep.subr.mxu0 0.0
  %2504 = vmatpush1.msra.mxu0 0.0
  %2505 = vmatprep.subr.mxu0 0.0
  %2506 = vmatpush1.msra.mxu0 0.0
  %2507 = vmatprep.subr.mxu0 0.0
  %2508 = vmatpush1.msra.mxu0 0.0
  %2509 = vmatprep.subr.mxu0 0.0
  %2510 = vmatpush1.msra.mxu0 0.0
  %2511 = vmatprep.subr.mxu0 0.0
  %2512 = vmatpush1.msra.mxu0 0.0
  %2513 = vmatprep.subr.mxu0 0.0
  %2514 = vmatpush1.msra.mxu0 0.0
  %2515 = vmatprep.subr.mxu0 0.0
  %2516 = vmatpush1.msra.mxu0 0.0
  %2517 = vmatprep.subr.mxu0 0.0
  %2518 = vmatpush1.msra.mxu0 0.0
  %2519 = vmatprep.subr.mxu0 0.0
  %2520 = vmatpush1.msra.mxu0 0.0
  %2521 = vmatprep.subr.mxu0 0.0
  %2522 = vmatpush1.msra.mxu0 0.0
  %2523 = vmatprep.subr.mxu0 0.0
  %2524 = vmatpush1.msra.mxu0 0.0
  %2525 = vmatprep.subr.mxu0 0.0
  %2526 = vmatpush1.msra.mxu0 0.0
  %2527 = vmatprep.subr.mxu0 0.0
  %2528 = vmatpush1.msra.mxu0 0.0
  %2529 = vmatprep.subr.mxu0 0.0
  %2530 = vmatpush1.msra.mxu0 0.0
  %2531 = vmatprep.subr.mxu0 0.0
  %2532 = vmatpush1.msra.mxu0 0.0
  %2533 = vmatprep.subr.mxu0 0.0
  %2534 = vmatpush1.msra.mxu0 0.0
  %2535 = vmatprep.subr.mxu0 0.0
  %2536 = vmatpush1.msra.mxu0 0.0
  %2537 = vmatprep.subr.mxu0 0.0
  %2538 = vmatpush1.msra.mxu0 0.0
  %2539 = vmatprep.subr.mxu0 0.0
  %2540 = vmatpush1.msra.mxu0 0.0
  %2541 = vmatprep.subr.mxu0 0.0
  %2542 = vmatpush1.msra.mxu0 0.0
  %2543 = vmatprep.subr.mxu0 0.0
  %2544 = vmatpush1.msra.mxu0 0.0
  %2545 = vmatprep.subr.mxu0 0.0
  %2546 = vmatpush1.msra.mxu0 0.0
  %2547 = vmatprep.subr.mxu0 0.0
  %2548 = vmatpush1.msra.mxu0 0.0
  %2549 = vmatprep.subr.mxu0 0.0
  %2550 = vmatpush1.msra.mxu0 0.0
  %2551 = vmatprep.subr.mxu0 0.0
  %2552 = vmatpush1.msra.mxu0 0.0
  %2553 = vmatprep.mubr.f32.mxu0 0.0
  %2554 = vmatmul.mubr.f32.gmra.mrb[0].mxu0 %v2442
  %v2555 = vpop.f32.mrb[0].mxu0
  %v2556 = vadd.f32 %v2439, %v2555
  %v2557 = vpop.f32.mrb[0].mxu0
  %2558 = vmatprep.mubr.f32.mxu0 0.0
  %2559 = vmatmul.mubr.f32.gmra.mrb[0].mxu0 %v2445
  %v2560 = vpop.f32.mrb[0].mxu0
  %v2561 = vadd.f32 %v2439, %v2560
  %v2562 = vpop.f32.mrb[0].mxu0
  %2563 = vmatprep.mubr.f32.mxu0 0.0
  %2564 = vmatmul.mubr.f32.gmra.mrb[0].mxu0 %v2448
  %v2565 = vpop.f32.mrb[0].mxu0
  %v2566 = vadd.f32 %v2439, %v2565
  %v2567 = vpop.f32.mrb[0].mxu0
  %2568 = vmatprep.mubr.f32.mxu0 0.0
  %2569 = vmatmul.mubr.f32.gmra.mrb[0].mxu0 %v2451
  %v2570 = vpop.f32.mrb[0].mxu0
  %v2571 = vadd.f32 %v2439, %v2570
  %v2572 = vpop.f32.mrb[0].mxu0
  %2573 = vmatprep.mubr.f32.mxu0 0.0
  %2574 = vmatmul.mubr.f32.gmra.mrb[0].mxu0 %v2454
  %v2575 = vpop.f32.mrb[0].mxu0
  %v2576 = vadd.f32 %v2439, %v2575
  %v2577 = vpop.f32.mrb[0].mxu0
  %2578 = vmatprep.mubr.f32.mxu0 0.0
  %2579 = vmatmul.mubr.f32.gmra.mrb[0].mxu0 %v2457
  %v2580 = vpop.f32.mrb[0].mxu0
  %v2581 = vadd.f32 %v2439, %v2580
  %v2582 = vpop.f32.mrb[0].mxu0
  %2583 = vmatprep.mubr.f32.mxu0 0.0
  %2584 = vmatmul.mubr.f32.gmra.mrb[0].mxu0 %v2460
  %v2585 = vpop.f32.mrb[0].mxu0
  %v2586 = vadd.f32 %v2439, %v2585
  %v2587 = vpop.f32.mrb[0].mxu0
  %2588 = vmatprep.mubr.f32.mxu0 0.0
  %2589 = vmatmul.mubr.f32.gmra.mrb[0].mxu0 %v2463
  %v2590 = vpop.f32.mrb[0].mxu0
  %v2591 = vadd.f32 %v2439, %v2590
  %v2592 = vpop.f32.mrb[0].mxu0
  %2593 = vmatprep.mubr.f32.mxu0 0.0
  %2594 = vmatmul.mubr.f32.gmra.mrb[0].mxu0 %v2466
  %v2595 = vpop.f32.mrb[0].mxu0
  %v2596 = vadd.f32 %v2439, %v2595
  %v2597 = vpop.f32.mrb[0].mxu0
  %2598 = vmatprep.mubr.f32.mxu0 0.0
  %2599 = vmatmul.mubr.f32.gmra.mrb[0].mxu0 %v2469
  %v2600 = vpop.f32.mrb[0].mxu0
  %v2601 = vadd.f32 %v2439, %v2600
  %v2602 = vpop.f32.mrb[0].mxu0
  %2603 = vmatprep.mubr.f32.mxu0 0.0
  %2604 = vmatmul.mubr.f32.gmra.mrb[0].mxu0 %v2472
  %v2605 = vpop.f32.mrb[0].mxu0
  %v2606 = vadd.f32 %v2439, %v2605
  %v2607 = vpop.f32.mrb[0].mxu0
  %2608 = vmatprep.mubr.f32.mxu0 0.0
  %2609 = vmatmul.mubr.f32.gmra.mrb[0].mxu0 %v2475
  %v2610 = vpop.f32.mrb[0].mxu0
  %v2611 = vadd.f32 %v2439, %v2610
  %v2612 = vpop.f32.mrb[0].mxu0
  %2613 = vmatprep.mubr.f32.mxu0 0.0
  %2614 = vmatmul.mubr.f32.gmra.mrb[0].mxu0 %v2478
  %v2615 = vpop.f32.mrb[0].mxu0
  %v2616 = vadd.f32 %v2439, %v2615
  %v2617 = vpop.f32.mrb[0].mxu0
  %2618 = vmatprep.mubr.f32.mxu0 0.0
  %2619 = vmatmul.mubr.f32.gmra.mrb[0].mxu0 %v2481
  %v2620 = vpop.f32.mrb[0].mxu0
  %v2621 = vadd.f32 %v2439, %v2620
  %v2622 = vpop.f32.mrb[0].mxu0
  %2623 = vmatprep.mubr.f32.mxu0 0.0
  %2624 = vmatmul.mubr.f32.gmra.mrb[0].mxu0 %v2484
  %v2625 = vpop.f32.mrb[0].mxu0
  %v2626 = vadd.f32 %v2439, %v2625
  %v2627 = vpop.f32.mrb[0].mxu0
  %2628 = vmatprep.mubr.f32.mxu0 0.0
  %2629 = vmatmul.mubr.f32.gmra.mrb[0].mxu0 %v2487
  %v2630 = vpop.f32.mrb[0].mxu0
  %v2631 = vadd.f32 %v2439, %v2630
  %v2632 = vpop.f32.mrb[0].mxu0
  %2633 = vdwg.mxu0
  %v2634 = vld [vmem:[%s8] sm:$0x1]
  %v2636 = vlaneseq
  %v2637 = vshrl.u32 %v2636, 7
  %v2638 = vsub.s32 0, %v2637
  %v2639 = vrot.slane %v2634, %v2638
  %v2641 = vmul.f32 %v2639, %v2556
  %v2642 = vmul.f32 %v2639, %v2561
  %v2643 = vmul.f32 %v2639, %v2566
  %v2644 = vmul.f32 %v2639, %v2571
  %v2645 = vmul.f32 %v2639, %v2576
  %v2646 = vmul.f32 %v2639, %v2581
  %v2647 = vmul.f32 %v2639, %v2586
  %v2648 = vmul.f32 %v2639, %v2591
  %v2649 = vmul.f32 %v2639, %v2596
  %v2650 = vmul.f32 %v2639, %v2601
  %v2651 = vmul.f32 %v2639, %v2606
  %v2652 = vmul.f32 %v2639, %v2611
  %v2653 = vmul.f32 %v2639, %v2616
  %v2654 = vmul.f32 %v2639, %v2621
  %v2655 = vmul.f32 %v2639, %v2626
  %v2656 = vmul.f32 %v2639, %v2631
  %v2657 = vadd.f32 %v53, %v2641
  %v2658 = vadd.f32 %v54, %v2642
  %v2659 = vadd.f32 %v55, %v2643
  %v2660 = vadd.f32 %v56, %v2644
  %v2661 = vadd.f32 %v57, %v2645
  %v2662 = vadd.f32 %v58, %v2646
  %v2663 = vadd.f32 %v59, %v2647
  %v2664 = vadd.f32 %v60, %v2648
  %v2665 = vadd.f32 %v61, %v2649
  %v2666 = vadd.f32 %v62, %v2650
  %v2667 = vadd.f32 %v63, %v2651
  %v2668 = vadd.f32 %v64, %v2652
  %v2669 = vadd.f32 %v65, %v2653
  %v2670 = vadd.f32 %v66, %v2654
  %v2671 = vadd.f32 %v67, %v2655
  %v2672 = vadd.f32 %v68, %v2656
  %v2673 = vsel %vm69, %v2657, 0.0
  %2674 = vadd.xlane.f32.xlu0 %v2673
  %v2675 = vpop.xlane.xlu0 %2674
  %v2676 = vsel %vm69, %v2658, 0.0
  %2677 = vadd.xlane.f32.xlu0 %v2676
  %v2678 = vpop.xlane.xlu0 %2677
  %v2679 = vsel %vm69, %v2659, 0.0
  %2680 = vadd.xlane.f32.xlu0 %v2679
  %v2681 = vpop.xlane.xlu0 %2680
  %v2682 = vsel %vm69, %v2660, 0.0
  %2683 = vadd.xlane.f32.xlu0 %v2682
  %v2684 = vpop.xlane.xlu0 %2683
  %v2685 = vsel %vm69, %v2661, 0.0
  %2686 = vadd.xlane.f32.xlu0 %v2685
  %v2687 = vpop.xlane.xlu0 %2686
  %v2688 = vsel %vm69, %v2662, 0.0
  %2689 = vadd.xlane.f32.xlu0 %v2688
  %v2690 = vpop.xlane.xlu0 %2689
  %v2691 = vsel %vm69, %v2663, 0.0
  %2692 = vadd.xlane.f32.xlu0 %v2691
  %v2693 = vpop.xlane.xlu0 %2692
  %v2694 = vsel %vm69, %v2664, 0.0
  %2695 = vadd.xlane.f32.xlu0 %v2694
  %v2696 = vpop.xlane.xlu0 %2695
  %v2697 = vsel %vm69, %v2665, 0.0
  %2698 = vadd.xlane.f32.xlu0 %v2697
  %v2699 = vpop.xlane.xlu0 %2698
  %v2700 = vsel %vm69, %v2666, 0.0
  %2701 = vadd.xlane.f32.xlu0 %v2700
  %v2702 = vpop.xlane.xlu0 %2701
  %v2703 = vsel %vm69, %v2667, 0.0
  %2704 = vadd.xlane.f32.xlu0 %v2703
  %v2705 = vpop.xlane.xlu0 %2704
  %v2706 = vsel %vm69, %v2668, 0.0
  %2707 = vadd.xlane.f32.xlu0 %v2706
  %v2708 = vpop.xlane.xlu0 %2707
  %v2709 = vsel %vm69, %v2669, 0.0
  %2710 = vadd.xlane.f32.xlu0 %v2709
  %v2711 = vpop.xlane.xlu0 %2710
  %v2712 = vsel %vm69, %v2670, 0.0
  %2713 = vadd.xlane.f32.xlu0 %v2712
  %v2714 = vpop.xlane.xlu0 %2713
  %v2715 = vsel %vm69, %v2671, 0.0
  %2716 = vadd.xlane.f32.xlu0 %v2715
  %v2717 = vpop.xlane.xlu0 %2716
  %v2718 = vsel %vm69, %v2672, 0.0
  %2719 = vadd.xlane.f32.xlu0 %v2718
  %v2720 = vpop.xlane.xlu0 %2719
  %v2721 = vmul.f32 %v2675, %v118
  %v2722 = vmul.f32 %v2678, %v118
  %v2723 = vmul.f32 %v2681, %v118
  %v2724 = vmul.f32 %v2684, %v118
  %v2725 = vmul.f32 %v2687, %v118
  %v2726 = vmul.f32 %v2690, %v118
  %v2727 = vmul.f32 %v2693, %v118
  %v2728 = vmul.f32 %v2696, %v118
  %v2729 = vmul.f32 %v2699, %v118
  %v2730 = vmul.f32 %v2702, %v118
  %v2731 = vmul.f32 %v2705, %v118
  %v2732 = vmul.f32 %v2708, %v118
  %v2733 = vmul.f32 %v2711, %v118
  %v2734 = vmul.f32 %v2714, %v118
  %v2735 = vmul.f32 %v2717, %v118
  %v2736 = vmul.f32 %v2720, %v118
  %v2737 = vsub.f32 %v2657, %v2721
  %v2738 = vsub.f32 %v2658, %v2722
  %v2739 = vsub.f32 %v2659, %v2723
  %v2740 = vsub.f32 %v2660, %v2724
  %v2741 = vsub.f32 %v2661, %v2725
  %v2742 = vsub.f32 %v2662, %v2726
  %v2743 = vsub.f32 %v2663, %v2727
  %v2744 = vsub.f32 %v2664, %v2728
  %v2745 = vsub.f32 %v2665, %v2729
  %v2746 = vsub.f32 %v2666, %v2730
  %v2747 = vsub.f32 %v2667, %v2731
  %v2748 = vsub.f32 %v2668, %v2732
  %v2749 = vsub.f32 %v2669, %v2733
  %v2750 = vsub.f32 %v2670, %v2734
  %v2751 = vsub.f32 %v2671, %v2735
  %v2752 = vsub.f32 %v2672, %v2736
  %v2753 = vmul.f32 %v2737, %v2737
  %v2754 = vmul.f32 %v2738, %v2738
  %v2755 = vmul.f32 %v2739, %v2739
  %v2756 = vmul.f32 %v2740, %v2740
  %v2757 = vmul.f32 %v2741, %v2741
  %v2758 = vmul.f32 %v2742, %v2742
  %v2759 = vmul.f32 %v2743, %v2743
  %v2760 = vmul.f32 %v2744, %v2744
  %v2761 = vmul.f32 %v2745, %v2745
  %v2762 = vmul.f32 %v2746, %v2746
  %v2763 = vmul.f32 %v2747, %v2747
  %v2764 = vmul.f32 %v2748, %v2748
  %v2765 = vmul.f32 %v2749, %v2749
  %v2766 = vmul.f32 %v2750, %v2750
  %v2767 = vmul.f32 %v2751, %v2751
  %v2768 = vmul.f32 %v2752, %v2752
  %v2769 = vsel %vm69, %v2753, 0.0
  %2770 = vadd.xlane.f32.xlu0 %v2769
  %v2771 = vpop.xlane.xlu0 %2770
  %v2772 = vsel %vm69, %v2754, 0.0
  %2773 = vadd.xlane.f32.xlu0 %v2772
  %v2774 = vpop.xlane.xlu0 %2773
  %v2775 = vsel %vm69, %v2755, 0.0
  %2776 = vadd.xlane.f32.xlu0 %v2775
  %v2777 = vpop.xlane.xlu0 %2776
  %v2778 = vsel %vm69, %v2756, 0.0
  %2779 = vadd.xlane.f32.xlu0 %v2778
  %v2780 = vpop.xlane.xlu0 %2779
  %v2781 = vsel %vm69, %v2757, 0.0
  %2782 = vadd.xlane.f32.xlu0 %v2781
  %v2783 = vpop.xlane.xlu0 %2782
  %v2784 = vsel %vm69, %v2758, 0.0
  %2785 = vadd.xlane.f32.xlu0 %v2784
  %v2786 = vpop.xlane.xlu0 %2785
  %v2787 = vsel %vm69, %v2759, 0.0
  %2788 = vadd.xlane.f32.xlu0 %v2787
  %v2789 = vpop.xlane.xlu0 %2788
  %v2790 = vsel %vm69, %v2760, 0.0
  %2791 = vadd.xlane.f32.xlu0 %v2790
  %v2792 = vpop.xlane.xlu0 %2791
  %v2793 = vsel %vm69, %v2761, 0.0
  %2794 = vadd.xlane.f32.xlu0 %v2793
  %v2795 = vpop.xlane.xlu0 %2794
  %v2796 = vsel %vm69, %v2762, 0.0
  %2797 = vadd.xlane.f32.xlu0 %v2796
  %v2798 = vpop.xlane.xlu0 %2797
  %v2799 = vsel %vm69, %v2763, 0.0
  %2800 = vadd.xlane.f32.xlu0 %v2799
  %v2801 = vpop.xlane.xlu0 %2800
  %v2802 = vsel %vm69, %v2764, 0.0
  %2803 = vadd.xlane.f32.xlu0 %v2802
  %v2804 = vpop.xlane.xlu0 %2803
  %v2805 = vsel %vm69, %v2765, 0.0
  %2806 = vadd.xlane.f32.xlu0 %v2805
  %v2807 = vpop.xlane.xlu0 %2806
  %v2808 = vsel %vm69, %v2766, 0.0
  %2809 = vadd.xlane.f32.xlu0 %v2808
  %v2810 = vpop.xlane.xlu0 %2809
  %v2811 = vsel %vm69, %v2767, 0.0
  %2812 = vadd.xlane.f32.xlu0 %v2811
  %v2813 = vpop.xlane.xlu0 %2812
  %v2814 = vsel %vm69, %v2768, 0.0
  %2815 = vadd.xlane.f32.xlu0 %v2814
  %v2816 = vpop.xlane.xlu0 %2815
  %v2817 = vmul.f32 %v2771, %v118
  %v2818 = vmul.f32 %v2774, %v118
  %v2819 = vmul.f32 %v2777, %v118
  %v2820 = vmul.f32 %v2780, %v118
  %v2821 = vmul.f32 %v2783, %v118
  %v2822 = vmul.f32 %v2786, %v118
  %v2823 = vmul.f32 %v2789, %v118
  %v2824 = vmul.f32 %v2792, %v118
  %v2825 = vmul.f32 %v2795, %v118
  %v2826 = vmul.f32 %v2798, %v118
  %v2827 = vmul.f32 %v2801, %v118
  %v2828 = vmul.f32 %v2804, %v118
  %v2829 = vmul.f32 %v2807, %v118
  %v2830 = vmul.f32 %v2810, %v118
  %v2831 = vmul.f32 %v2813, %v118
  %v2832 = vmul.f32 %v2816, %v118
  %v2833 = vadd.f32 %v2817, 1e-05
  %v2834 = vadd.f32 %v2818, 1e-05
  %v2835 = vadd.f32 %v2819, 1e-05
  %v2836 = vadd.f32 %v2820, 1e-05
  %v2837 = vadd.f32 %v2821, 1e-05
  %v2838 = vadd.f32 %v2822, 1e-05
  %v2839 = vadd.f32 %v2823, 1e-05
  %v2840 = vadd.f32 %v2824, 1e-05
  %v2841 = vadd.f32 %v2825, 1e-05
  %v2842 = vadd.f32 %v2826, 1e-05
  %v2843 = vadd.f32 %v2827, 1e-05
  %v2844 = vadd.f32 %v2828, 1e-05
  %v2845 = vadd.f32 %v2829, 1e-05
  %v2846 = vadd.f32 %v2830, 1e-05
  %v2847 = vadd.f32 %v2831, 1e-05
  %v2848 = vadd.f32 %v2832, 1e-05
  %v2849 = vrsqrt.pop %v2833
  %v2850 = vrsqrt.pop %v2834
  %v2851 = vrsqrt.pop %v2835
  %v2852 = vrsqrt.pop %v2836
  %v2853 = vrsqrt.pop %v2837
  %v2854 = vrsqrt.pop %v2838
  %v2855 = vrsqrt.pop %v2839
  %v2856 = vrsqrt.pop %v2840
  %v2857 = vrsqrt.pop %v2841
  %v2858 = vrsqrt.pop %v2842
  %v2859 = vrsqrt.pop %v2843
  %v2860 = vrsqrt.pop %v2844
  %v2861 = vrsqrt.pop %v2845
  %v2862 = vrsqrt.pop %v2846
  %v2863 = vrsqrt.pop %v2847
  %v2864 = vrsqrt.pop %v2848
  %v2865 = vmul.f32 %v2737, %v2849
  %v2866 = vmul.f32 %v2738, %v2850
  %v2867 = vmul.f32 %v2739, %v2851
  %v2868 = vmul.f32 %v2740, %v2852
  %v2869 = vmul.f32 %v2741, %v2853
  %v2870 = vmul.f32 %v2742, %v2854
  %v2871 = vmul.f32 %v2743, %v2855
  %v2872 = vmul.f32 %v2744, %v2856
  %v2873 = vmul.f32 %v2745, %v2857
  %v2874 = vmul.f32 %v2746, %v2858
  %v2875 = vmul.f32 %v2747, %v2859
  %v2876 = vmul.f32 %v2748, %v2860
  %v2877 = vmul.f32 %v2749, %v2861
  %v2878 = vmul.f32 %v2750, %v2862
  %v2879 = vmul.f32 %v2751, %v2863
  %v2880 = vmul.f32 %v2752, %v2864
  %v2881 = vld [vmem:[%s10] sm:$0x1]
  %v2883 = vlaneseq
  %v2884 = vshrl.u32 %v2883, 7
  %v2885 = vsub.s32 0, %v2884
  %v2886 = vrot.slane %v2881, %v2885
  %v2888 = vmul.f32 %v2865, %v2886
  %v2889 = vmul.f32 %v2866, %v2886
  %v2890 = vmul.f32 %v2867, %v2886
  %v2891 = vmul.f32 %v2868, %v2886
  %v2892 = vmul.f32 %v2869, %v2886
  %v2893 = vmul.f32 %v2870, %v2886
  %v2894 = vmul.f32 %v2871, %v2886
  %v2895 = vmul.f32 %v2872, %v2886
  %v2896 = vmul.f32 %v2873, %v2886
  %v2897 = vmul.f32 %v2874, %v2886
  %v2898 = vmul.f32 %v2875, %v2886
  %v2899 = vmul.f32 %v2876, %v2886
  %v2900 = vmul.f32 %v2877, %v2886
  %v2901 = vmul.f32 %v2878, %v2886
  %v2902 = vmul.f32 %v2879, %v2886
  %v2903 = vmul.f32 %v2880, %v2886
  %v2904 = vld [vmem:[%s11] sm:$0x1]
  %v2906 = vlaneseq
  %v2907 = vshrl.u32 %v2906, 7
  %v2908 = vsub.s32 0, %v2907
  %v2909 = vrot.slane %v2904, %v2908
  %v2911 = vadd.f32 %v2888, %v2909
  %v2912 = vadd.f32 %v2889, %v2909
  %v2913 = vadd.f32 %v2890, %v2909
  %v2914 = vadd.f32 %v2891, %v2909
  %v2915 = vadd.f32 %v2892, %v2909
  %v2916 = vadd.f32 %v2893, %v2909
  %v2917 = vadd.f32 %v2894, %v2909
  %v2918 = vadd.f32 %v2895, %v2909
  %v2919 = vadd.f32 %v2896, %v2909
  %v2920 = vadd.f32 %v2897, %v2909
  %v2921 = vadd.f32 %v2898, %v2909
  %v2922 = vadd.f32 %v2899, %v2909
  %v2923 = vadd.f32 %v2900, %v2909
  %v2924 = vadd.f32 %v2901, %v2909
  %v2925 = vadd.f32 %v2902, %v2909
  %v2926 = vadd.f32 %v2903, %v2909
  %v2927 = vld [vmem:[%s12] sm:$0xff]
  %v2928 = vld [vmem:[%s12 + $0x8] sm:$0xff]
  %v2929 = vld [vmem:[%s12 + $0x10] sm:$0xff]
  %v2930 = vld [vmem:[%s12 + $0x18] sm:$0xff]
  %v2931 = vld [vmem:[%s13] sm:$0x1]
  %v2933 = vlaneseq
  %v2934 = vshrl.u32 %v2933, 7
  %v2935 = vsub.s32 0, %v2934
  %v2936 = vrot.slane %v2931, %v2935
  %v2939 = vsel %vm69, %v2911, 0
  %v2942 = vsel %vm69, %v2912, 0
  %v2945 = vsel %vm69, %v2913, 0
  %v2948 = vsel %vm69, %v2914, 0
  %v2951 = vsel %vm69, %v2915, 0
  %v2954 = vsel %vm69, %v2916, 0
  %v2957 = vsel %vm69, %v2917, 0
  %v2960 = vsel %vm69, %v2918, 0
  %v2963 = vsel %vm69, %v2919, 0
  %v2966 = vsel %vm69, %v2920, 0
  %v2969 = vsel %vm69, %v2921, 0
  %v2972 = vsel %vm69, %v2922, 0
  %v2975 = vsel %vm69, %v2923, 0
  %v2978 = vsel %vm69, %v2924, 0
  %v2981 = vsel %vm69, %v2925, 0
  %v2984 = vsel %vm69, %v2926, 0
  %2986 = vmatprep.subr.mxu0 0.0
  %2987 = vmatpush1.msra.mxu0 %v2927
  %2988 = vmatprep.subr.mxu0 0.0
  %2989 = vmatpush1.msra.mxu0 %v2928
  %2990 = vmatprep.subr.mxu0 0.0
  %2991 = vmatpush1.msra.mxu0 %v2929
  %2992 = vmatprep.subr.mxu0 0.0
  %2993 = vmatpush1.msra.mxu0 %v2930
  %2994 = vmatprep.subr.mxu0 0.0
  %2995 = vmatpush1.msra.mxu0 0.0
  %2996 = vmatprep.subr.mxu0 0.0
  %2997 = vmatpush1.msra.mxu0 0.0
  %2998 = vmatprep.subr.mxu0 0.0
  %2999 = vmatpush1.msra.mxu0 0.0
  %3000 = vmatprep.subr.mxu0 0.0
  %3001 = vmatpush1.msra.mxu0 0.0
  %3002 = vmatprep.subr.mxu0 0.0
  %3003 = vmatpush1.msra.mxu0 0.0
  %3004 = vmatprep.subr.mxu0 0.0
  %3005 = vmatpush1.msra.mxu0 0.0
  %3006 = vmatprep.subr.mxu0 0.0
  %3007 = vmatpush1.msra.mxu0 0.0
  %3008 = vmatprep.subr.mxu0 0.0
  %3009 = vmatpush1.msra.mxu0 0.0
  %3010 = vmatprep.subr.mxu0 0.0
  %3011 = vmatpush1.msra.mxu0 0.0
  %3012 = vmatprep.subr.mxu0 0.0
  %3013 = vmatpush1.msra.mxu0 0.0
  %3014 = vmatprep.subr.mxu0 0.0
  %3015 = vmatpush1.msra.mxu0 0.0
  %3016 = vmatprep.subr.mxu0 0.0
  %3017 = vmatpush1.msra.mxu0 0.0
  %3018 = vmatprep.subr.mxu0 0.0
  %3019 = vmatpush1.msra.mxu0 0.0
  %3020 = vmatprep.subr.mxu0 0.0
  %3021 = vmatpush1.msra.mxu0 0.0
  %3022 = vmatprep.subr.mxu0 0.0
  %3023 = vmatpush1.msra.mxu0 0.0
  %3024 = vmatprep.subr.mxu0 0.0
  %3025 = vmatpush1.msra.mxu0 0.0
  %3026 = vmatprep.subr.mxu0 0.0
  %3027 = vmatpush1.msra.mxu0 0.0
  %3028 = vmatprep.subr.mxu0 0.0
  %3029 = vmatpush1.msra.mxu0 0.0
  %3030 = vmatprep.subr.mxu0 0.0
  %3031 = vmatpush1.msra.mxu0 0.0
  %3032 = vmatprep.subr.mxu0 0.0
  %3033 = vmatpush1.msra.mxu0 0.0
  %3034 = vmatprep.subr.mxu0 0.0
  %3035 = vmatpush1.msra.mxu0 0.0
  %3036 = vmatprep.subr.mxu0 0.0
  %3037 = vmatpush1.msra.mxu0 0.0
  %3038 = vmatprep.subr.mxu0 0.0
  %3039 = vmatpush1.msra.mxu0 0.0
  %3040 = vmatprep.subr.mxu0 0.0
  %3041 = vmatpush1.msra.mxu0 0.0
  %3042 = vmatprep.subr.mxu0 0.0
  %3043 = vmatpush1.msra.mxu0 0.0
  %3044 = vmatprep.subr.mxu0 0.0
  %3045 = vmatpush1.msra.mxu0 0.0
  %3046 = vmatprep.subr.mxu0 0.0
  %3047 = vmatpush1.msra.mxu0 0.0
  %3048 = vmatprep.subr.mxu0 0.0
  %3049 = vmatpush1.msra.mxu0 0.0
  %3050 = vmatprep.mubr.f32.mxu0 0.0
  %3051 = vmatmul.mubr.f32.gmra.mrb[0].mxu0 %v2939
  %v3052 = vpop.f32.mrb[0].mxu0
  %v3053 = vadd.f32 %v2936, %v3052
  %v3054 = vpop.f32.mrb[0].mxu0
  %3055 = vmatprep.mubr.f32.mxu0 0.0
  %3056 = vmatmul.mubr.f32.gmra.mrb[0].mxu0 %v2942
  %v3057 = vpop.f32.mrb[0].mxu0
  %v3058 = vadd.f32 %v2936, %v3057
  %v3059 = vpop.f32.mrb[0].mxu0
  %3060 = vmatprep.mubr.f32.mxu0 0.0
  %3061 = vmatmul.mubr.f32.gmra.mrb[0].mxu0 %v2945
  %v3062 = vpop.f32.mrb[0].mxu0
  %v3063 = vadd.f32 %v2936, %v3062
  %v3064 = vpop.f32.mrb[0].mxu0
  %3065 = vmatprep.mubr.f32.mxu0 0.0
  %3066 = vmatmul.mubr.f32.gmra.mrb[0].mxu0 %v2948
  %v3067 = vpop.f32.mrb[0].mxu0
  %v3068 = vadd.f32 %v2936, %v3067
  %v3069 = vpop.f32.mrb[0].mxu0
  %3070 = vmatprep.mubr.f32.mxu0 0.0
  %3071 = vmatmul.mubr.f32.gmra.mrb[0].mxu0 %v2951
  %v3072 = vpop.f32.mrb[0].mxu0
  %v3073 = vadd.f32 %v2936, %v3072
  %v3074 = vpop.f32.mrb[0].mxu0
  %3075 = vmatprep.mubr.f32.mxu0 0.0
  %3076 = vmatmul.mubr.f32.gmra.mrb[0].mxu0 %v2954
  %v3077 = vpop.f32.mrb[0].mxu0
  %v3078 = vadd.f32 %v2936, %v3077
  %v3079 = vpop.f32.mrb[0].mxu0
  %3080 = vmatprep.mubr.f32.mxu0 0.0
  %3081 = vmatmul.mubr.f32.gmra.mrb[0].mxu0 %v2957
  %v3082 = vpop.f32.mrb[0].mxu0
  %v3083 = vadd.f32 %v2936, %v3082
  %v3084 = vpop.f32.mrb[0].mxu0
  %3085 = vmatprep.mubr.f32.mxu0 0.0
  %3086 = vmatmul.mubr.f32.gmra.mrb[0].mxu0 %v2960
  %v3087 = vpop.f32.mrb[0].mxu0
  %v3088 = vadd.f32 %v2936, %v3087
  %v3089 = vpop.f32.mrb[0].mxu0
  %3090 = vmatprep.mubr.f32.mxu0 0.0
  %3091 = vmatmul.mubr.f32.gmra.mrb[0].mxu0 %v2963
  %v3092 = vpop.f32.mrb[0].mxu0
  %v3093 = vadd.f32 %v2936, %v3092
  %v3094 = vpop.f32.mrb[0].mxu0
  %3095 = vmatprep.mubr.f32.mxu0 0.0
  %3096 = vmatmul.mubr.f32.gmra.mrb[0].mxu0 %v2966
  %v3097 = vpop.f32.mrb[0].mxu0
  %v3098 = vadd.f32 %v2936, %v3097
  %v3099 = vpop.f32.mrb[0].mxu0
  %3100 = vmatprep.mubr.f32.mxu0 0.0
  %3101 = vmatmul.mubr.f32.gmra.mrb[0].mxu0 %v2969
  %v3102 = vpop.f32.mrb[0].mxu0
  %v3103 = vadd.f32 %v2936, %v3102
  %v3104 = vpop.f32.mrb[0].mxu0
  %3105 = vmatprep.mubr.f32.mxu0 0.0
  %3106 = vmatmul.mubr.f32.gmra.mrb[0].mxu0 %v2972
  %v3107 = vpop.f32.mrb[0].mxu0
  %v3108 = vadd.f32 %v2936, %v3107
  %v3109 = vpop.f32.mrb[0].mxu0
  %3110 = vmatprep.mubr.f32.mxu0 0.0
  %3111 = vmatmul.mubr.f32.gmra.mrb[0].mxu0 %v2975
  %v3112 = vpop.f32.mrb[0].mxu0
  %v3113 = vadd.f32 %v2936, %v3112
  %v3114 = vpop.f32.mrb[0].mxu0
  %3115 = vmatprep.mubr.f32.mxu0 0.0
  %3116 = vmatmul.mubr.f32.gmra.mrb[0].mxu0 %v2978
  %v3117 = vpop.f32.mrb[0].mxu0
  %v3118 = vadd.f32 %v2936, %v3117
  %v3119 = vpop.f32.mrb[0].mxu0
  %3120 = vmatprep.mubr.f32.mxu0 0.0
  %3121 = vmatmul.mubr.f32.gmra.mrb[0].mxu0 %v2981
  %v3122 = vpop.f32.mrb[0].mxu0
  %v3123 = vadd.f32 %v2936, %v3122
  %v3124 = vpop.f32.mrb[0].mxu0
  %3125 = vmatprep.mubr.f32.mxu0 0.0
  %3126 = vmatmul.mubr.f32.gmra.mrb[0].mxu0 %v2984
  %v3127 = vpop.f32.mrb[0].mxu0
  %v3128 = vadd.f32 %v2936, %v3127
  %v3129 = vpop.f32.mrb[0].mxu0
  %3130 = vdwg.mxu0
  %v3131 = vmul.f32 %v3053, %v3053
  %v3132 = vmul.f32 %v3058, %v3058
  %v3133 = vmul.f32 %v3063, %v3063
  %v3134 = vmul.f32 %v3068, %v3068
  %v3135 = vmul.f32 %v3073, %v3073
  %v3136 = vmul.f32 %v3078, %v3078
  %v3137 = vmul.f32 %v3083, %v3083
  %v3138 = vmul.f32 %v3088, %v3088
  %v3139 = vmul.f32 %v3093, %v3093
  %v3140 = vmul.f32 %v3098, %v3098
  %v3141 = vmul.f32 %v3103, %v3103
  %v3142 = vmul.f32 %v3108, %v3108
  %v3143 = vmul.f32 %v3113, %v3113
  %v3144 = vmul.f32 %v3118, %v3118
  %v3145 = vmul.f32 %v3123, %v3123
  %v3146 = vmul.f32 %v3128, %v3128
  %v3147 = vmul.f32 %v3053, %v3131
  %v3148 = vmul.f32 %v3058, %v3132
  %v3149 = vmul.f32 %v3063, %v3133
  %v3150 = vmul.f32 %v3068, %v3134
  %v3151 = vmul.f32 %v3073, %v3135
  %v3152 = vmul.f32 %v3078, %v3136
  %v3153 = vmul.f32 %v3083, %v3137
  %v3154 = vmul.f32 %v3088, %v3138
  %v3155 = vmul.f32 %v3093, %v3139
  %v3156 = vmul.f32 %v3098, %v3140
  %v3157 = vmul.f32 %v3103, %v3141
  %v3158 = vmul.f32 %v3108, %v3142
  %v3159 = vmul.f32 %v3113, %v3143
  %v3160 = vmul.f32 %v3118, %v3144
  %v3161 = vmul.f32 %v3123, %v3145
  %v3162 = vmul.f32 %v3128, %v3146
  %v3163 = vmul.f32 %v3147, 0.044715
  %v3164 = vmul.f32 %v3148, 0.044715
  %v3165 = vmul.f32 %v3149, 0.044715
  %v3166 = vmul.f32 %v3150, 0.044715
  %v3167 = vmul.f32 %v3151, 0.044715
  %v3168 = vmul.f32 %v3152, 0.044715
  %v3169 = vmul.f32 %v3153, 0.044715
  %v3170 = vmul.f32 %v3154, 0.044715
  %v3171 = vmul.f32 %v3155, 0.044715
  %v3172 = vmul.f32 %v3156, 0.044715
  %v3173 = vmul.f32 %v3157, 0.044715
  %v3174 = vmul.f32 %v3158, 0.044715
  %v3175 = vmul.f32 %v3159, 0.044715
  %v3176 = vmul.f32 %v3160, 0.044715
  %v3177 = vmul.f32 %v3161, 0.044715
  %v3178 = vmul.f32 %v3162, 0.044715
  %v3179 = vadd.f32 %v3053, %v3163
  %v3180 = vadd.f32 %v3058, %v3164
  %v3181 = vadd.f32 %v3063, %v3165
  %v3182 = vadd.f32 %v3068, %v3166
  %v3183 = vadd.f32 %v3073, %v3167
  %v3184 = vadd.f32 %v3078, %v3168
  %v3185 = vadd.f32 %v3083, %v3169
  %v3186 = vadd.f32 %v3088, %v3170
  %v3187 = vadd.f32 %v3093, %v3171
  %v3188 = vadd.f32 %v3098, %v3172
  %v3189 = vadd.f32 %v3103, %v3173
  %v3190 = vadd.f32 %v3108, %v3174
  %v3191 = vadd.f32 %v3113, %v3175
  %v3192 = vadd.f32 %v3118, %v3176
  %v3193 = vadd.f32 %v3123, %v3177
  %v3194 = vadd.f32 %v3128, %v3178
  %v3195 = vmul.f32 %v3179, 0.7978846
  %v3196 = vmul.f32 %v3180, 0.7978846
  %v3197 = vmul.f32 %v3181, 0.7978846
  %v3198 = vmul.f32 %v3182, 0.7978846
  %v3199 = vmul.f32 %v3183, 0.7978846
  %v3200 = vmul.f32 %v3184, 0.7978846
  %v3201 = vmul.f32 %v3185, 0.7978846
  %v3202 = vmul.f32 %v3186, 0.7978846
  %v3203 = vmul.f32 %v3187, 0.7978846
  %v3204 = vmul.f32 %v3188, 0.7978846
  %v3205 = vmul.f32 %v3189, 0.7978846
  %v3206 = vmul.f32 %v3190, 0.7978846
  %v3207 = vmul.f32 %v3191, 0.7978846
  %v3208 = vmul.f32 %v3192, 0.7978846
  %v3209 = vmul.f32 %v3193, 0.7978846
  %v3210 = vmul.f32 %v3194, 0.7978846
  %v3211 = vtanh.pop %v3195
  %v3212 = vtanh.pop %v3196
  %v3213 = vtanh.pop %v3197
  %v3214 = vtanh.pop %v3198
  %v3215 = vtanh.pop %v3199
  %v3216 = vtanh.pop %v3200
  %v3217 = vtanh.pop %v3201
  %v3218 = vtanh.pop %v3202
  %v3219 = vtanh.pop %v3203
  %v3220 = vtanh.pop %v3204
  %v3221 = vtanh.pop %v3205
  %v3222 = vtanh.pop %v3206
  %v3223 = vtanh.pop %v3207
  %v3224 = vtanh.pop %v3208
  %v3225 = vtanh.pop %v3209
  %v3226 = vtanh.pop %v3210
  %v3227 = vadd.f32 %v3211, 1.0
  %v3228 = vadd.f32 %v3212, 1.0
  %v3229 = vadd.f32 %v3213, 1.0
  %v3230 = vadd.f32 %v3214, 1.0
  %v3231 = vadd.f32 %v3215, 1.0
  %v3232 = vadd.f32 %v3216, 1.0
  %v3233 = vadd.f32 %v3217, 1.0
  %v3234 = vadd.f32 %v3218, 1.0
  %v3235 = vadd.f32 %v3219, 1.0
  %v3236 = vadd.f32 %v3220, 1.0
  %v3237 = vadd.f32 %v3221, 1.0
  %v3238 = vadd.f32 %v3222, 1.0
  %v3239 = vadd.f32 %v3223, 1.0
  %v3240 = vadd.f32 %v3224, 1.0
  %v3241 = vadd.f32 %v3225, 1.0
  %v3242 = vadd.f32 %v3226, 1.0
  %v3243 = vmul.f32 %v3227, 0.5
  %v3244 = vmul.f32 %v3228, 0.5
  %v3245 = vmul.f32 %v3229, 0.5
  %v3246 = vmul.f32 %v3230, 0.5
  %v3247 = vmul.f32 %v3231, 0.5
  %v3248 = vmul.f32 %v3232, 0.5
  %v3249 = vmul.f32 %v3233, 0.5
  %v3250 = vmul.f32 %v3234, 0.5
  %v3251 = vmul.f32 %v3235, 0.5
  %v3252 = vmul.f32 %v3236, 0.5
  %v3253 = vmul.f32 %v3237, 0.5
  %v3254 = vmul.f32 %v3238, 0.5
  %v3255 = vmul.f32 %v3239, 0.5
  %v3256 = vmul.f32 %v3240, 0.5
  %v3257 = vmul.f32 %v3241, 0.5
  %v3258 = vmul.f32 %v3242, 0.5
  %v3259 = vmul.f32 %v3053, %v3243
  %v3260 = vmul.f32 %v3058, %v3244
  %v3261 = vmul.f32 %v3063, %v3245
  %v3262 = vmul.f32 %v3068, %v3246
  %v3263 = vmul.f32 %v3073, %v3247
  %v3264 = vmul.f32 %v3078, %v3248
  %v3265 = vmul.f32 %v3083, %v3249
  %v3266 = vmul.f32 %v3088, %v3250
  %v3267 = vmul.f32 %v3093, %v3251
  %v3268 = vmul.f32 %v3098, %v3252
  %v3269 = vmul.f32 %v3103, %v3253
  %v3270 = vmul.f32 %v3108, %v3254
  %v3271 = vmul.f32 %v3113, %v3255
  %v3272 = vmul.f32 %v3118, %v3256
  %v3273 = vmul.f32 %v3123, %v3257
  %v3274 = vmul.f32 %v3128, %v3258
  %v3275 = vld [vmem:[%s14] sm:$0xff]
  %v3276 = vld [vmem:[%s14 + $0x8] sm:$0xff]
  %v3277 = vld [vmem:[%s14 + $0x10] sm:$0xff]
  %v3278 = vld [vmem:[%s14 + $0x18] sm:$0xff]
  %v3279 = vld [vmem:[%s14 + $0x20] sm:$0xff]
  %v3280 = vld [vmem:[%s14 + $0x28] sm:$0xff]
  %v3281 = vld [vmem:[%s14 + $0x30] sm:$0xff]
  %v3282 = vld [vmem:[%s14 + $0x38] sm:$0xff]
  %v3283 = vld [vmem:[%s15] sm:$0x1]
  %v3285 = vlaneseq
  %v3286 = vshrl.u32 %v3285, 7
  %v3287 = vsub.s32 0, %v3286
  %v3288 = vrot.slane %v3283, %v3287
  %v3291 = vsel %vm740, %v3259, 0
  %v3294 = vsel %vm740, %v3260, 0
  %v3297 = vsel %vm740, %v3261, 0
  %v3300 = vsel %vm740, %v3262, 0
  %v3303 = vsel %vm740, %v3263, 0
  %v3306 = vsel %vm740, %v3264, 0
  %v3309 = vsel %vm740, %v3265, 0
  %v3312 = vsel %vm740, %v3266, 0
  %v3315 = vsel %vm740, %v3267, 0
  %v3318 = vsel %vm740, %v3268, 0
  %v3321 = vsel %vm740, %v3269, 0
  %v3324 = vsel %vm740, %v3270, 0
  %v3327 = vsel %vm740, %v3271, 0
  %v3330 = vsel %vm740, %v3272, 0
  %v3333 = vsel %vm740, %v3273, 0
  %v3336 = vsel %vm740, %v3274, 0
  %3338 = vmatprep.subr.mxu0 0.0
  %3339 = vmatpush1.msra.mxu0 %v3275
  %3340 = vmatprep.subr.mxu0 0.0
  %3341 = vmatpush1.msra.mxu0 %v3276
  %3342 = vmatprep.subr.mxu0 0.0
  %3343 = vmatpush1.msra.mxu0 %v3277
  %3344 = vmatprep.subr.mxu0 0.0
  %3345 = vmatpush1.msra.mxu0 %v3278
  %3346 = vmatprep.subr.mxu0 0.0
  %3347 = vmatpush1.msra.mxu0 %v3279
  %3348 = vmatprep.subr.mxu0 0.0
  %3349 = vmatpush1.msra.mxu0 %v3280
  %3350 = vmatprep.subr.mxu0 0.0
  %3351 = vmatpush1.msra.mxu0 %v3281
  %3352 = vmatprep.subr.mxu0 0.0
  %3353 = vmatpush1.msra.mxu0 %v3282
  %3354 = vmatprep.subr.mxu0 0.0
  %3355 = vmatpush1.msra.mxu0 0.0
  %3356 = vmatprep.subr.mxu0 0.0
  %3357 = vmatpush1.msra.mxu0 0.0
  %3358 = vmatprep.subr.mxu0 0.0
  %3359 = vmatpush1.msra.mxu0 0.0
  %3360 = vmatprep.subr.mxu0 0.0
  %3361 = vmatpush1.msra.mxu0 0.0
  %3362 = vmatprep.subr.mxu0 0.0
  %3363 = vmatpush1.msra.mxu0 0.0
  %3364 = vmatprep.subr.mxu0 0.0
  %3365 = vmatpush1.msra.mxu0 0.0
  %3366 = vmatprep.subr.mxu0 0.0
  %3367 = vmatpush1.msra.mxu0 0.0
  %3368 = vmatprep.subr.mxu0 0.0
  %3369 = vmatpush1.msra.mxu0 0.0
  %3370 = vmatprep.subr.mxu0 0.0
  %3371 = vmatpush1.msra.mxu0 0.0
  %3372 = vmatprep.subr.mxu0 0.0
  %3373 = vmatpush1.msra.mxu0 0.0
  %3374 = vmatprep.subr.mxu0 0.0
  %3375 = vmatpush1.msra.mxu0 0.0
  %3376 = vmatprep.subr.mxu0 0.0
  %3377 = vmatpush1.msra.mxu0 0.0
  %3378 = vmatprep.subr.mxu0 0.0
  %3379 = vmatpush1.msra.mxu0 0.0
  %3380 = vmatprep.subr.mxu0 0.0
  %3381 = vmatpush1.msra.mxu0 0.0
  %3382 = vmatprep.subr.mxu0 0.0
  %3383 = vmatpush1.msra.mxu0 0.0
  %3384 = vmatprep.subr.mxu0 0.0
  %3385 = vmatpush1.msra.mxu0 0.0
  %3386 = vmatprep.subr.mxu0 0.0
  %3387 = vmatpush1.msra.mxu0 0.0
  %3388 = vmatprep.subr.mxu0 0.0
  %3389 = vmatpush1.msra.mxu0 0.0
  %3390 = vmatprep.subr.mxu0 0.0
  %3391 = vmatpush1.msra.mxu0 0.0
  %3392 = vmatprep.subr.mxu0 0.0
  %3393 = vmatpush1.msra.mxu0 0.0
  %3394 = vmatprep.subr.mxu0 0.0
  %3395 = vmatpush1.msra.mxu0 0.0
  %3396 = vmatprep.subr.mxu0 0.0
  %3397 = vmatpush1.msra.mxu0 0.0
  %3398 = vmatprep.subr.mxu0 0.0
  %3399 = vmatpush1.msra.mxu0 0.0
  %3400 = vmatprep.subr.mxu0 0.0
  %3401 = vmatpush1.msra.mxu0 0.0
  %3402 = vmatprep.mubr.f32.mxu0 0.0
  %3403 = vmatmul.mubr.f32.gmra.mrb[0].mxu0 %v3291
  %v3404 = vpop.f32.mrb[0].mxu0
  %v3405 = vadd.f32 %v3288, %v3404
  %v3406 = vpop.f32.mrb[0].mxu0
  %3407 = vmatprep.mubr.f32.mxu0 0.0
  %3408 = vmatmul.mubr.f32.gmra.mrb[0].mxu0 %v3294
  %v3409 = vpop.f32.mrb[0].mxu0
  %v3410 = vadd.f32 %v3288, %v3409
  %v3411 = vpop.f32.mrb[0].mxu0
  %3412 = vmatprep.mubr.f32.mxu0 0.0
  %3413 = vmatmul.mubr.f32.gmra.mrb[0].mxu0 %v3297
  %v3414 = vpop.f32.mrb[0].mxu0
  %v3415 = vadd.f32 %v3288, %v3414
  %v3416 = vpop.f32.mrb[0].mxu0
  %3417 = vmatprep.mubr.f32.mxu0 0.0
  %3418 = vmatmul.mubr.f32.gmra.mrb[0].mxu0 %v3300
  %v3419 = vpop.f32.mrb[0].mxu0
  %v3420 = vadd.f32 %v3288, %v3419
  %v3421 = vpop.f32.mrb[0].mxu0
  %3422 = vmatprep.mubr.f32.mxu0 0.0
  %3423 = vmatmul.mubr.f32.gmra.mrb[0].mxu0 %v3303
  %v3424 = vpop.f32.mrb[0].mxu0
  %v3425 = vadd.f32 %v3288, %v3424
  %v3426 = vpop.f32.mrb[0].mxu0
  %3427 = vmatprep.mubr.f32.mxu0 0.0
  %3428 = vmatmul.mubr.f32.gmra.mrb[0].mxu0 %v3306
  %v3429 = vpop.f32.mrb[0].mxu0
  %v3430 = vadd.f32 %v3288, %v3429
  %v3431 = vpop.f32.mrb[0].mxu0
  %3432 = vmatprep.mubr.f32.mxu0 0.0
  %3433 = vmatmul.mubr.f32.gmra.mrb[0].mxu0 %v3309
  %v3434 = vpop.f32.mrb[0].mxu0
  %v3435 = vadd.f32 %v3288, %v3434
  %v3436 = vpop.f32.mrb[0].mxu0
  %3437 = vmatprep.mubr.f32.mxu0 0.0
  %3438 = vmatmul.mubr.f32.gmra.mrb[0].mxu0 %v3312
  %v3439 = vpop.f32.mrb[0].mxu0
  %v3440 = vadd.f32 %v3288, %v3439
  %v3441 = vpop.f32.mrb[0].mxu0
  %3442 = vmatprep.mubr.f32.mxu0 0.0
  %3443 = vmatmul.mubr.f32.gmra.mrb[0].mxu0 %v3315
  %v3444 = vpop.f32.mrb[0].mxu0
  %v3445 = vadd.f32 %v3288, %v3444
  %v3446 = vpop.f32.mrb[0].mxu0
  %3447 = vmatprep.mubr.f32.mxu0 0.0
  %3448 = vmatmul.mubr.f32.gmra.mrb[0].mxu0 %v3318
  %v3449 = vpop.f32.mrb[0].mxu0
  %v3450 = vadd.f32 %v3288, %v3449
  %v3451 = vpop.f32.mrb[0].mxu0
  %3452 = vmatprep.mubr.f32.mxu0 0.0
  %3453 = vmatmul.mubr.f32.gmra.mrb[0].mxu0 %v3321
  %v3454 = vpop.f32.mrb[0].mxu0
  %v3455 = vadd.f32 %v3288, %v3454
  %v3456 = vpop.f32.mrb[0].mxu0
  %3457 = vmatprep.mubr.f32.mxu0 0.0
  %3458 = vmatmul.mubr.f32.gmra.mrb[0].mxu0 %v3324
  %v3459 = vpop.f32.mrb[0].mxu0
  %v3460 = vadd.f32 %v3288, %v3459
  %v3461 = vpop.f32.mrb[0].mxu0
  %3462 = vmatprep.mubr.f32.mxu0 0.0
  %3463 = vmatmul.mubr.f32.gmra.mrb[0].mxu0 %v3327
  %v3464 = vpop.f32.mrb[0].mxu0
  %v3465 = vadd.f32 %v3288, %v3464
  %v3466 = vpop.f32.mrb[0].mxu0
  %3467 = vmatprep.mubr.f32.mxu0 0.0
  %3468 = vmatmul.mubr.f32.gmra.mrb[0].mxu0 %v3330
  %v3469 = vpop.f32.mrb[0].mxu0
  %v3470 = vadd.f32 %v3288, %v3469
  %v3471 = vpop.f32.mrb[0].mxu0
  %3472 = vmatprep.mubr.f32.mxu0 0.0
  %3473 = vmatmul.mubr.f32.gmra.mrb[0].mxu0 %v3333
  %v3474 = vpop.f32.mrb[0].mxu0
  %v3475 = vadd.f32 %v3288, %v3474
  %v3476 = vpop.f32.mrb[0].mxu0
  %3477 = vmatprep.mubr.f32.mxu0 0.0
  %3478 = vmatmul.mubr.f32.gmra.mrb[0].mxu0 %v3336
  %v3479 = vpop.f32.mrb[0].mxu0
  %v3480 = vadd.f32 %v3288, %v3479
  %v3481 = vpop.f32.mrb[0].mxu0
  %3482 = vdwg.mxu0
  %v3483 = vld [vmem:[%s9] sm:$0x1]
  %v3485 = vlaneseq
  %v3486 = vshrl.u32 %v3485, 7
  %v3487 = vsub.s32 0, %v3486
  %v3488 = vrot.slane %v3483, %v3487
  %v3490 = vmul.f32 %v3488, %v3405
  %v3491 = vmul.f32 %v3488, %v3410
  %v3492 = vmul.f32 %v3488, %v3415
  %v3493 = vmul.f32 %v3488, %v3420
  %v3494 = vmul.f32 %v3488, %v3425
  %v3495 = vmul.f32 %v3488, %v3430
  %v3496 = vmul.f32 %v3488, %v3435
  %v3497 = vmul.f32 %v3488, %v3440
  %v3498 = vmul.f32 %v3488, %v3445
  %v3499 = vmul.f32 %v3488, %v3450
  %v3500 = vmul.f32 %v3488, %v3455
  %v3501 = vmul.f32 %v3488, %v3460
  %v3502 = vmul.f32 %v3488, %v3465
  %v3503 = vmul.f32 %v3488, %v3470
  %v3504 = vmul.f32 %v3488, %v3475
  %v3505 = vmul.f32 %v3488, %v3480
  %v3506 = vadd.f32 %v2657, %v3490
  %v3507 = vadd.f32 %v2658, %v3491
  %v3508 = vadd.f32 %v2659, %v3492
  %v3509 = vadd.f32 %v2660, %v3493
  %v3510 = vadd.f32 %v2661, %v3494
  %v3511 = vadd.f32 %v2662, %v3495
  %v3512 = vadd.f32 %v2663, %v3496
  %v3513 = vadd.f32 %v2664, %v3497
  %v3514 = vadd.f32 %v2665, %v3498
  %v3515 = vadd.f32 %v2666, %v3499
  %v3516 = vadd.f32 %v2667, %v3500
  %v3517 = vadd.f32 %v2668, %v3501
  %v3518 = vadd.f32 %v2669, %v3502
  %v3519 = vadd.f32 %v2670, %v3503
  %v3520 = vadd.f32 %v2671, %v3504
  %v3521 = vadd.f32 %v2672, %v3505
  %3522 = vst.msk [vmem:[%s16] sm:$0xff] %vm69, %v3506
  %3523 = vst.msk [vmem:[%s16 + $0x8] sm:$0xff] %vm69, %v3507
  %3524 = vst.msk [vmem:[%s16 + $0x10] sm:$0xff] %vm69, %v3508
  %3525 = vst.msk [vmem:[%s16 + $0x18] sm:$0xff] %vm69, %v3509
  %3526 = vst.msk [vmem:[%s16 + $0x20] sm:$0xff] %vm69, %v3510
  %3527 = vst.msk [vmem:[%s16 + $0x28] sm:$0xff] %vm69, %v3511
  %3528 = vst.msk [vmem:[%s16 + $0x30] sm:$0xff] %vm69, %v3512
  %3529 = vst.msk [vmem:[%s16 + $0x38] sm:$0xff] %vm69, %v3513
  %3530 = vst.msk [vmem:[%s16 + $0x40] sm:$0xff] %vm69, %v3514
  %3531 = vst.msk [vmem:[%s16 + $0x48] sm:$0xff] %vm69, %v3515
  %3532 = vst.msk [vmem:[%s16 + $0x50] sm:$0xff] %vm69, %v3516
  %3533 = vst.msk [vmem:[%s16 + $0x58] sm:$0xff] %vm69, %v3517
  %3534 = vst.msk [vmem:[%s16 + $0x60] sm:$0xff] %vm69, %v3518
  %3535 = vst.msk [vmem:[%s16 + $0x68] sm:$0xff] %vm69, %v3519
  %3536 = vst.msk [vmem:[%s16 + $0x70] sm:$0xff] %vm69, %v3520
  %3537 = vst.msk [vmem:[%s16 + $0x78] sm:$0xff] %vm69, %v3521
  // Predicated region
  $region66: #{tpu_custom_call.1} parent=0 // pred_check
    _
  $region67: #{tpu_custom_call.1} parent=0 // pred_check_branch
    %3539 = sbr.rel (0) target = $region69
  $region68: #{tpu_custom_call.1} parent=0 // pred_region
    _
  $region69: #{tpu_custom_call.1} parent=0 // pred_fallthru
    _
  // Predicated region
  $region70: #{tpu_custom_call.1} parent=0 // pred_check
    _
  $region71: #{tpu_custom_call.1} parent=0 // pred_check_branch
    %3541 = sbr.rel (0) target = $region73
  $region72: #{tpu_custom_call.1} parent=0 // pred_region
    _
  $region73: #{tpu_custom_call.1} parent=0 // pred_fallthru
    _

</llo_original>
